<compile_context>
chip_gen: v6e
topology: v6e:2x2x1
jax: 0.10.0
libtpu: 0.0.40
codegen_flags: <defaults>
</compile_context>

<pallas_src>
import math
import functools

import numpy as np
import jax
import jax.numpy as jnp
from jax import lax
from jax.experimental import pallas as pl
from jax.experimental.pallas import tpu as pltpu


# ----------------------------------------------------------------------------
# Plain-JAX glue: PositionEmbeddingRandom (SAM)
# ----------------------------------------------------------------------------
def position_embedding_random(size, gaussian_matrix):
    """Returns PE of shape (C, h, w), C = 2 * num_pos_feats."""
    h, w = size
    grid = jnp.ones((h, w), jnp.float32)
    y_embed = (jnp.cumsum(grid, axis=0) - 0.5) / h
    x_embed = (jnp.cumsum(grid, axis=1) - 0.5) / w
    coords = jnp.stack([x_embed, y_embed], axis=-1)          # (h, w, 2)
    coords = 2.0 * coords - 1.0
    coords = coords @ gaussian_matrix                         # (h, w, C/2)
    coords = 2.0 * jnp.pi * coords
    pe = jnp.concatenate([jnp.sin(coords), jnp.cos(coords)], axis=-1)  # (h, w, C)
    return jnp.transpose(pe, (2, 0, 1))                       # (C, h, w)


# ----------------------------------------------------------------------------
# Pallas kernel: PE add + multi-head self-attention + output projection.
#   grid = (B, L // TQ); each step computes one q-row tile of one batch elem.
# ----------------------------------------------------------------------------
def gcm_kernel(tokens_ref, pe_ref,
               wq_ref, bq_ref, wk_ref, bk_ref, wv_ref, bv_ref,
               wo_ref, bo_ref,
               out_ref,
               x_sc, k_sc, v_sc, heads_sc, s_sc, p_sc,
               *, num_heads, q_tile, softmax_bf16):
    _, L, C = tokens_ref.shape
    H = num_heads
    dh = C // H
    scale = 1.0 / math.sqrt(dh)
    qi = pl.program_id(1)

    # ---- Once per batch element (first q tile): x = tokens + pe and the K/V
    # projections.  K/V are computed full-width (one (L,C)@(C,C) matmul each,
    # filling the MXU columns) and repacked ONCE into head-major scratch so
    # the per-q-tile inner loop never lane-slices K or V.
    @pl.when(qi == 0)
    def _():
        x = tokens_ref[0] + pe_ref[...]                                  # bf16 (L, C)
        x_sc[...] = x
        k_full = (jnp.dot(x, wk_ref[...], preferred_element_type=jnp.float32)
                  + bk_ref[...]).astype(jnp.bfloat16)                    # (L, C)
        for h in range(H):                                               # static repack
            k_sc[h] = k_full[:, h * dh:(h + 1) * dh]
        v_full = (jnp.dot(x, wv_ref[...], preferred_element_type=jnp.float32)
                  + bv_ref[...]).astype(jnp.bfloat16)                    # (L, C)
        for h in range(H):
            v_sc[h] = v_full[:, h * dh:(h + 1) * dh]

    # ---- Q projection for this tile: ONE full-width (TQ,C)@(C,C) matmul,
    # softmax scale folded in once, then static per-head slices.
    q_start = pl.multiple_of(qi * q_tile, q_tile)
    x_q = x_sc[pl.ds(q_start, q_tile), :]                                # (TQ, C) bf16
    q_all = ((jnp.dot(x_q, wq_ref[...], preferred_element_type=jnp.float32)
              + bq_ref[...]) * scale).astype(jnp.bfloat16)               # (TQ, C)

    for h in range(H):                                                   # static heads
        qh = q_all[:, h * dh:(h + 1) * dh]                               # (TQ, dh) bf16
        # scores: contract dh axes directly (no explicit k transpose); the
        # s_sc / p_sc scratch is reused across heads to bound live ranges.
        s_sc[...] = lax.dot_general(qh, k_sc[h],
                                    dimension_numbers=(((1,), (1,)), ((), ())),
                                    preferred_element_type=jnp.float32)  # (TQ, L)
        m = jnp.max(s_sc[...], axis=-1, keepdims=True)
        z = s_sc[...] - m
        if softmax_bf16:
            # bf16 exp (EUP/VPU bf16 paths on v6e/v7x); row sum stays in f32.
            p_sc[...] = jnp.exp(z.astype(jnp.bfloat16))
        else:
            # v5e (no bf16 VPU/EUP): keep the exp in f32, cast once for the MXU.
            p_sc[...] = jnp.exp(z).astype(jnp.bfloat16)
        denom = jnp.sum(p_sc[...], axis=-1, keepdims=True,
                        dtype=jnp.float32)                               # (TQ, 1) f32
        oh = jnp.dot(p_sc[...], v_sc[h],
                     preferred_element_type=jnp.float32)                 # (TQ, dh)
        # Normalize AFTER the AV matmul: (TQ, dh) multiply instead of (TQ, L).
        oh = oh * pl.reciprocal(denom, approx=True)
        # Static lane-slice store into the head-concat scratch (32-lane masked
        # stores; acceptable -- single vst slot note only matters on v5e).
        heads_sc[:, h * dh:(h + 1) * dh] = oh.astype(jnp.bfloat16)

    # Single C-deep output projection for all heads at once.
    out = jnp.dot(heads_sc[...], wo_ref[...],
                  preferred_element_type=jnp.float32) + bo_ref[...]      # (TQ, C)
    out_ref[0] = out.astype(out_ref.dtype)


# ----------------------------------------------------------------------------
# Wrapper
# ----------------------------------------------------------------------------
def _tpu_kind():
    try:
        return jax.devices()[0].device_kind.lower()
    except Exception:
        return ""


def global_context_module(tokens, params, num_heads):
    """tokens: (B, L, C) float32.  params: dict of weights (see init_params)."""
    B, L, C = tokens.shape
    H = num_heads
    assert C % H == 0, "embedding_dim must be divisible by num_heads"
    dh = C // H
    patch = int(math.sqrt(L))
    assert patch * patch == L, "sequence length must be a perfect square"

    kind = _tpu_kind()
    is_v7 = "v7" in kind
    # bf16 softmax tail only on chips with bf16 VPU/EUP (v6e / v7x); f32 elsewhere.
    softmax_bf16 = ("v6" in kind) or is_v7

    # q-row tile: whole sequence when small; otherwise 512-row tiles
    # (256 on v7x, whose 64 MiB/TC VMEM wants the (TQ, L) score/prob scratch
    # halved to ~6 MiB).
    cap = 256 if is_v7 else 512
    TQ = L if L <= cap else cap
    assert L % TQ == 0
    n_q = L // TQ

    # Rough resident-VMEM tally at SAM sizes (L=4096, C=256, H=8), bf16 inputs:
    #   x_sc 2 MiB + head-major K/V scratch ~16 MiB (dh=32 lane padding)
    #   + heads 0.25 MiB + s/p scratch 12 MiB (TQ=512) / 6 MiB (TQ=256)
    #   + double-buffered tokens/pe/out blocks ~9 MiB + weights ~1 MiB
    #   + qi==0 projection temporaries ~6 MiB  =>  ~46 MiB / ~40 MiB peak.
    vmem_limit = (44 if is_v7 else 64) * 1024 * 1024

    # PE: (C, p, p) -> flatten(2) -> (C, L) -> permute -> (L, C); delivered
    # bf16 (halves its DMA/VMEM block; x is consumed in bf16 anyway).
    pe = position_embedding_random((patch, patch), params["pe_gaussian"])
    pe = jnp.transpose(pe.reshape(C, L), (1, 0)).astype(jnp.bfloat16)    # (L, C)
    tokens_bf = tokens.astype(jnp.bfloat16)

    # PyTorch Linear stores W as (out, in); kernel consumes full-width W^T
    # (in, out) bf16 so every projection fills the MXU columns.
    wq_t = params["wq"].T.astype(jnp.bfloat16)
    wk_t = params["wk"].T.astype(jnp.bfloat16)
    wv_t = params["wv"].T.astype(jnp.bfloat16)
    wo_t = params["wo"].T.astype(jnp.bfloat16)
    bq = params["bq"].reshape(1, C).astype(jnp.float32)
    bk = params["bk"].reshape(1, C).astype(jnp.float32)
    bv = params["bv"].reshape(1, C).astype(jnp.float32)
    bo = params["bo"].reshape(1, C).astype(jnp.float32)

    kernel = functools.partial(gcm_kernel, num_heads=H, q_tile=TQ,
                               softmax_bf16=softmax_bf16)

    const2 = lambda b, qi: (0, 0)   # constant-index blocks (pe / weights / biases)
    # TODO(synk): single-buffer the constant-index blocks (pipeline_mode =
    # pl.Buffered(1)) and, on v7x with small B, hoist the qi==0 x/K/V
    # precompute into its own stage so the q-tile axis can be 'parallel' too.

    return pl.pallas_call(
        kernel,
        out_shape=jax.ShapeDtypeStruct((B, L, C), jnp.float32),
        grid_spec=pltpu.PrefetchScalarGridSpec(
            num_scalar_prefetch=0,
            grid=(B, n_q),
            in_specs=[
                pl.BlockSpec((1, L, C), lambda b, qi: (b, 0, 0)),   # tokens (bf16)
                pl.BlockSpec((L, C), const2),                       # pe (bf16)
                pl.BlockSpec((C, C), const2),                       # Wq^T
                pl.BlockSpec((1, C), const2),                       # bq
                pl.BlockSpec((C, C), const2),                       # Wk^T
                pl.BlockSpec((1, C), const2),                       # bk
                pl.BlockSpec((C, C), const2),                       # Wv^T
                pl.BlockSpec((1, C), const2),                       # bv
                pl.BlockSpec((C, C), const2),                       # Wo^T
                pl.BlockSpec((1, C), const2),                       # bo
            ],
            out_specs=pl.BlockSpec((1, TQ, C), lambda b, qi: (b, qi, 0)),
            scratch_shapes=[
                pltpu.VMEM((L, C), jnp.bfloat16),      # x = tokens + pe
                pltpu.VMEM((H, L, dh), jnp.bfloat16),  # per-head K (head-major)
                pltpu.VMEM((H, L, dh), jnp.bfloat16),  # per-head V (head-major)
                pltpu.VMEM((TQ, C), jnp.bfloat16),     # concat of per-head outputs
                pltpu.VMEM((TQ, L), jnp.float32),      # scores (reused across heads)
                pltpu.VMEM((TQ, L), jnp.bfloat16),     # exp probs (reused across heads)
            ],
        ),
        compiler_params=pltpu.CompilerParams(
            # Batch axis is parallel (megacore); q-tile axis is 'arbitrary'
            # because x/K/V scratch computed at qi==0 is reused across q tiles.
            dimension_semantics=("parallel", "arbitrary"),
            vmem_limit_bytes=vmem_limit,
        ),
    )(tokens_bf, pe, wq_t, bq, wk_t, bk, wv_t, bv, wo_t, bo)


# ----------------------------------------------------------------------------
# Deterministic parameter init (synthetic; shapes follow the nn.Module)
# ----------------------------------------------------------------------------
def init_params(key, embedding_dim):
    C = embedding_dim
    ks = jax.random.split(key, 9)
    s = 1.0 / math.sqrt(C)
    return {
        # PositionEmbeddingRandom(embedding_dim // 2): gaussian matrix (2, C/2)
        "pe_gaussian": jax.random.normal(ks[0], (2, C // 2), jnp.float32),
        # Attention(embedding_dim, num_heads), downsample_rate=1
        "wq": jax.random.uniform(ks[1], (C, C), jnp.float32, -s, s),
        "bq": jax.random.uniform(ks[2], (C,), jnp.float32, -s, s),
        "wk": jax.random.uniform(ks[3], (C, C), jnp.float32, -s, s),
        "bk": jax.random.uniform(ks[4], (C,), jnp.float32, -s, s),
        "wv": jax.random.uniform(ks[5], (C, C), jnp.float32, -s, s),
        "bv": jax.random.uniform(ks[6], (C,), jnp.float32, -s, s),
        "wo": jax.random.uniform(ks[7], (C, C), jnp.float32, -s, s),
        "bo": jax.random.uniform(ks[8], (C,), jnp.float32, -s, s),
    }


# ----------------------------------------------------------------------------
# Pure-JAX f32 reference (mirrors the PyTorch forward) for a correctness check
# ----------------------------------------------------------------------------
def reference_forward(tokens, params, num_heads):
    B, L, C = tokens.shape
    patch = int(math.sqrt(L))
    pe = position_embedding_random((patch, patch), params["pe_gaussian"])
    pe = jnp.transpose(pe.reshape(C, L), (1, 0))[None]                   # (1, L, C)
    x = tokens + pe
    q = x @ params["wq"].T + params["bq"]
    k = x @ params["wk"].T + params["bk"]
    v = x @ params["wv"].T + params["bv"]
    dh = C // num_heads

    def split(t):
        return jnp.transpose(t.reshape(B, L, num_heads, dh), (0, 2, 1, 3))  # (B,H,L,dh)

    qh, kh, vh = split(q), split(k), split(v)
    attn = jnp.einsum("bhqd,bhkd->bhqk", qh, kh) / math.sqrt(dh)
    attn = jax.nn.softmax(attn, axis=-1)
    out = jnp.einsum("bhqk,bhkd->bhqd", attn, vh)
    out = jnp.transpose(out, (0, 2, 1, 3)).reshape(B, L, C)
    return out @ params["wo"].T + params["bo"]


if __name__ == "__main__":
    B, L, C, H = 2, 64, 32, 4          # patch = 8, embedding_dim = 32, 4 heads
    key = jax.random.PRNGKey(0)
    k_tok, k_par = jax.random.split(key)
    tokens = jax.random.normal(k_tok, (B, L, C), jnp.float32)
    params = init_params(k_par, C)

    out = global_context_module(tokens, params, H)
    out = jax.block_until_ready(out)

    ref = reference_forward(tokens, params, H)
    # bf16 inputs + bf16 MXU operands + (on v6e/v7x) bf16 softmax tail +
    # approx reciprocal -> loosen tolerance vs the pure-f32 reference.
    np.testing.assert_allclose(np.asarray(out), np.asarray(ref), rtol=3e-2, atol=3e-2)

    print("KERNEL_OK")
</pallas_src>

<mosaic_0001>
module attributes {stable_mosaic.version = 11 : i64} {
  func.func @gcm_kernel(%arg0: i32, %arg1: i32, %arg2: memref<1x64x32xbf16, #tpu.memory_space<vmem>>, %arg3: memref<64x32xbf16, #tpu.memory_space<vmem>>, %arg4: memref<32x32xbf16, #tpu.memory_space<vmem>>, %arg5: memref<1x32xf32, #tpu.memory_space<vmem>>, %arg6: memref<32x32xbf16, #tpu.memory_space<vmem>>, %arg7: memref<1x32xf32, #tpu.memory_space<vmem>>, %arg8: memref<32x32xbf16, #tpu.memory_space<vmem>>, %arg9: memref<1x32xf32, #tpu.memory_space<vmem>>, %arg10: memref<32x32xbf16, #tpu.memory_space<vmem>>, %arg11: memref<1x32xf32, #tpu.memory_space<vmem>>, %arg12: memref<1x64x32xf32, #tpu.memory_space<vmem>>, %arg13: memref<64x32xbf16, #tpu.memory_space<vmem>>, %arg14: memref<4x64x8xbf16, #tpu.memory_space<vmem>>, %arg15: memref<4x64x8xbf16, #tpu.memory_space<vmem>>, %arg16: memref<64x32xbf16, #tpu.memory_space<vmem>>, %arg17: memref<64x64xf32, #tpu.memory_space<vmem>>, %arg18: memref<64x64xbf16, #tpu.memory_space<vmem>>) attributes {dimension_semantics = [#tpu.dimension_semantics<parallel>, #tpu.dimension_semantics<arbitrary>], iteration_bounds = array<i64: 2, 1>, scalar_prefetch = 0 : i64, scratch_operands = 6 : i64, tpu.core_type = #tpu.core_type<tc>, window_params = [{transform_indices = @transform_0, window_bounds = array<i64: 1, 64, 32>}, {pipeline_mode = #tpu.pipeline_mode<synchronous>, transform_indices = @transform_1, window_bounds = array<i64: 64, 32>}, {pipeline_mode = #tpu.pipeline_mode<synchronous>, transform_indices = @transform_2, window_bounds = array<i64: 32, 32>}, {pipeline_mode = #tpu.pipeline_mode<synchronous>, transform_indices = @transform_3, window_bounds = array<i64: 1, 32>}, {pipeline_mode = #tpu.pipeline_mode<synchronous>, transform_indices = @transform_4, window_bounds = array<i64: 32, 32>}, {pipeline_mode = #tpu.pipeline_mode<synchronous>, transform_indices = @transform_5, window_bounds = array<i64: 1, 32>}, {pipeline_mode = #tpu.pipeline_mode<synchronous>, transform_indices = @transform_6, window_bounds = array<i64: 32, 32>}, {pipeline_mode = #tpu.pipeline_mode<synchronous>, transform_indices = @transform_7, window_bounds = array<i64: 1, 32>}, {pipeline_mode = #tpu.pipeline_mode<synchronous>, transform_indices = @transform_8, window_bounds = array<i64: 32, 32>}, {pipeline_mode = #tpu.pipeline_mode<synchronous>, transform_indices = @transform_9, window_bounds = array<i64: 1, 32>}, {transform_indices = @transform_10, window_bounds = array<i64: 1, 64, 32>}]} {
    %c0_i32 = arith.constant 0 : i32
    %0 = arith.cmpi eq, %arg1, %c0_i32 : i32
    %1 = arith.extui %0 : i1 to i32
    %c0_i32_0 = arith.constant 0 : i32
    %2 = arith.cmpi ne, %1, %c0_i32_0 : i32
    scf.if %2 {
      %c0_106 = arith.constant 0 : index
      %c0_107 = arith.constant 0 : index
      %c0_108 = arith.constant 0 : index
      %132 = vector.load %arg2[%c0_106, %c0_107, %c0_108] : memref<1x64x32xbf16, #tpu.memory_space<vmem>>, vector<1x64x32xbf16>
      %133 = vector.shape_cast %132 : vector<1x64x32xbf16> to vector<64x32xbf16>
      %c0_109 = arith.constant 0 : index
      %c0_110 = arith.constant 0 : index
      %134 = vector.load %arg3[%c0_109, %c0_110] : memref<64x32xbf16, #tpu.memory_space<vmem>>, vector<64x32xbf16>
      %135 = arith.addf %133, %134 : vector<64x32xbf16>
      %c0_111 = arith.constant 0 : index
      %c0_112 = arith.constant 0 : index
      %136 = vector.load %arg13[%c0_111, %c0_112] : memref<64x32xbf16, #tpu.memory_space<vmem>>, vector<64x32xbf16>
      tpu.vector_store %arg13[%c0_111, %c0_112], %135 {strides = array<i32>} : memref<64x32xbf16, #tpu.memory_space<vmem>>, vector<64x32xbf16>,
      %c0_113 = arith.constant 0 : index
      %c0_114 = arith.constant 0 : index
      %137 = vector.load %arg6[%c0_113, %c0_114] : memref<32x32xbf16, #tpu.memory_space<vmem>>, vector<32x32xbf16>
      %cst_115 = arith.constant dense<0.000000e+00> : vector<64x32xf32>
      %138 = tpu.matmul %135, %137, %cst_115 {dimension_numbers = #tpu.dot_dimension_numbers<[1], [0], [0], [1], [0, 0, 1, 1], [], []>} : vector<64x32xbf16>, vector<32x32xbf16>, vector<64x32xf32> -> vector<64x32xf32>
      %c0_116 = arith.constant 0 : index
      %c0_117 = arith.constant 0 : index
      %139 = vector.load %arg7[%c0_116, %c0_117] : memref<1x32xf32, #tpu.memory_space<vmem>>, vector<1x32xf32>
      %140 = vector.broadcast %139 : vector<1x32xf32> to vector<64x32xf32>
      %141 = arith.addf %138, %140 : vector<64x32xf32>
      %142 = arith.truncf %141 : vector<64x32xf32> to vector<64x32xbf16>
      %143 = vector.extract_strided_slice %142 {offsets = [0, 0], sizes = [64, 8], strides = [1, 1]} : vector<64x32xbf16> to vector<64x8xbf16>
      %c0_118 = arith.constant 0 : index
      %c0_119 = arith.constant 0 : index
      %c0_120 = arith.constant 0 : index
      %144 = vector.load %arg14[%c0_118, %c0_119, %c0_120] : memref<4x64x8xbf16, #tpu.memory_space<vmem>>, vector<1x64x8xbf16>
      %145 = vector.shape_cast %144 : vector<1x64x8xbf16> to vector<64x8xbf16>
      %146 = vector.shape_cast %143 : vector<64x8xbf16> to vector<1x64x8xbf16>
      tpu.vector_store %arg14[%c0_118, %c0_119, %c0_120], %146 {strides = array<i32>} : memref<4x64x8xbf16, #tpu.memory_space<vmem>>, vector<1x64x8xbf16>,
      %147 = vector.extract_strided_slice %142 {offsets = [0, 8], sizes = [64, 8], strides = [1, 1]} : vector<64x32xbf16> to vector<64x8xbf16>
      %c1_121 = arith.constant 1 : index
      %c0_122 = arith.constant 0 : index
      %c0_123 = arith.constant 0 : index
      %148 = vector.load %arg14[%c1_121, %c0_122, %c0_123] : memref<4x64x8xbf16, #tpu.memory_space<vmem>>, vector<1x64x8xbf16>
      %149 = vector.shape_cast %148 : vector<1x64x8xbf16> to vector<64x8xbf16>
      %150 = vector.shape_cast %147 : vector<64x8xbf16> to vector<1x64x8xbf16>
      tpu.vector_store %arg14[%c1_121, %c0_122, %c0_123], %150 {strides = array<i32>} : memref<4x64x8xbf16, #tpu.memory_space<vmem>>, vector<1x64x8xbf16>,
      %151 = vector.extract_strided_slice %142 {offsets = [0, 16], sizes = [64, 8], strides = [1, 1]} : vector<64x32xbf16> to vector<64x8xbf16>
      %c2_124 = arith.constant 2 : index
      %c0_125 = arith.constant 0 : index
      %c0_126 = arith.constant 0 : index
      %152 = vector.load %arg14[%c2_124, %c0_125, %c0_126] : memref<4x64x8xbf16, #tpu.memory_space<vmem>>, vector<1x64x8xbf16>
      %153 = vector.shape_cast %152 : vector<1x64x8xbf16> to vector<64x8xbf16>
      %154 = vector.shape_cast %151 : vector<64x8xbf16> to vector<1x64x8xbf16>
      tpu.vector_store %arg14[%c2_124, %c0_125, %c0_126], %154 {strides = array<i32>} : memref<4x64x8xbf16, #tpu.memory_space<vmem>>, vector<1x64x8xbf16>,
      %155 = vector.extract_strided_slice %142 {offsets = [0, 24], sizes = [64, 8], strides = [1, 1]} : vector<64x32xbf16> to vector<64x8xbf16>
      %c3_127 = arith.constant 3 : index
      %c0_128 = arith.constant 0 : index
      %c0_129 = arith.constant 0 : index
      %156 = vector.load %arg14[%c3_127, %c0_128, %c0_129] : memref<4x64x8xbf16, #tpu.memory_space<vmem>>, vector<1x64x8xbf16>
      %157 = vector.shape_cast %156 : vector<1x64x8xbf16> to vector<64x8xbf16>
      %158 = vector.shape_cast %155 : vector<64x8xbf16> to vector<1x64x8xbf16>
      tpu.vector_store %arg14[%c3_127, %c0_128, %c0_129], %158 {strides = array<i32>} : memref<4x64x8xbf16, #tpu.memory_space<vmem>>, vector<1x64x8xbf16>,
      %c0_130 = arith.constant 0 : index
      %c0_131 = arith.constant 0 : index
      %159 = vector.load %arg8[%c0_130, %c0_131] : memref<32x32xbf16, #tpu.memory_space<vmem>>, vector<32x32xbf16>
      %cst_132 = arith.constant dense<0.000000e+00> : vector<64x32xf32>
      %160 = tpu.matmul %135, %159, %cst_132 {dimension_numbers = #tpu.dot_dimension_numbers<[1], [0], [0], [1], [0, 0, 1, 1], [], []>} : vector<64x32xbf16>, vector<32x32xbf16>, vector<64x32xf32> -> vector<64x32xf32>
      %c0_133 = arith.constant 0 : index
      %c0_134 = arith.constant 0 : index
      %161 = vector.load %arg9[%c0_133, %c0_134] : memref<1x32xf32, #tpu.memory_space<vmem>>, vector<1x32xf32>
      %162 = vector.broadcast %161 : vector<1x32xf32> to vector<64x32xf32>
      %163 = arith.addf %160, %162 : vector<64x32xf32>
      %164 = arith.truncf %163 : vector<64x32xf32> to vector<64x32xbf16>
      %165 = vector.extract_strided_slice %164 {offsets = [0, 0], sizes = [64, 8], strides = [1, 1]} : vector<64x32xbf16> to vector<64x8xbf16>
      %c0_135 = arith.constant 0 : index
      %c0_136 = arith.constant 0 : index
      %c0_137 = arith.constant 0 : index
      %166 = vector.load %arg15[%c0_135, %c0_136, %c0_137] : memref<4x64x8xbf16, #tpu.memory_space<vmem>>, vector<1x64x8xbf16>
      %167 = vector.shape_cast %166 : vector<1x64x8xbf16> to vector<64x8xbf16>
      %168 = vector.shape_cast %165 : vector<64x8xbf16> to vector<1x64x8xbf16>
      tpu.vector_store %arg15[%c0_135, %c0_136, %c0_137], %168 {strides = array<i32>} : memref<4x64x8xbf16, #tpu.memory_space<vmem>>, vector<1x64x8xbf16>,
      %169 = vector.extract_strided_slice %164 {offsets = [0, 8], sizes = [64, 8], strides = [1, 1]} : vector<64x32xbf16> to vector<64x8xbf16>
      %c1_138 = arith.constant 1 : index
      %c0_139 = arith.constant 0 : index
      %c0_140 = arith.constant 0 : index
      %170 = vector.load %arg15[%c1_138, %c0_139, %c0_140] : memref<4x64x8xbf16, #tpu.memory_space<vmem>>, vector<1x64x8xbf16>
      %171 = vector.shape_cast %170 : vector<1x64x8xbf16> to vector<64x8xbf16>
      %172 = vector.shape_cast %169 : vector<64x8xbf16> to vector<1x64x8xbf16>
      tpu.vector_store %arg15[%c1_138, %c0_139, %c0_140], %172 {strides = array<i32>} : memref<4x64x8xbf16, #tpu.memory_space<vmem>>, vector<1x64x8xbf16>,
      %173 = vector.extract_strided_slice %164 {offsets = [0, 16], sizes = [64, 8], strides = [1, 1]} : vector<64x32xbf16> to vector<64x8xbf16>
      %c2_141 = arith.constant 2 : index
      %c0_142 = arith.constant 0 : index
      %c0_143 = arith.constant 0 : index
      %174 = vector.load %arg15[%c2_141, %c0_142, %c0_143] : memref<4x64x8xbf16, #tpu.memory_space<vmem>>, vector<1x64x8xbf16>
      %175 = vector.shape_cast %174 : vector<1x64x8xbf16> to vector<64x8xbf16>
      %176 = vector.shape_cast %173 : vector<64x8xbf16> to vector<1x64x8xbf16>
      tpu.vector_store %arg15[%c2_141, %c0_142, %c0_143], %176 {strides = array<i32>} : memref<4x64x8xbf16, #tpu.memory_space<vmem>>, vector<1x64x8xbf16>,
      %177 = vector.extract_strided_slice %164 {offsets = [0, 24], sizes = [64, 8], strides = [1, 1]} : vector<64x32xbf16> to vector<64x8xbf16>
      %c3_144 = arith.constant 3 : index
      %c0_145 = arith.constant 0 : index
      %c0_146 = arith.constant 0 : index
      %178 = vector.load %arg15[%c3_144, %c0_145, %c0_146] : memref<4x64x8xbf16, #tpu.memory_space<vmem>>, vector<1x64x8xbf16>
      %179 = vector.shape_cast %178 : vector<1x64x8xbf16> to vector<64x8xbf16>
      %180 = vector.shape_cast %177 : vector<64x8xbf16> to vector<1x64x8xbf16>
      tpu.vector_store %arg15[%c3_144, %c0_145, %c0_146], %180 {strides = array<i32>} : memref<4x64x8xbf16, #tpu.memory_space<vmem>>, vector<1x64x8xbf16>,
    } else {
    }
    %c64_i32 = arith.constant 64 : i32
    %3 = arith.muli %arg1, %c64_i32 : i32
    %4 = tpu.assume_multiple %3, 64 : i32
    %5 = arith.index_cast %4 : i32 to index
    %c0 = arith.constant 0 : index
    %6 = vector.load %arg13[%5, %c0] : memref<64x32xbf16, #tpu.memory_space<vmem>>, vector<64x32xbf16>
    %c0_1 = arith.constant 0 : index
    %c0_2 = arith.constant 0 : index
    %7 = vector.load %arg4[%c0_1, %c0_2] : memref<32x32xbf16, #tpu.memory_space<vmem>>, vector<32x32xbf16>
    %cst = arith.constant dense<0.000000e+00> : vector<64x32xf32>
    %8 = tpu.matmul %6, %7, %cst {dimension_numbers = #tpu.dot_dimension_numbers<[1], [0], [0], [1], [0, 0, 1, 1], [], []>} : vector<64x32xbf16>, vector<32x32xbf16>, vector<64x32xf32> -> vector<64x32xf32>
    %c0_3 = arith.constant 0 : index
    %c0_4 = arith.constant 0 : index
    %9 = vector.load %arg5[%c0_3, %c0_4] : memref<1x32xf32, #tpu.memory_space<vmem>>, vector<1x32xf32>
    %10 = vector.broadcast %9 : vector<1x32xf32> to vector<64x32xf32>
    %11 = arith.addf %8, %10 : vector<64x32xf32>
    %cst_5 = arith.constant 0.353553385 : f32
    %12 = vector.broadcast %cst_5 : f32 to vector<64x32xf32>
    %13 = arith.mulf %11, %12 : vector<64x32xf32>
    %14 = arith.truncf %13 : vector<64x32xf32> to vector<64x32xbf16>
    %15 = vector.extract_strided_slice %14 {offsets = [0, 0], sizes = [64, 8], strides = [1, 1]} : vector<64x32xbf16> to vector<64x8xbf16>
    %c0_6 = arith.constant 0 : index
    %c0_7 = arith.constant 0 : index
    %c0_8 = arith.constant 0 : index
    %16 = vector.load %arg14[%c0_6, %c0_7, %c0_8] : memref<4x64x8xbf16, #tpu.memory_space<vmem>>, vector<1x64x8xbf16>
    %17 = vector.shape_cast %16 : vector<1x64x8xbf16> to vector<64x8xbf16>
    %cst_9 = arith.constant dense<0.000000e+00> : vector<64x64xf32>
    %18 = tpu.matmul %15, %17, %cst_9 {dimension_numbers = #tpu.dot_dimension_numbers<[1], [1], [0], [0], [0, 0, 1, 0], [], []>} : vector<64x8xbf16>, vector<64x8xbf16>, vector<64x64xf32> -> vector<64x64xf32>
    %c0_10 = arith.constant 0 : index
    %c0_11 = arith.constant 0 : index
    %19 = vector.load %arg17[%c0_10, %c0_11] : memref<64x64xf32, #tpu.memory_space<vmem>>, vector<64x64xf32>
    tpu.vector_store %arg17[%c0_10, %c0_11], %18 {strides = array<i32>} : memref<64x64xf32, #tpu.memory_space<vmem>>, vector<64x64xf32>,
    %c0_12 = arith.constant 0 : index
    %c0_13 = arith.constant 0 : index
    %20 = vector.load %arg17[%c0_12, %c0_13] : memref<64x64xf32, #tpu.memory_space<vmem>>, vector<64x64xf32>
    %cst_14 = arith.constant dense<0xFF800000> : vector<64xf32>
    %21 = vector.multi_reduction <maximumf>, %20, %cst_14 [1] : vector<64x64xf32> to vector<64xf32>
    %22 = vector.shape_cast %21 : vector<64xf32> to vector<64x1xf32>
    %c0_15 = arith.constant 0 : index
    %c0_16 = arith.constant 0 : index
    %23 = vector.load %arg17[%c0_15, %c0_16] : memref<64x64xf32, #tpu.memory_space<vmem>>, vector<64x64xf32>
    %24 = vector.broadcast %22 : vector<64x1xf32> to vector<64x64xf32>
    %25 = arith.subf %23, %24 : vector<64x64xf32>
    %26 = math.exp %25 : vector<64x64xf32>
    %27 = arith.truncf %26 : vector<64x64xf32> to vector<64x64xbf16>
    %c0_17 = arith.constant 0 : index
    %c0_18 = arith.constant 0 : index
    %28 = vector.load %arg18[%c0_17, %c0_18] : memref<64x64xbf16, #tpu.memory_space<vmem>>, vector<64x64xbf16>
    tpu.vector_store %arg18[%c0_17, %c0_18], %27 {strides = array<i32>} : memref<64x64xbf16, #tpu.memory_space<vmem>>, vector<64x64xbf16>,
    %c0_19 = arith.constant 0 : index
    %c0_20 = arith.constant 0 : index
    %29 = vector.load %arg18[%c0_19, %c0_20] : memref<64x64xbf16, #tpu.memory_space<vmem>>, vector<64x64xbf16>
    %30 = arith.extf %29 : vector<64x64xbf16> to vector<64x64xf32>
    %cst_21 = arith.constant dense<0.000000e+00> : vector<64xf32>
    %31 = vector.multi_reduction <add>, %30, %cst_21 [1] : vector<64x64xf32> to vector<64xf32>
    %32 = vector.shape_cast %31 : vector<64xf32> to vector<64x1xf32>
    %c0_22 = arith.constant 0 : index
    %c0_23 = arith.constant 0 : index
    %33 = vector.load %arg18[%c0_22, %c0_23] : memref<64x64xbf16, #tpu.memory_space<vmem>>, vector<64x64xbf16>
    %c0_24 = arith.constant 0 : index
    %c0_25 = arith.constant 0 : index
    %c0_26 = arith.constant 0 : index
    %34 = vector.load %arg15[%c0_24, %c0_25, %c0_26] : memref<4x64x8xbf16, #tpu.memory_space<vmem>>, vector<1x64x8xbf16>
    %35 = vector.shape_cast %34 : vector<1x64x8xbf16> to vector<64x8xbf16>
    %cst_27 = arith.constant dense<0.000000e+00> : vector<64x8xf32>
    %36 = tpu.matmul %33, %35, %cst_27 {dimension_numbers = #tpu.dot_dimension_numbers<[1], [0], [0], [1], [0, 0, 1, 1], [], []>} : vector<64x64xbf16>, vector<64x8xbf16>, vector<64x8xf32> -> vector<64x8xf32>
    %37 = tpu.reciprocal %32 {approx = true} : vector<64x1xf32> -> vector<64x1xf32>
    %38 = vector.broadcast %37 : vector<64x1xf32> to vector<64x8xf32>
    %39 = arith.mulf %36, %38 : vector<64x8xf32>
    %40 = arith.truncf %39 : vector<64x8xf32> to vector<64x8xbf16>
    %c0_28 = arith.constant 0 : index
    %c0_29 = arith.constant 0 : index
    %41 = vector.load %arg16[%c0_28, %c0_29] : memref<64x32xbf16, #tpu.memory_space<vmem>>, vector<64x8xbf16>
    tpu.vector_store %arg16[%c0_28, %c0_29], %40 {strides = array<i32>} : memref<64x32xbf16, #tpu.memory_space<vmem>>, vector<64x8xbf16>,
    %42 = vector.extract_strided_slice %14 {offsets = [0, 8], sizes = [64, 8], strides = [1, 1]} : vector<64x32xbf16> to vector<64x8xbf16>
    %c1 = arith.constant 1 : index
    %c0_30 = arith.constant 0 : index
    %c0_31 = arith.constant 0 : index
    %43 = vector.load %arg14[%c1, %c0_30, %c0_31] : memref<4x64x8xbf16, #tpu.memory_space<vmem>>, vector<1x64x8xbf16>
    %44 = vector.shape_cast %43 : vector<1x64x8xbf16> to vector<64x8xbf16>
    %cst_32 = arith.constant dense<0.000000e+00> : vector<64x64xf32>
    %45 = tpu.matmul %42, %44, %cst_32 {dimension_numbers = #tpu.dot_dimension_numbers<[1], [1], [0], [0], [0, 0, 1, 0], [], []>} : vector<64x8xbf16>, vector<64x8xbf16>, vector<64x64xf32> -> vector<64x64xf32>
    %c0_33 = arith.constant 0 : index
    %c0_34 = arith.constant 0 : index
    %46 = vector.load %arg17[%c0_33, %c0_34] : memref<64x64xf32, #tpu.memory_space<vmem>>, vector<64x64xf32>
    tpu.vector_store %arg17[%c0_33, %c0_34], %45 {strides = array<i32>} : memref<64x64xf32, #tpu.memory_space<vmem>>, vector<64x64xf32>,
    %c0_35 = arith.constant 0 : index
    %c0_36 = arith.constant 0 : index
    %47 = vector.load %arg17[%c0_35, %c0_36] : memref<64x64xf32, #tpu.memory_space<vmem>>, vector<64x64xf32>
    %cst_37 = arith.constant dense<0xFF800000> : vector<64xf32>
    %48 = vector.multi_reduction <maximumf>, %47, %cst_37 [1] : vector<64x64xf32> to vector<64xf32>
    %49 = vector.shape_cast %48 : vector<64xf32> to vector<64x1xf32>
    %c0_38 = arith.constant 0 : index
    %c0_39 = arith.constant 0 : index
    %50 = vector.load %arg17[%c0_38, %c0_39] : memref<64x64xf32, #tpu.memory_space<vmem>>, vector<64x64xf32>
    %51 = vector.broadcast %49 : vector<64x1xf32> to vector<64x64xf32>
    %52 = arith.subf %50, %51 : vector<64x64xf32>
    %53 = math.exp %52 : vector<64x64xf32>
    %54 = arith.truncf %53 : vector<64x64xf32> to vector<64x64xbf16>
    %c0_40 = arith.constant 0 : index
    %c0_41 = arith.constant 0 : index
    %55 = vector.load %arg18[%c0_40, %c0_41] : memref<64x64xbf16, #tpu.memory_space<vmem>>, vector<64x64xbf16>
    tpu.vector_store %arg18[%c0_40, %c0_41], %54 {strides = array<i32>} : memref<64x64xbf16, #tpu.memory_space<vmem>>, vector<64x64xbf16>,
    %c0_42 = arith.constant 0 : index
    %c0_43 = arith.constant 0 : index
    %56 = vector.load %arg18[%c0_42, %c0_43] : memref<64x64xbf16, #tpu.memory_space<vmem>>, vector<64x64xbf16>
    %57 = arith.extf %56 : vector<64x64xbf16> to vector<64x64xf32>
    %cst_44 = arith.constant dense<0.000000e+00> : vector<64xf32>
    %58 = vector.multi_reduction <add>, %57, %cst_44 [1] : vector<64x64xf32> to vector<64xf32>
    %59 = vector.shape_cast %58 : vector<64xf32> to vector<64x1xf32>
    %c0_45 = arith.constant 0 : index
    %c0_46 = arith.constant 0 : index
    %60 = vector.load %arg18[%c0_45, %c0_46] : memref<64x64xbf16, #tpu.memory_space<vmem>>, vector<64x64xbf16>
    %c1_47 = arith.constant 1 : index
    %c0_48 = arith.constant 0 : index
    %c0_49 = arith.constant 0 : index
    %61 = vector.load %arg15[%c1_47, %c0_48, %c0_49] : memref<4x64x8xbf16, #tpu.memory_space<vmem>>, vector<1x64x8xbf16>
    %62 = vector.shape_cast %61 : vector<1x64x8xbf16> to vector<64x8xbf16>
    %cst_50 = arith.constant dense<0.000000e+00> : vector<64x8xf32>
    %63 = tpu.matmul %60, %62, %cst_50 {dimension_numbers = #tpu.dot_dimension_numbers<[1], [0], [0], [1], [0, 0, 1, 1], [], []>} : vector<64x64xbf16>, vector<64x8xbf16>, vector<64x8xf32> -> vector<64x8xf32>
    %64 = tpu.reciprocal %59 {approx = true} : vector<64x1xf32> -> vector<64x1xf32>
    %65 = vector.broadcast %64 : vector<64x1xf32> to vector<64x8xf32>
    %66 = arith.mulf %63, %65 : vector<64x8xf32>
    %67 = arith.truncf %66 : vector<64x8xf32> to vector<64x8xbf16>
    %c0_51 = arith.constant 0 : index
    %c8 = arith.constant 8 : index
    %68 = vector.load %arg16[%c0_51, %c8] : memref<64x32xbf16, #tpu.memory_space<vmem>>, vector<64x8xbf16>
    tpu.vector_store %arg16[%c0_51, %c8], %67 {strides = array<i32>} : memref<64x32xbf16, #tpu.memory_space<vmem>>, vector<64x8xbf16>,
    %69 = vector.extract_strided_slice %14 {offsets = [0, 16], sizes = [64, 8], strides = [1, 1]} : vector<64x32xbf16> to vector<64x8xbf16>
    %c2 = arith.constant 2 : index
    %c0_52 = arith.constant 0 : index
    %c0_53 = arith.constant 0 : index
    %70 = vector.load %arg14[%c2, %c0_52, %c0_53] : memref<4x64x8xbf16, #tpu.memory_space<vmem>>, vector<1x64x8xbf16>
    %71 = vector.shape_cast %70 : vector<1x64x8xbf16> to vector<64x8xbf16>
    %cst_54 = arith.constant dense<0.000000e+00> : vector<64x64xf32>
    %72 = tpu.matmul %69, %71, %cst_54 {dimension_numbers = #tpu.dot_dimension_numbers<[1], [1], [0], [0], [0, 0, 1, 0], [], []>} : vector<64x8xbf16>, vector<64x8xbf16>, vector<64x64xf32> -> vector<64x64xf32>
    %c0_55 = arith.constant 0 : index
    %c0_56 = arith.constant 0 : index
    %73 = vector.load %arg17[%c0_55, %c0_56] : memref<64x64xf32, #tpu.memory_space<vmem>>, vector<64x64xf32>
    tpu.vector_store %arg17[%c0_55, %c0_56], %72 {strides = array<i32>} : memref<64x64xf32, #tpu.memory_space<vmem>>, vector<64x64xf32>,
    %c0_57 = arith.constant 0 : index
    %c0_58 = arith.constant 0 : index
    %74 = vector.load %arg17[%c0_57, %c0_58] : memref<64x64xf32, #tpu.memory_space<vmem>>, vector<64x64xf32>
    %cst_59 = arith.constant dense<0xFF800000> : vector<64xf32>
    %75 = vector.multi_reduction <maximumf>, %74, %cst_59 [1] : vector<64x64xf32> to vector<64xf32>
    %76 = vector.shape_cast %75 : vector<64xf32> to vector<64x1xf32>
    %c0_60 = arith.constant 0 : index
    %c0_61 = arith.constant 0 : index
    %77 = vector.load %arg17[%c0_60, %c0_61] : memref<64x64xf32, #tpu.memory_space<vmem>>, vector<64x64xf32>
    %78 = vector.broadcast %76 : vector<64x1xf32> to vector<64x64xf32>
    %79 = arith.subf %77, %78 : vector<64x64xf32>
    %80 = math.exp %79 : vector<64x64xf32>
    %81 = arith.truncf %80 : vector<64x64xf32> to vector<64x64xbf16>
    %c0_62 = arith.constant 0 : index
    %c0_63 = arith.constant 0 : index
    %82 = vector.load %arg18[%c0_62, %c0_63] : memref<64x64xbf16, #tpu.memory_space<vmem>>, vector<64x64xbf16>
    tpu.vector_store %arg18[%c0_62, %c0_63], %81 {strides = array<i32>} : memref<64x64xbf16, #tpu.memory_space<vmem>>, vector<64x64xbf16>,
    %c0_64 = arith.constant 0 : index
    %c0_65 = arith.constant 0 : index
    %83 = vector.load %arg18[%c0_64, %c0_65] : memref<64x64xbf16, #tpu.memory_space<vmem>>, vector<64x64xbf16>
    %84 = arith.extf %83 : vector<64x64xbf16> to vector<64x64xf32>
    %cst_66 = arith.constant dense<0.000000e+00> : vector<64xf32>
    %85 = vector.multi_reduction <add>, %84, %cst_66 [1] : vector<64x64xf32> to vector<64xf32>
    %86 = vector.shape_cast %85 : vector<64xf32> to vector<64x1xf32>
    %c0_67 = arith.constant 0 : index
    %c0_68 = arith.constant 0 : index
    %87 = vector.load %arg18[%c0_67, %c0_68] : memref<64x64xbf16, #tpu.memory_space<vmem>>, vector<64x64xbf16>
    %c2_69 = arith.constant 2 : index
    %c0_70 = arith.constant 0 : index
    %c0_71 = arith.constant 0 : index
    %88 = vector.load %arg15[%c2_69, %c0_70, %c0_71] : memref<4x64x8xbf16, #tpu.memory_space<vmem>>, vector<1x64x8xbf16>
    %89 = vector.shape_cast %88 : vector<1x64x8xbf16> to vector<64x8xbf16>
    %cst_72 = arith.constant dense<0.000000e+00> : vector<64x8xf32>
    %90 = tpu.matmul %87, %89, %cst_72 {dimension_numbers = #tpu.dot_dimension_numbers<[1], [0], [0], [1], [0, 0, 1, 1], [], []>} : vector<64x64xbf16>, vector<64x8xbf16>, vector<64x8xf32> -> vector<64x8xf32>
    %91 = tpu.reciprocal %86 {approx = true} : vector<64x1xf32> -> vector<64x1xf32>
    %92 = vector.broadcast %91 : vector<64x1xf32> to vector<64x8xf32>
    %93 = arith.mulf %90, %92 : vector<64x8xf32>
    %94 = arith.truncf %93 : vector<64x8xf32> to vector<64x8xbf16>
    %c0_73 = arith.constant 0 : index
    %c16 = arith.constant 16 : index
    %95 = vector.load %arg16[%c0_73, %c16] : memref<64x32xbf16, #tpu.memory_space<vmem>>, vector<64x8xbf16>
    tpu.vector_store %arg16[%c0_73, %c16], %94 {strides = array<i32>} : memref<64x32xbf16, #tpu.memory_space<vmem>>, vector<64x8xbf16>,
    %96 = vector.extract_strided_slice %14 {offsets = [0, 24], sizes = [64, 8], strides = [1, 1]} : vector<64x32xbf16> to vector<64x8xbf16>
    %c3 = arith.constant 3 : index
    %c0_74 = arith.constant 0 : index
    %c0_75 = arith.constant 0 : index
    %97 = vector.load %arg14[%c3, %c0_74, %c0_75] : memref<4x64x8xbf16, #tpu.memory_space<vmem>>, vector<1x64x8xbf16>
    %98 = vector.shape_cast %97 : vector<1x64x8xbf16> to vector<64x8xbf16>
    %cst_76 = arith.constant dense<0.000000e+00> : vector<64x64xf32>
    %99 = tpu.matmul %96, %98, %cst_76 {dimension_numbers = #tpu.dot_dimension_numbers<[1], [1], [0], [0], [0, 0, 1, 0], [], []>} : vector<64x8xbf16>, vector<64x8xbf16>, vector<64x64xf32> -> vector<64x64xf32>
    %c0_77 = arith.constant 0 : index
    %c0_78 = arith.constant 0 : index
    %100 = vector.load %arg17[%c0_77, %c0_78] : memref<64x64xf32, #tpu.memory_space<vmem>>, vector<64x64xf32>
    tpu.vector_store %arg17[%c0_77, %c0_78], %99 {strides = array<i32>} : memref<64x64xf32, #tpu.memory_space<vmem>>, vector<64x64xf32>,
    %c0_79 = arith.constant 0 : index
    %c0_80 = arith.constant 0 : index
    %101 = vector.load %arg17[%c0_79, %c0_80] : memref<64x64xf32, #tpu.memory_space<vmem>>, vector<64x64xf32>
    %cst_81 = arith.constant dense<0xFF800000> : vector<64xf32>
    %102 = vector.multi_reduction <maximumf>, %101, %cst_81 [1] : vector<64x64xf32> to vector<64xf32>
    %103 = vector.shape_cast %102 : vector<64xf32> to vector<64x1xf32>
    %c0_82 = arith.constant 0 : index
    %c0_83 = arith.constant 0 : index
    %104 = vector.load %arg17[%c0_82, %c0_83] : memref<64x64xf32, #tpu.memory_space<vmem>>, vector<64x64xf32>
    %105 = vector.broadcast %103 : vector<64x1xf32> to vector<64x64xf32>
    %106 = arith.subf %104, %105 : vector<64x64xf32>
    %107 = math.exp %106 : vector<64x64xf32>
    %108 = arith.truncf %107 : vector<64x64xf32> to vector<64x64xbf16>
    %c0_84 = arith.constant 0 : index
    %c0_85 = arith.constant 0 : index
    %109 = vector.load %arg18[%c0_84, %c0_85] : memref<64x64xbf16, #tpu.memory_space<vmem>>, vector<64x64xbf16>
    tpu.vector_store %arg18[%c0_84, %c0_85], %108 {strides = array<i32>} : memref<64x64xbf16, #tpu.memory_space<vmem>>, vector<64x64xbf16>,
    %c0_86 = arith.constant 0 : index
    %c0_87 = arith.constant 0 : index
    %110 = vector.load %arg18[%c0_86, %c0_87] : memref<64x64xbf16, #tpu.memory_space<vmem>>, vector<64x64xbf16>
    %111 = arith.extf %110 : vector<64x64xbf16> to vector<64x64xf32>
    %cst_88 = arith.constant dense<0.000000e+00> : vector<64xf32>
    %112 = vector.multi_reduction <add>, %111, %cst_88 [1] : vector<64x64xf32> to vector<64xf32>
    %113 = vector.shape_cast %112 : vector<64xf32> to vector<64x1xf32>
    %c0_89 = arith.constant 0 : index
    %c0_90 = arith.constant 0 : index
    %114 = vector.load %arg18[%c0_89, %c0_90] : memref<64x64xbf16, #tpu.memory_space<vmem>>, vector<64x64xbf16>
    %c3_91 = arith.constant 3 : index
    %c0_92 = arith.constant 0 : index
    %c0_93 = arith.constant 0 : index
    %115 = vector.load %arg15[%c3_91, %c0_92, %c0_93] : memref<4x64x8xbf16, #tpu.memory_space<vmem>>, vector<1x64x8xbf16>
    %116 = vector.shape_cast %115 : vector<1x64x8xbf16> to vector<64x8xbf16>
    %cst_94 = arith.constant dense<0.000000e+00> : vector<64x8xf32>
    %117 = tpu.matmul %114, %116, %cst_94 {dimension_numbers = #tpu.dot_dimension_numbers<[1], [0], [0], [1], [0, 0, 1, 1], [], []>} : vector<64x64xbf16>, vector<64x8xbf16>, vector<64x8xf32> -> vector<64x8xf32>
    %118 = tpu.reciprocal %113 {approx = true} : vector<64x1xf32> -> vector<64x1xf32>
    %119 = vector.broadcast %118 : vector<64x1xf32> to vector<64x8xf32>
    %120 = arith.mulf %117, %119 : vector<64x8xf32>
    %121 = arith.truncf %120 : vector<64x8xf32> to vector<64x8xbf16>
    %c0_95 = arith.constant 0 : index
    %c24 = arith.constant 24 : index
    %122 = vector.load %arg16[%c0_95, %c24] : memref<64x32xbf16, #tpu.memory_space<vmem>>, vector<64x8xbf16>
    tpu.vector_store %arg16[%c0_95, %c24], %121 {strides = array<i32>} : memref<64x32xbf16, #tpu.memory_space<vmem>>, vector<64x8xbf16>,
    %c0_96 = arith.constant 0 : index
    %c0_97 = arith.constant 0 : index
    %123 = vector.load %arg16[%c0_96, %c0_97] : memref<64x32xbf16, #tpu.memory_space<vmem>>, vector<64x32xbf16>
    %c0_98 = arith.constant 0 : index
    %c0_99 = arith.constant 0 : index
    %124 = vector.load %arg10[%c0_98, %c0_99] : memref<32x32xbf16, #tpu.memory_space<vmem>>, vector<32x32xbf16>
    %cst_100 = arith.constant dense<0.000000e+00> : vector<64x32xf32>
    %125 = tpu.matmul %123, %124, %cst_100 {dimension_numbers = #tpu.dot_dimension_numbers<[1], [0], [0], [1], [0, 0, 1, 1], [], []>} : vector<64x32xbf16>, vector<32x32xbf16>, vector<64x32xf32> -> vector<64x32xf32>
    %c0_101 = arith.constant 0 : index
    %c0_102 = arith.constant 0 : index
    %126 = vector.load %arg11[%c0_101, %c0_102] : memref<1x32xf32, #tpu.memory_space<vmem>>, vector<1x32xf32>
    %127 = vector.broadcast %126 : vector<1x32xf32> to vector<64x32xf32>
    %128 = arith.addf %125, %127 : vector<64x32xf32>
    %c0_103 = arith.constant 0 : index
    %c0_104 = arith.constant 0 : index
    %c0_105 = arith.constant 0 : index
    %129 = vector.load %arg12[%c0_103, %c0_104, %c0_105] : memref<1x64x32xf32, #tpu.memory_space<vmem>>, vector<1x64x32xf32>
    %130 = vector.shape_cast %129 : vector<1x64x32xf32> to vector<64x32xf32>
    %131 = vector.shape_cast %128 : vector<64x32xf32> to vector<1x64x32xf32>
    tpu.vector_store %arg12[%c0_103, %c0_104, %c0_105], %131 {strides = array<i32>} : memref<1x64x32xf32, #tpu.memory_space<vmem>>, vector<1x64x32xf32>,
    return
  }
  func.func @transform_0(%arg0: i32, %arg1: i32) -> (i32, i32, i32) {
    %c0_i32 = arith.constant 0 : i32
    %c0_i32_0 = arith.constant 0 : i32
    %c0_i32_1 = arith.constant 0 : i32
    return %arg0, %c0_i32, %c0_i32_0 : i32, i32, i32
  }
  func.func @transform_1(%arg0: i32, %arg1: i32) -> (i32, i32) {
    %c0_i32 = arith.constant 0 : i32
    %c0_i32_0 = arith.constant 0 : i32
    %c0_i32_1 = arith.constant 0 : i32
    return %c0_i32, %c0_i32_0 : i32, i32
  }
  func.func @transform_2(%arg0: i32, %arg1: i32) -> (i32, i32) {
    %c0_i32 = arith.constant 0 : i32
    %c0_i32_0 = arith.constant 0 : i32
    %c0_i32_1 = arith.constant 0 : i32
    return %c0_i32, %c0_i32_0 : i32, i32
  }
  func.func @transform_3(%arg0: i32, %arg1: i32) -> (i32, i32) {
    %c0_i32 = arith.constant 0 : i32
    %c0_i32_0 = arith.constant 0 : i32
    %c0_i32_1 = arith.constant 0 : i32
    return %c0_i32, %c0_i32_0 : i32, i32
  }
  func.func @transform_4(%arg0: i32, %arg1: i32) -> (i32, i32) {
    %c0_i32 = arith.constant 0 : i32
    %c0_i32_0 = arith.constant 0 : i32
    %c0_i32_1 = arith.constant 0 : i32
    return %c0_i32, %c0_i32_0 : i32, i32
  }
  func.func @transform_5(%arg0: i32, %arg1: i32) -> (i32, i32) {
    %c0_i32 = arith.constant 0 : i32
    %c0_i32_0 = arith.constant 0 : i32
    %c0_i32_1 = arith.constant 0 : i32
    return %c0_i32, %c0_i32_0 : i32, i32
  }
  func.func @transform_6(%arg0: i32, %arg1: i32) -> (i32, i32) {
    %c0_i32 = arith.constant 0 : i32
    %c0_i32_0 = arith.constant 0 : i32
    %c0_i32_1 = arith.constant 0 : i32
    return %c0_i32, %c0_i32_0 : i32, i32
  }
  func.func @transform_7(%arg0: i32, %arg1: i32) -> (i32, i32) {
    %c0_i32 = arith.constant 0 : i32
    %c0_i32_0 = arith.constant 0 : i32
    %c0_i32_1 = arith.constant 0 : i32
    return %c0_i32, %c0_i32_0 : i32, i32
  }
  func.func @transform_8(%arg0: i32, %arg1: i32) -> (i32, i32) {
    %c0_i32 = arith.constant 0 : i32
    %c0_i32_0 = arith.constant 0 : i32
    %c0_i32_1 = arith.constant 0 : i32
    return %c0_i32, %c0_i32_0 : i32, i32
  }
  func.func @transform_9(%arg0: i32, %arg1: i32) -> (i32, i32) {
    %c0_i32 = arith.constant 0 : i32
    %c0_i32_0 = arith.constant 0 : i32
    %c0_i32_1 = arith.constant 0 : i32
    return %c0_i32, %c0_i32_0 : i32, i32
  }
  func.func @transform_10(%arg0: i32, %arg1: i32) -> (i32, i32, i32) {
    %c0_i32 = arith.constant 0 : i32
    %c0_i32_0 = arith.constant 0 : i32
    return %arg0, %arg1, %c0_i32 : i32, i32, i32
  }
}

</mosaic_0001>

<llo_original>
// kernel: tpu_custom_call.1
$region0: #{tpu_custom_call.1}
  #allocation0 [shape = 'u32[]', space=smem, size = 0x4, offset = 0x4, fixed_abs, tag = 'smem constant byte address 0x4 - core index']
  #allocation1 [shape = 'u32[144,128]{1,0:T(1,128)}', space=vmem, size = 0x12000, scoped, tag = 'internal scratch']
  #allocation2 [shape = 'bf16[64,32]{1,0:T(8,128)(2,1)}', space=vmem, size = 0x4000, scoped, tag = 'scratch operand']
  #allocation3 [shape = 'bf16[4,64,8]{2,1,0:T(8,128)(2,1)}', space=vmem, size = 0x10000, scoped, tag = 'scratch operand']
  #allocation4 [shape = 'bf16[4,64,8]{2,1,0:T(8,128)(2,1)}', space=vmem, size = 0x10000, scoped, tag = 'scratch operand']
  #allocation5 [shape = 'bf16[64,32]{1,0:T(8,128)(2,1)}', space=vmem, size = 0x4000, scoped, tag = 'scratch operand']
  #allocation6 [shape = 'f32[64,64]{1,0:T(8,128)}', space=vmem, size = 0x8000, scoped, tag = 'scratch operand']
  #allocation7 [shape = 'bf16[64,64]{1,0:T(8,128)(2,1)}', space=vmem, size = 0x4000, scoped, tag = 'scratch operand']
  %s0 = inlined_call_operand.vmem [shape: bf16[2,64,32], index: 0, kind: input, shape index: {}]
  %s1 = inlined_call_operand.vmem [shape: bf16[64,32], index: 1, kind: input, shape index: {}]
  %s2 = inlined_call_operand.vmem [shape: bf16[32,32], index: 2, kind: input, shape index: {}]
  %s3 = inlined_call_operand.vmem [shape: f32[1,32], index: 3, kind: input, shape index: {}]
  %s4 = inlined_call_operand.vmem [shape: bf16[32,32], index: 4, kind: input, shape index: {}]
  %s5 = inlined_call_operand.vmem [shape: f32[1,32], index: 5, kind: input, shape index: {}]
  %s6 = inlined_call_operand.vmem [shape: bf16[32,32], index: 6, kind: input, shape index: {}]
  %s7 = inlined_call_operand.vmem [shape: f32[1,32], index: 7, kind: input, shape index: {}]
  %s8 = inlined_call_operand.vmem [shape: bf16[32,32], index: 8, kind: input, shape index: {}]
  %s9 = inlined_call_operand.vmem [shape: f32[1,32], index: 9, kind: input, shape index: {}]
  %s10 = inlined_call_operand.vmem [shape: f32[2,64,32], index: 10, kind: output, shape index: {}]
  %s11 = sld [smem:[#allocation0]]
  $region77: #{tpu_custom_call.1} parent=0
    _
  %s13 = ssub.s32 1, %s11
  %s14 = scalar_select 0, %s13, %s11
  loop: start=0, step=1, limit=4
  $region2: #{tpu_custom_call.1} parent=0 // loop_pre_header
    _
  $region3: #{tpu_custom_call.1} parent=0 // loop_header
    %s16 = sphi 0, %s20
    %p17 = scmp.ge.s32.totalorder %s16, 4
    %s23 = sphi 0, %s35
    %s24 = sphi 0, %s31
    %s25 = sphi 0, %s23
    %s26 = sphi 0, %s24
    %s27 = sphi 0, %s25
    %s28 = sphi 0, %s26
    %s38 = sphi 0, %s40
    %s41 = sphi 0, %s38
    %s42 = sphi 0, %s41
    %s58 = sphi 0, %s42
    %s62 = sphi 0, %s62
    %s64 = sphi 0, %s62
    %s65 = sphi 0, %s64
    %s79 = sphi 0, %s65
    %s83 = sphi 0, %s83
    %s85 = sphi 0, %s83
    %s86 = sphi 0, %s85
    %s100 = sphi 0, %s86
    %s104 = sphi 0, %s104
    %s106 = sphi 0, %s104
    %s107 = sphi 0, %s106
    %s121 = sphi 0, %s107
    %s125 = sphi 0, %s125
    %s127 = sphi 0, %s125
    %s128 = sphi 0, %s127
    %s142 = sphi 0, %s128
    %s146 = sphi 0, %s146
    %s148 = sphi 0, %s146
    %s149 = sphi 0, %s148
    %s163 = sphi 0, %s149
    %s167 = sphi 0, %s167
    %s169 = sphi 0, %s167
    %s170 = sphi 0, %s169
    %s184 = sphi 0, %s170
    %s188 = sphi 0, %s188
    %s190 = sphi 0, %s188
    %s191 = sphi 0, %s190
    %s205 = sphi 0, %s191
    %s209 = sphi 0, %s209
    %s211 = sphi 0, %s209
    %s212 = sphi 0, %s211
    %s226 = sphi 0, %s212
    %s230 = sphi 0, %s230
    %s232 = sphi 0, %s230
    %s233 = sphi 0, %s232
    %s247 = sphi 0, %s233
    %s255 = sphi 0, %s257
    %s258 = sphi 0, %s255
    %s259 = sphi 0, %s258
    %s275 = sphi 0, %s259
  $region4: #{tpu_custom_call.1} parent=0 // loop_header_branch
    %19 = sbr.rel (%p17) target = $region8
  $region5: #{tpu_custom_call.1} parent=0 // loop_body
    %s21 = ssub.s32 %s16, 1
    %s22 = ssub.s32 %s16, 2
    %s29 = sadd.s32 1, %s24
    %p30 = scmp.ge.s32.totalorder %s29, 1
    %s31 = scalar_select %p30, 0, %s29
    %s32 = sadd.s32 1, %s23
    %s33 = scalar_select %p30, %s32, %s23
    %p34 = scmp.ge.s32.totalorder %s33, 2
    %s35 = scalar_select %p34, 0, %s33
    %s36 = ssub.s32 %s23, %s35
    %p37 = scmp.eq.s32.totalorder %s36, 0
    %s39 = sadd.s32 %s38, 1
    %s40 = scalar_select %p37, %s38, %s39
    %p43 = pneg %p37
    %p44 = scmp.eq.s32.totalorder %s16, 1
    %p45 = por %p43, %p44
    %p46 = scmp.ne.s32.totalorder %s38, %s41
    %p47 = scmp.eq.s32.totalorder %s16, 0
    %p48 = por %p46, %p47
    %p49 = scmp.ne.s32.totalorder %s38, %s41
    %p50 = scmp.eq.s32.totalorder %s21, 1
    %p51 = por %p49, %p50
    %p52 = scmp.ne.s32.totalorder %s41, %s42
    %p53 = scmp.eq.s32.totalorder %s21, 0
    %p54 = por %p52, %p53
    %p55 = scmp.ne.s32.totalorder %s41, %s42
    %p56 = scmp.eq.s32.totalorder %s22, 1
    %p57 = por %p55, %p56
    %p59 = scmp.ne.s32.totalorder %s42, %s58
    %p60 = scmp.eq.s32.totalorder %s22, 0
    %p61 = por %p59, %p60
    %s63 = sadd.s32 %s62, 1
    %p66 = scmp.eq.s32.totalorder %s16, 1
    %p67 = scmp.ne.s32.totalorder %s62, %s64
    %p68 = scmp.eq.s32.totalorder %s16, 0
    %p69 = por %p67, %p68
    %p70 = scmp.ne.s32.totalorder %s62, %s64
    %p71 = scmp.eq.s32.totalorder %s21, 1
    %p72 = por %p70, %p71
    %p73 = scmp.ne.s32.totalorder %s64, %s65
    %p74 = scmp.eq.s32.totalorder %s21, 0
    %p75 = por %p73, %p74
    %p76 = scmp.ne.s32.totalorder %s64, %s65
    %p77 = scmp.eq.s32.totalorder %s22, 1
    %p78 = por %p76, %p77
    %p80 = scmp.ne.s32.totalorder %s65, %s79
    %p81 = scmp.eq.s32.totalorder %s22, 0
    %p82 = por %p80, %p81
    %s84 = sadd.s32 %s83, 1
    %p87 = scmp.eq.s32.totalorder %s16, 1
    %p88 = scmp.ne.s32.totalorder %s83, %s85
    %p89 = scmp.eq.s32.totalorder %s16, 0
    %p90 = por %p88, %p89
    %p91 = scmp.ne.s32.totalorder %s83, %s85
    %p92 = scmp.eq.s32.totalorder %s21, 1
    %p93 = por %p91, %p92
    %p94 = scmp.ne.s32.totalorder %s85, %s86
    %p95 = scmp.eq.s32.totalorder %s21, 0
    %p96 = por %p94, %p95
    %p97 = scmp.ne.s32.totalorder %s85, %s86
    %p98 = scmp.eq.s32.totalorder %s22, 1
    %p99 = por %p97, %p98
    %p101 = scmp.ne.s32.totalorder %s86, %s100
    %p102 = scmp.eq.s32.totalorder %s22, 0
    %p103 = por %p101, %p102
    %s105 = sadd.s32 %s104, 1
    %p108 = scmp.eq.s32.totalorder %s16, 1
    %p109 = scmp.ne.s32.totalorder %s104, %s106
    %p110 = scmp.eq.s32.totalorder %s16, 0
    %p111 = por %p109, %p110
    %p112 = scmp.ne.s32.totalorder %s104, %s106
    %p113 = scmp.eq.s32.totalorder %s21, 1
    %p114 = por %p112, %p113
    %p115 = scmp.ne.s32.totalorder %s106, %s107
    %p116 = scmp.eq.s32.totalorder %s21, 0
    %p117 = por %p115, %p116
    %p118 = scmp.ne.s32.totalorder %s106, %s107
    %p119 = scmp.eq.s32.totalorder %s22, 1
    %p120 = por %p118, %p119
    %p122 = scmp.ne.s32.totalorder %s107, %s121
    %p123 = scmp.eq.s32.totalorder %s22, 0
    %p124 = por %p122, %p123
    %s126 = sadd.s32 %s125, 1
    %p129 = scmp.eq.s32.totalorder %s16, 1
    %p130 = scmp.ne.s32.totalorder %s125, %s127
    %p131 = scmp.eq.s32.totalorder %s16, 0
    %p132 = por %p130, %p131
    %p133 = scmp.ne.s32.totalorder %s125, %s127
    %p134 = scmp.eq.s32.totalorder %s21, 1
    %p135 = por %p133, %p134
    %p136 = scmp.ne.s32.totalorder %s127, %s128
    %p137 = scmp.eq.s32.totalorder %s21, 0
    %p138 = por %p136, %p137
    %p139 = scmp.ne.s32.totalorder %s127, %s128
    %p140 = scmp.eq.s32.totalorder %s22, 1
    %p141 = por %p139, %p140
    %p143 = scmp.ne.s32.totalorder %s128, %s142
    %p144 = scmp.eq.s32.totalorder %s22, 0
    %p145 = por %p143, %p144
    %s147 = sadd.s32 %s146, 1
    %p150 = scmp.eq.s32.totalorder %s16, 1
    %p151 = scmp.ne.s32.totalorder %s146, %s148
    %p152 = scmp.eq.s32.totalorder %s16, 0
    %p153 = por %p151, %p152
    %p154 = scmp.ne.s32.totalorder %s146, %s148
    %p155 = scmp.eq.s32.totalorder %s21, 1
    %p156 = por %p154, %p155
    %p157 = scmp.ne.s32.totalorder %s148, %s149
    %p158 = scmp.eq.s32.totalorder %s21, 0
    %p159 = por %p157, %p158
    %p160 = scmp.ne.s32.totalorder %s148, %s149
    %p161 = scmp.eq.s32.totalorder %s22, 1
    %p162 = por %p160, %p161
    %p164 = scmp.ne.s32.totalorder %s149, %s163
    %p165 = scmp.eq.s32.totalorder %s22, 0
    %p166 = por %p164, %p165
    %s168 = sadd.s32 %s167, 1
    %p171 = scmp.eq.s32.totalorder %s16, 1
    %p172 = scmp.ne.s32.totalorder %s167, %s169
    %p173 = scmp.eq.s32.totalorder %s16, 0
    %p174 = por %p172, %p173
    %p175 = scmp.ne.s32.totalorder %s167, %s169
    %p176 = scmp.eq.s32.totalorder %s21, 1
    %p177 = por %p175, %p176
    %p178 = scmp.ne.s32.totalorder %s169, %s170
    %p179 = scmp.eq.s32.totalorder %s21, 0
    %p180 = por %p178, %p179
    %p181 = scmp.ne.s32.totalorder %s169, %s170
    %p182 = scmp.eq.s32.totalorder %s22, 1
    %p183 = por %p181, %p182
    %p185 = scmp.ne.s32.totalorder %s170, %s184
    %p186 = scmp.eq.s32.totalorder %s22, 0
    %p187 = por %p185, %p186
    %s189 = sadd.s32 %s188, 1
    %p192 = scmp.eq.s32.totalorder %s16, 1
    %p193 = scmp.ne.s32.totalorder %s188, %s190
    %p194 = scmp.eq.s32.totalorder %s16, 0
    %p195 = por %p193, %p194
    %p196 = scmp.ne.s32.totalorder %s188, %s190
    %p197 = scmp.eq.s32.totalorder %s21, 1
    %p198 = por %p196, %p197
    %p199 = scmp.ne.s32.totalorder %s190, %s191
    %p200 = scmp.eq.s32.totalorder %s21, 0
    %p201 = por %p199, %p200
    %p202 = scmp.ne.s32.totalorder %s190, %s191
    %p203 = scmp.eq.s32.totalorder %s22, 1
    %p204 = por %p202, %p203
    %p206 = scmp.ne.s32.totalorder %s191, %s205
    %p207 = scmp.eq.s32.totalorder %s22, 0
    %p208 = por %p206, %p207
    %s210 = sadd.s32 %s209, 1
    %p213 = scmp.eq.s32.totalorder %s16, 1
    %p214 = scmp.ne.s32.totalorder %s209, %s211
    %p215 = scmp.eq.s32.totalorder %s16, 0
    %p216 = por %p214, %p215
    %p217 = scmp.ne.s32.totalorder %s209, %s211
    %p218 = scmp.eq.s32.totalorder %s21, 1
    %p219 = por %p217, %p218
    %p220 = scmp.ne.s32.totalorder %s211, %s212
    %p221 = scmp.eq.s32.totalorder %s21, 0
    %p222 = por %p220, %p221
    %p223 = scmp.ne.s32.totalorder %s211, %s212
    %p224 = scmp.eq.s32.totalorder %s22, 1
    %p225 = por %p223, %p224
    %p227 = scmp.ne.s32.totalorder %s212, %s226
    %p228 = scmp.eq.s32.totalorder %s22, 0
    %p229 = por %p227, %p228
    %s231 = sadd.s32 %s230, 1
    %p234 = scmp.eq.s32.totalorder %s16, 1
    %p235 = scmp.ne.s32.totalorder %s230, %s232
    %p236 = scmp.eq.s32.totalorder %s16, 0
    %p237 = por %p235, %p236
    %p238 = scmp.ne.s32.totalorder %s230, %s232
    %p239 = scmp.eq.s32.totalorder %s21, 1
    %p240 = por %p238, %p239
    %p241 = scmp.ne.s32.totalorder %s232, %s233
    %p242 = scmp.eq.s32.totalorder %s21, 0
    %p243 = por %p241, %p242
    %p244 = scmp.ne.s32.totalorder %s232, %s233
    %p245 = scmp.eq.s32.totalorder %s22, 1
    %p246 = por %p244, %p245
    %p248 = scmp.ne.s32.totalorder %s233, %s247
    %p249 = scmp.eq.s32.totalorder %s22, 0
    %p250 = por %p248, %p249
    %s251 = ssub.s32 %s23, %s35
    %s252 = ssub.s32 %s24, %s31
    %s253 = sor.u32 %s251, %s252
    %p254 = scmp.eq.s32.totalorder %s253, 0
    %s256 = sadd.s32 %s255, 1
    %s257 = scalar_select %p254, %s255, %s256
    %p260 = pneg %p254
    %p261 = scmp.eq.s32.totalorder %s16, 1
    %p262 = por %p260, %p261
    %p263 = scmp.ne.s32.totalorder %s255, %s258
    %p264 = scmp.eq.s32.totalorder %s16, 0
    %p265 = por %p263, %p264
    %p266 = scmp.ne.s32.totalorder %s255, %s258
    %p267 = scmp.eq.s32.totalorder %s21, 1
    %p268 = por %p266, %p267
    %p269 = scmp.ne.s32.totalorder %s258, %s259
    %p270 = scmp.eq.s32.totalorder %s21, 0
    %p271 = por %p269, %p270
    %p272 = scmp.ne.s32.totalorder %s258, %s259
    %p273 = scmp.eq.s32.totalorder %s22, 1
    %p274 = por %p272, %p273
    %p276 = scmp.ne.s32.totalorder %s259, %s275
    %p277 = scmp.eq.s32.totalorder %s22, 0
    %p278 = por %p276, %p277
    %p279 = scmp.le.s32.totalorder 1, %s16
    %p280 = scmp.lt.s32.totalorder %s16, 3
    %p281 = pnand %p279, %p280
    %p282 = pneg %p281
    // Predicated region
    $region9: #{tpu_custom_call.1} parent=5 // pred_check
      _
    $region10: #{tpu_custom_call.1} parent=5 // pred_check_branch
      %284 = sbr.rel (%p281) target = $region12
    $region11: #{tpu_custom_call.1} parent=5 // pred_region
      %s285 = ssub.s32 %s16, 1
      // Predicated region
      $region13: #{tpu_custom_call.1} parent=11 // pred_check
        %p286 = pneg %p75
      $region14: #{tpu_custom_call.1} parent=11 // pred_check_branch
        %288 = sbr.rel (%p286) target = $region16
      $region15: #{tpu_custom_call.1} parent=11 // pred_region
        _
      $region16: #{tpu_custom_call.1} parent=11 // pred_fallthru
        _
      // Predicated region
      $region17: #{tpu_custom_call.1} parent=11 // pred_check
        %p289 = pneg %p96
      $region18: #{tpu_custom_call.1} parent=11 // pred_check_branch
        %291 = sbr.rel (%p289) target = $region20
      $region19: #{tpu_custom_call.1} parent=11 // pred_region
        _
      $region20: #{tpu_custom_call.1} parent=11 // pred_fallthru
        _
      // Predicated region
      $region21: #{tpu_custom_call.1} parent=11 // pred_check
        %p292 = pneg %p117
      $region22: #{tpu_custom_call.1} parent=11 // pred_check_branch
        %294 = sbr.rel (%p292) target = $region24
      $region23: #{tpu_custom_call.1} parent=11 // pred_region
        _
      $region24: #{tpu_custom_call.1} parent=11 // pred_fallthru
        _
      // Predicated region
      $region25: #{tpu_custom_call.1} parent=11 // pred_check
        %p295 = pneg %p138
      $region26: #{tpu_custom_call.1} parent=11 // pred_check_branch
        %297 = sbr.rel (%p295) target = $region28
      $region27: #{tpu_custom_call.1} parent=11 // pred_region
        _
      $region28: #{tpu_custom_call.1} parent=11 // pred_fallthru
        _
      // Predicated region
      $region29: #{tpu_custom_call.1} parent=11 // pred_check
        %p298 = pneg %p159
      $region30: #{tpu_custom_call.1} parent=11 // pred_check_branch
        %300 = sbr.rel (%p298) target = $region32
      $region31: #{tpu_custom_call.1} parent=11 // pred_region
        _
      $region32: #{tpu_custom_call.1} parent=11 // pred_fallthru
        _
      // Predicated region
      $region33: #{tpu_custom_call.1} parent=11 // pred_check
        %p301 = pneg %p180
      $region34: #{tpu_custom_call.1} parent=11 // pred_check_branch
        %303 = sbr.rel (%p301) target = $region36
      $region35: #{tpu_custom_call.1} parent=11 // pred_region
        _
      $region36: #{tpu_custom_call.1} parent=11 // pred_fallthru
        _
      // Predicated region
      $region37: #{tpu_custom_call.1} parent=11 // pred_check
        %p304 = pneg %p201
      $region38: #{tpu_custom_call.1} parent=11 // pred_check_branch
        %306 = sbr.rel (%p304) target = $region40
      $region39: #{tpu_custom_call.1} parent=11 // pred_region
        _
      $region40: #{tpu_custom_call.1} parent=11 // pred_fallthru
        _
      // Predicated region
      $region41: #{tpu_custom_call.1} parent=11 // pred_check
        %p307 = pneg %p222
      $region42: #{tpu_custom_call.1} parent=11 // pred_check_branch
        %309 = sbr.rel (%p307) target = $region44
      $region43: #{tpu_custom_call.1} parent=11 // pred_region
        _
      $region44: #{tpu_custom_call.1} parent=11 // pred_fallthru
        _
      // Predicated region
      $region45: #{tpu_custom_call.1} parent=11 // pred_check
        %p310 = pneg %p243
      $region46: #{tpu_custom_call.1} parent=11 // pred_check_branch
        %312 = sbr.rel (%p310) target = $region48
      $region47: #{tpu_custom_call.1} parent=11 // pred_region
        _
      $region48: #{tpu_custom_call.1} parent=11 // pred_fallthru
        _
    $region12: #{tpu_custom_call.1} parent=5 // pred_fallthru
      _
    %p313 = scmp.lt.s32.totalorder %s16, 2
    // Predicated region
    $region49: #{tpu_custom_call.1} parent=5 // pred_check
      %p314 = pneg %p313
    $region50: #{tpu_custom_call.1} parent=5 // pred_check_branch
      %316 = sbr.rel (%p314) target = $region52
    $region51: #{tpu_custom_call.1} parent=5 // pred_region
      // Predicated region
      $region53: #{tpu_custom_call.1} parent=51 // pred_check
        %p317 = pneg %p48
      $region54: #{tpu_custom_call.1} parent=51 // pred_check_branch
        %319 = sbr.rel (%p317) target = $region56
      $region55: #{tpu_custom_call.1} parent=51 // pred_region
        %p320 = scmp.lt.s32.totalorder %s23, 1
        %s321 = scalar_select %p320, %s23, 1
        %s322 = smul.addr %s321, 8
        %s323 = smul.addr %s322, 4
        %s324 = scalar_lea.vmem %s0, %s323
      $region56: #{tpu_custom_call.1} parent=51 // pred_fallthru
        _
    $region52: #{tpu_custom_call.1} parent=5 // pred_fallthru
      _
    %p325 = scmp.le.s32.totalorder 1, %s16
    %p326 = scmp.lt.s32.totalorder %s16, 3
    %p327 = pnand %p325, %p326
    %p328 = pneg %p327
    // Predicated region
    $region57: #{tpu_custom_call.1} parent=5 // pred_check
      _
    $region58: #{tpu_custom_call.1} parent=5 // pred_check_branch
      %330 = sbr.rel (%p327) target = $region60
    $region59: #{tpu_custom_call.1} parent=5 // pred_region
      %s331 = ssub.s32 %s16, 1
      %p332 = scmp.lt.s32.totalorder %s25, 1
      %s333 = scalar_select %p332, %s25, 1
      %s334 = smul.addr %s333, 8
      %s335 = smul.addr %s334, 4
      %s336 = scalar_lea.vmem %s0, %s335
      %p337 = pneg %p54
      %p338 = pneg %p51
      %p339 = pneg %p75
      %p340 = pneg %p72
      %p341 = pneg %p96
      %p342 = pneg %p93
      %p343 = pneg %p117
      %p344 = pneg %p114
      %p345 = pneg %p138
      %p346 = pneg %p135
      %p347 = pneg %p159
      %p348 = pneg %p156
      %p349 = pneg %p180
      %p350 = pneg %p177
      %p351 = pneg %p201
      %p352 = pneg %p198
      %p353 = pneg %p222
      %p354 = pneg %p219
      %p355 = pneg %p243
      %p356 = pneg %p240
      %p357 = pneg %p271
      %p358 = pneg %p268
      %s359 = smul.u32 8, %s26
      %p360 = scmp.lt.s32.totalorder %s25, 1
      %s361 = scalar_select %p360, %s25, 1
      %p362 = scmp.lt.s32.totalorder %s359, 7
      %s363 = scalar_select %p362, %s359, 7
      %s364 = smul.addr %s361, 8
      %s365 = sadd.s32 %s363, %s364
      %s366 = smul.addr %s365, 8
      %s367 = scalar_lea.vmem %s10, %s366
      %p368 = scmp.lt.s32.totalorder %s25, 1
      %s369 = scalar_select %p368, %s25, 1
      %s370 = smul.addr %s369, 8
      %s371 = smul.addr %s370, 4
      %s372 = scalar_lea.vmem %s0, %s371
      %s373 = smul.u32 8, %s26
      %p374 = scmp.lt.s32.totalorder %s25, 1
      %s375 = scalar_select %p374, %s25, 1
      %p376 = scmp.lt.s32.totalorder %s373, 7
      %s377 = scalar_select %p376, %s373, 7
      %s378 = smul.addr %s375, 8
      %s379 = sadd.s32 %s377, %s378
      %s380 = smul.addr %s379, 8
      %s381 = scalar_lea.vmem %s10, %s380
      %s382 = smul.u32 8, %s26
      %p384 = scmp.eq.s32.totalorder %s26, 0
      // Predicated region
      $region61: #{tpu_custom_call.1} parent=59 // pred_check
        %p385 = pneg %p384
      $region62: #{tpu_custom_call.1} parent=59 // pred_check_branch
        %387 = sbr.rel (%p385) target = $region64
      $region63: #{tpu_custom_call.1} parent=59 // pred_region
        %v388 = vld [vmem:[%s372] sm:$0xf]
        %v389 = vld [vmem:[%s372 + $0x4] sm:$0xf]
        %v390 = vld [vmem:[%s372 + $0x8] sm:$0xf]
        %v391 = vld [vmem:[%s372 + $0xc] sm:$0xf]
        %v392 = vld [vmem:[%s372 + $0x10] sm:$0xf]
        %v393 = vld [vmem:[%s372 + $0x14] sm:$0xf]
        %v394 = vld [vmem:[%s372 + $0x18] sm:$0xf]
        %v395 = vld [vmem:[%s372 + $0x1c] sm:$0xf]
        %v396 = vld [vmem:[%s1] sm:$0xf]
        %v397 = vld [vmem:[%s1 + $0x4] sm:$0xf]
        %v398 = vld [vmem:[%s1 + $0x8] sm:$0xf]
        %v399 = vld [vmem:[%s1 + $0xc] sm:$0xf]
        %v400 = vld [vmem:[%s1 + $0x10] sm:$0xf]
        %v401 = vld [vmem:[%s1 + $0x14] sm:$0xf]
        %v402 = vld [vmem:[%s1 + $0x18] sm:$0xf]
        %v403 = vld [vmem:[%s1 + $0x1c] sm:$0xf]
        %v404 = vadd.bf16 %v388, %v396
        %v405 = vadd.bf16 %v389, %v397
        %v406 = vadd.bf16 %v390, %v398
        %v407 = vadd.bf16 %v391, %v399
        %v408 = vadd.bf16 %v392, %v400
        %v409 = vadd.bf16 %v393, %v401
        %v410 = vadd.bf16 %v394, %v402
        %v411 = vadd.bf16 %v395, %v403
        %vm412 = vcmask 257024
        %413 = vst.msk [vmem:[#allocation2] sm:$0xf] %vm412, %v404
        %414 = vst.msk [vmem:[#allocation2 + $0x4] sm:$0xf] %vm412, %v405
        %415 = vst.msk [vmem:[#allocation2 + $0x8] sm:$0xf] %vm412, %v406
        %416 = vst.msk [vmem:[#allocation2 + $0xc] sm:$0xf] %vm412, %v407
        %417 = vst.msk [vmem:[#allocation2 + $0x10] sm:$0xf] %vm412, %v408
        %418 = vst.msk [vmem:[#allocation2 + $0x14] sm:$0xf] %vm412, %v409
        %419 = vst.msk [vmem:[#allocation2 + $0x18] sm:$0xf] %vm412, %v410
        %420 = vst.msk [vmem:[#allocation2 + $0x1c] sm:$0xf] %vm412, %v411
        %v421 = vld [vmem:[%s4] sm:$0xf]
        %v422 = vld [vmem:[%s4 + $0x4] sm:$0xf]
        %v423 = vld [vmem:[%s4 + $0x8] sm:$0xf]
        %v424 = vld [vmem:[%s4 + $0xc] sm:$0xf]
        %v425 = vld [vmem:[%s5] sm:$0x1]
        %v427 = vlaneseq
        %v428 = vshrl.u32 %v427, 7
        %v429 = vsub.s32 0, %v428
        %v430 = vrot.slane %v425, %v429
        %v440 = vunpack.c.l.b16 %v404
        %v441 = vunpack.c.l.b16 %v405
        %v442 = vunpack.c.l.b16 %v406
        %v443 = vunpack.c.l.b16 %v407
        %v444 = vunpack.c.l.b16 %v408
        %v445 = vunpack.c.l.b16 %v409
        %v446 = vunpack.c.l.b16 %v410
        %v447 = vunpack.c.l.b16 %v411
        %v448 = vpack.c.b16 %v441, %v440
        %v449 = vpack.c.b16 %v443, %v442
        %v450 = vpack.c.b16 %v445, %v444
        %v451 = vpack.c.b16 %v447, %v446
        %v456 = vunpack.c.l.b16 %v421
        %v457 = vunpack.c.l.b16 %v422
        %v458 = vunpack.c.l.b16 %v423
        %v459 = vunpack.c.l.b16 %v424
        %v460 = vpack.c.b16 %v457, %v456
        %v461 = vpack.c.b16 %v459, %v458
        %vm464 = vcmask 261120
        %v466 = vsel %vm464, %v448, 0
        %v469 = vsel %vm464, %v449, 0
        %v472 = vsel %vm464, %v450, 0
        %v475 = vsel %vm464, %v451, 0
        %477 = vmatprep.subr.bf16.mxu0 0
        %478 = vmatpush1.bf16.msra.mxu0 0
        %479 = vmatprep.subr.bf16.mxu0 0
        %480 = vmatpush1.bf16.msra.mxu0 0
        %481 = vmatprep.subr.bf16.mxu0 0
        %482 = vmatpush1.bf16.msra.mxu0 0
        %483 = vmatprep.subr.bf16.mxu0 0
        %484 = vmatpush1.bf16.msra.mxu0 0
        %485 = vmatprep.subr.bf16.mxu0 0
        %486 = vmatpush1.bf16.msra.mxu0 0
        %487 = vmatprep.subr.bf16.mxu0 0
        %488 = vmatpush1.bf16.msra.mxu0 0
        %489 = vmatprep.subr.bf16.mxu0 0
        %490 = vmatpush1.bf16.msra.mxu0 %v461
        %491 = vmatprep.subr.bf16.mxu0 0
        %492 = vmatpush1.bf16.msra.mxu0 %v460
        %493 = vmatprep.subr.bf16.mxu0 0
        %494 = vmatpush2.bf16.msra.mxu0 0
        %495 = vmatprep.subr.bf16.mxu0 0
        %496 = vmatpush2.bf16.msra.mxu0 0
        %497 = vmatprep.subr.bf16.mxu0 0
        %498 = vmatpush2.bf16.msra.mxu0 0
        %499 = vmatprep.subr.bf16.mxu0 0
        %500 = vmatpush2.bf16.msra.mxu0 0
        %501 = vmatprep.subr.bf16.mxu0 0
        %502 = vmatpush2.bf16.msra.mxu0 0
        %503 = vmatprep.subr.bf16.mxu0 0
        %504 = vmatpush2.bf16.msra.mxu0 0
        %505 = vmatprep.subr.bf16.mxu0 0
        %506 = vmatpush2.bf16.msra.mxu0 0
        %507 = vmatprep.subr.bf16.mxu0 0
        %508 = vmatpush2.bf16.msra.mxu0 0
        %509 = vmatprep.mubr.bf16.mxu0 0
        %510 = vmatmul.mubr.bf16.gmra.mxu0 %v466
        %v511 = vpop.f32.mrf.mxu0
        %v512 = vadd.f32 %v430, %v511
        %v513 = vpop.f32.mrf.mxu0
        %v514 = vpop.f32.mrf.mxu0
        %v515 = vadd.f32 %v430, %v514
        %v516 = vpop.f32.mrf.mxu0
        %517 = vmatprep.mubr.bf16.mxu0 0
        %518 = vmatmul.mubr.bf16.gmra.mxu0 %v469
        %v519 = vpop.f32.mrf.mxu0
        %v520 = vadd.f32 %v430, %v519
        %v521 = vpop.f32.mrf.mxu0
        %v522 = vpop.f32.mrf.mxu0
        %v523 = vadd.f32 %v430, %v522
        %v524 = vpop.f32.mrf.mxu0
        %525 = vmatprep.mubr.bf16.mxu0 0
        %526 = vmatmul.mubr.bf16.gmra.mxu0 %v472
        %v527 = vpop.f32.mrf.mxu0
        %v528 = vadd.f32 %v430, %v527
        %v529 = vpop.f32.mrf.mxu0
        %v530 = vpop.f32.mrf.mxu0
        %v531 = vadd.f32 %v430, %v530
        %v532 = vpop.f32.mrf.mxu0
        %533 = vmatprep.mubr.bf16.mxu0 0
        %534 = vmatmul.mubr.bf16.gmra.mxu0 %v475
        %v535 = vpop.f32.mrf.mxu0
        %v536 = vadd.f32 %v430, %v535
        %v537 = vpop.f32.mrf.mxu0
        %v538 = vpop.f32.mrf.mxu0
        %v539 = vadd.f32 %v430, %v538
        %v540 = vpop.f32.mrf.mxu0
        %541 = vdwg.mxu0
        %v542 = vpack.c.bf16 %v515, %v512
        %v543 = vpack.c.bf16 %v523, %v520
        %v544 = vpack.c.bf16 %v531, %v528
        %v545 = vpack.c.bf16 %v539, %v536
        %v550 = vunpack.c.l.b16 %v542
        %v551 = vunpack.c.h.b16 %v542
        %v552 = vunpack.c.l.b16 %v543
        %v553 = vunpack.c.h.b16 %v543
        %v554 = vunpack.c.l.b16 %v544
        %v555 = vunpack.c.h.b16 %v544
        %v556 = vunpack.c.l.b16 %v545
        %v557 = vunpack.c.h.b16 %v545
        %v558 = vpack.c.b16 %v550, %v550
        %v559 = vpack.c.b16 %v551, %v551
        %v560 = vpack.c.b16 %v552, %v552
        %v561 = vpack.c.b16 %v553, %v553
        %v562 = vpack.c.b16 %v554, %v554
        %v563 = vpack.c.b16 %v555, %v555
        %v564 = vpack.c.b16 %v556, %v556
        %v565 = vpack.c.b16 %v557, %v557
        %vm574 = vcmask 60416
        %575 = vst.msk [vmem:[#allocation3] sm:$0xf] %vm574, %v558
        %576 = vst.msk [vmem:[#allocation3 + $0x4] sm:$0xf] %vm574, %v559
        %577 = vst.msk [vmem:[#allocation3 + $0x8] sm:$0xf] %vm574, %v560
        %578 = vst.msk [vmem:[#allocation3 + $0xc] sm:$0xf] %vm574, %v561
        %579 = vst.msk [vmem:[#allocation3 + $0x10] sm:$0xf] %vm574, %v562
        %580 = vst.msk [vmem:[#allocation3 + $0x14] sm:$0xf] %vm574, %v563
        %581 = vst.msk [vmem:[#allocation3 + $0x18] sm:$0xf] %vm574, %v564
        %582 = vst.msk [vmem:[#allocation3 + $0x1c] sm:$0xf] %vm574, %v565
        %583 = vrot.lane.b32.xlu0 %v558, 120
        %v584 = vpop.permute.xlu0 %583
        %585 = vrot.lane.b32.xlu0 %v559, 120
        %v586 = vpop.permute.xlu0 %585
        %587 = vrot.lane.b32.xlu0 %v560, 120
        %v588 = vpop.permute.xlu0 %587
        %589 = vrot.lane.b32.xlu0 %v561, 120
        %v590 = vpop.permute.xlu0 %589
        %591 = vrot.lane.b32.xlu0 %v562, 120
        %v592 = vpop.permute.xlu0 %591
        %593 = vrot.lane.b32.xlu0 %v563, 120
        %v594 = vpop.permute.xlu0 %593
        %595 = vrot.lane.b32.xlu0 %v564, 120
        %v596 = vpop.permute.xlu0 %595
        %597 = vrot.lane.b32.xlu0 %v565, 120
        %v598 = vpop.permute.xlu0 %597
        %s607 = scalar_lea.vmem [#allocation3], 32
        %608 = vst.msk [vmem:[%s607] sm:$0xf] %vm574, %v584
        %609 = vst.msk [vmem:[%s607 + $0x4] sm:$0xf] %vm574, %v586
        %610 = vst.msk [vmem:[%s607 + $0x8] sm:$0xf] %vm574, %v588
        %611 = vst.msk [vmem:[%s607 + $0xc] sm:$0xf] %vm574, %v590
        %612 = vst.msk [vmem:[%s607 + $0x10] sm:$0xf] %vm574, %v592
        %613 = vst.msk [vmem:[%s607 + $0x14] sm:$0xf] %vm574, %v594
        %614 = vst.msk [vmem:[%s607 + $0x18] sm:$0xf] %vm574, %v596
        %615 = vst.msk [vmem:[%s607 + $0x1c] sm:$0xf] %vm574, %v598
        %616 = vrot.lane.b32.xlu0 %v558, 112
        %v617 = vpop.permute.xlu0 %616
        %618 = vrot.lane.b32.xlu0 %v559, 112
        %v619 = vpop.permute.xlu0 %618
        %620 = vrot.lane.b32.xlu0 %v560, 112
        %v621 = vpop.permute.xlu0 %620
        %622 = vrot.lane.b32.xlu0 %v561, 112
        %v623 = vpop.permute.xlu0 %622
        %624 = vrot.lane.b32.xlu0 %v562, 112
        %v625 = vpop.permute.xlu0 %624
        %626 = vrot.lane.b32.xlu0 %v563, 112
        %v627 = vpop.permute.xlu0 %626
        %628 = vrot.lane.b32.xlu0 %v564, 112
        %v629 = vpop.permute.xlu0 %628
        %630 = vrot.lane.b32.xlu0 %v565, 112
        %v631 = vpop.permute.xlu0 %630
        %s640 = scalar_lea.vmem [#allocation3], 64
        %641 = vst.msk [vmem:[%s640] sm:$0xf] %vm574, %v617
        %642 = vst.msk [vmem:[%s640 + $0x4] sm:$0xf] %vm574, %v619
        %643 = vst.msk [vmem:[%s640 + $0x8] sm:$0xf] %vm574, %v621
        %644 = vst.msk [vmem:[%s640 + $0xc] sm:$0xf] %vm574, %v623
        %645 = vst.msk [vmem:[%s640 + $0x10] sm:$0xf] %vm574, %v625
        %646 = vst.msk [vmem:[%s640 + $0x14] sm:$0xf] %vm574, %v627
        %647 = vst.msk [vmem:[%s640 + $0x18] sm:$0xf] %vm574, %v629
        %648 = vst.msk [vmem:[%s640 + $0x1c] sm:$0xf] %vm574, %v631
        %649 = vrot.lane.b32.xlu0 %v558, 104
        %v650 = vpop.permute.xlu0 %649
        %651 = vrot.lane.b32.xlu0 %v559, 104
        %v652 = vpop.permute.xlu0 %651
        %653 = vrot.lane.b32.xlu0 %v560, 104
        %v654 = vpop.permute.xlu0 %653
        %655 = vrot.lane.b32.xlu0 %v561, 104
        %v656 = vpop.permute.xlu0 %655
        %657 = vrot.lane.b32.xlu0 %v562, 104
        %v658 = vpop.permute.xlu0 %657
        %659 = vrot.lane.b32.xlu0 %v563, 104
        %v660 = vpop.permute.xlu0 %659
        %661 = vrot.lane.b32.xlu0 %v564, 104
        %v662 = vpop.permute.xlu0 %661
        %663 = vrot.lane.b32.xlu0 %v565, 104
        %v664 = vpop.permute.xlu0 %663
        %s673 = scalar_lea.vmem [#allocation3], 96
        %674 = vst.msk [vmem:[%s673] sm:$0xf] %vm574, %v650
        %675 = vst.msk [vmem:[%s673 + $0x4] sm:$0xf] %vm574, %v652
        %676 = vst.msk [vmem:[%s673 + $0x8] sm:$0xf] %vm574, %v654
        %677 = vst.msk [vmem:[%s673 + $0xc] sm:$0xf] %vm574, %v656
        %678 = vst.msk [vmem:[%s673 + $0x10] sm:$0xf] %vm574, %v658
        %679 = vst.msk [vmem:[%s673 + $0x14] sm:$0xf] %vm574, %v660
        %680 = vst.msk [vmem:[%s673 + $0x18] sm:$0xf] %vm574, %v662
        %681 = vst.msk [vmem:[%s673 + $0x1c] sm:$0xf] %vm574, %v664
        %v682 = vld [vmem:[%s6] sm:$0xf]
        %v683 = vld [vmem:[%s6 + $0x4] sm:$0xf]
        %v684 = vld [vmem:[%s6 + $0x8] sm:$0xf]
        %v685 = vld [vmem:[%s6 + $0xc] sm:$0xf]
        %v686 = vld [vmem:[%s7] sm:$0x1]
        %v688 = vlaneseq
        %v689 = vshrl.u32 %v688, 7
        %v690 = vsub.s32 0, %v689
        %v691 = vrot.slane %v686, %v690
        %v697 = vunpack.c.l.b16 %v682
        %v698 = vunpack.c.l.b16 %v683
        %v699 = vunpack.c.l.b16 %v684
        %v700 = vunpack.c.l.b16 %v685
        %v701 = vpack.c.b16 %v698, %v697
        %v702 = vpack.c.b16 %v700, %v699
        %705 = vmatprep.subr.bf16.mxu0 0
        %706 = vmatpush1.bf16.msra.mxu0 0
        %707 = vmatprep.subr.bf16.mxu0 0
        %708 = vmatpush1.bf16.msra.mxu0 0
        %709 = vmatprep.subr.bf16.mxu0 0
        %710 = vmatpush1.bf16.msra.mxu0 0
        %711 = vmatprep.subr.bf16.mxu0 0
        %712 = vmatpush1.bf16.msra.mxu0 0
        %713 = vmatprep.subr.bf16.mxu0 0
        %714 = vmatpush1.bf16.msra.mxu0 0
        %715 = vmatprep.subr.bf16.mxu0 0
        %716 = vmatpush1.bf16.msra.mxu0 0
        %717 = vmatprep.subr.bf16.mxu0 0
        %718 = vmatpush1.bf16.msra.mxu0 %v702
        %719 = vmatprep.subr.bf16.mxu0 0
        %720 = vmatpush1.bf16.msra.mxu0 %v701
        %721 = vmatprep.subr.bf16.mxu0 0
        %722 = vmatpush2.bf16.msra.mxu0 0
        %723 = vmatprep.subr.bf16.mxu0 0
        %724 = vmatpush2.bf16.msra.mxu0 0
        %725 = vmatprep.subr.bf16.mxu0 0
        %726 = vmatpush2.bf16.msra.mxu0 0
        %727 = vmatprep.subr.bf16.mxu0 0
        %728 = vmatpush2.bf16.msra.mxu0 0
        %729 = vmatprep.subr.bf16.mxu0 0
        %730 = vmatpush2.bf16.msra.mxu0 0
        %731 = vmatprep.subr.bf16.mxu0 0
        %732 = vmatpush2.bf16.msra.mxu0 0
        %733 = vmatprep.subr.bf16.mxu0 0
        %734 = vmatpush2.bf16.msra.mxu0 0
        %735 = vmatprep.subr.bf16.mxu0 0
        %736 = vmatpush2.bf16.msra.mxu0 0
        %737 = vmatprep.mubr.bf16.mxu0 0
        %738 = vmatmul.mubr.bf16.gmra.mxu0 %v466
        %v739 = vpop.f32.mrf.mxu0
        %v740 = vadd.f32 %v691, %v739
        %v741 = vpop.f32.mrf.mxu0
        %v742 = vpop.f32.mrf.mxu0
        %v743 = vadd.f32 %v691, %v742
        %v744 = vpop.f32.mrf.mxu0
        %745 = vmatprep.mubr.bf16.mxu0 0
        %746 = vmatmul.mubr.bf16.gmra.mxu0 %v469
        %v747 = vpop.f32.mrf.mxu0
        %v748 = vadd.f32 %v691, %v747
        %v749 = vpop.f32.mrf.mxu0
        %v750 = vpop.f32.mrf.mxu0
        %v751 = vadd.f32 %v691, %v750
        %v752 = vpop.f32.mrf.mxu0
        %753 = vmatprep.mubr.bf16.mxu0 0
        %754 = vmatmul.mubr.bf16.gmra.mxu0 %v472
        %v755 = vpop.f32.mrf.mxu0
        %v756 = vadd.f32 %v691, %v755
        %v757 = vpop.f32.mrf.mxu0
        %v758 = vpop.f32.mrf.mxu0
        %v759 = vadd.f32 %v691, %v758
        %v760 = vpop.f32.mrf.mxu0
        %761 = vmatprep.mubr.bf16.mxu0 0
        %762 = vmatmul.mubr.bf16.gmra.mxu0 %v475
        %v763 = vpop.f32.mrf.mxu0
        %v764 = vadd.f32 %v691, %v763
        %v765 = vpop.f32.mrf.mxu0
        %v766 = vpop.f32.mrf.mxu0
        %v767 = vadd.f32 %v691, %v766
        %v768 = vpop.f32.mrf.mxu0
        %769 = vdwg.mxu0
        %v770 = vpack.c.bf16 %v743, %v740
        %v771 = vpack.c.bf16 %v751, %v748
        %v772 = vpack.c.bf16 %v759, %v756
        %v773 = vpack.c.bf16 %v767, %v764
        %v778 = vunpack.c.l.b16 %v770
        %v779 = vunpack.c.h.b16 %v770
        %v780 = vunpack.c.l.b16 %v771
        %v781 = vunpack.c.h.b16 %v771
        %v782 = vunpack.c.l.b16 %v772
        %v783 = vunpack.c.h.b16 %v772
        %v784 = vunpack.c.l.b16 %v773
        %v785 = vunpack.c.h.b16 %v773
        %v786 = vpack.c.b16 %v778, %v778
        %v787 = vpack.c.b16 %v779, %v779
        %v788 = vpack.c.b16 %v780, %v780
        %v789 = vpack.c.b16 %v781, %v781
        %v790 = vpack.c.b16 %v782, %v782
        %v791 = vpack.c.b16 %v783, %v783
        %v792 = vpack.c.b16 %v784, %v784
        %v793 = vpack.c.b16 %v785, %v785
        %802 = vst.msk [vmem:[#allocation4] sm:$0xf] %vm574, %v786
        %803 = vst.msk [vmem:[#allocation4 + $0x4] sm:$0xf] %vm574, %v787
        %804 = vst.msk [vmem:[#allocation4 + $0x8] sm:$0xf] %vm574, %v788
        %805 = vst.msk [vmem:[#allocation4 + $0xc] sm:$0xf] %vm574, %v789
        %806 = vst.msk [vmem:[#allocation4 + $0x10] sm:$0xf] %vm574, %v790
        %807 = vst.msk [vmem:[#allocation4 + $0x14] sm:$0xf] %vm574, %v791
        %808 = vst.msk [vmem:[#allocation4 + $0x18] sm:$0xf] %vm574, %v792
        %809 = vst.msk [vmem:[#allocation4 + $0x1c] sm:$0xf] %vm574, %v793
        %810 = vrot.lane.b32.xlu0 %v786, 120
        %v811 = vpop.permute.xlu0 %810
        %812 = vrot.lane.b32.xlu0 %v787, 120
        %v813 = vpop.permute.xlu0 %812
        %814 = vrot.lane.b32.xlu0 %v788, 120
        %v815 = vpop.permute.xlu0 %814
        %816 = vrot.lane.b32.xlu0 %v789, 120
        %v817 = vpop.permute.xlu0 %816
        %818 = vrot.lane.b32.xlu0 %v790, 120
        %v819 = vpop.permute.xlu0 %818
        %820 = vrot.lane.b32.xlu0 %v791, 120
        %v821 = vpop.permute.xlu0 %820
        %822 = vrot.lane.b32.xlu0 %v792, 120
        %v823 = vpop.permute.xlu0 %822
        %824 = vrot.lane.b32.xlu0 %v793, 120
        %v825 = vpop.permute.xlu0 %824
        %s834 = scalar_lea.vmem [#allocation4], 32
        %835 = vst.msk [vmem:[%s834] sm:$0xf] %vm574, %v811
        %836 = vst.msk [vmem:[%s834 + $0x4] sm:$0xf] %vm574, %v813
        %837 = vst.msk [vmem:[%s834 + $0x8] sm:$0xf] %vm574, %v815
        %838 = vst.msk [vmem:[%s834 + $0xc] sm:$0xf] %vm574, %v817
        %839 = vst.msk [vmem:[%s834 + $0x10] sm:$0xf] %vm574, %v819
        %840 = vst.msk [vmem:[%s834 + $0x14] sm:$0xf] %vm574, %v821
        %841 = vst.msk [vmem:[%s834 + $0x18] sm:$0xf] %vm574, %v823
        %842 = vst.msk [vmem:[%s834 + $0x1c] sm:$0xf] %vm574, %v825
        %843 = vrot.lane.b32.xlu0 %v786, 112
        %v844 = vpop.permute.xlu0 %843
        %845 = vrot.lane.b32.xlu0 %v787, 112
        %v846 = vpop.permute.xlu0 %845
        %847 = vrot.lane.b32.xlu0 %v788, 112
        %v848 = vpop.permute.xlu0 %847
        %849 = vrot.lane.b32.xlu0 %v789, 112
        %v850 = vpop.permute.xlu0 %849
        %851 = vrot.lane.b32.xlu0 %v790, 112
        %v852 = vpop.permute.xlu0 %851
        %853 = vrot.lane.b32.xlu0 %v791, 112
        %v854 = vpop.permute.xlu0 %853
        %855 = vrot.lane.b32.xlu0 %v792, 112
        %v856 = vpop.permute.xlu0 %855
        %857 = vrot.lane.b32.xlu0 %v793, 112
        %v858 = vpop.permute.xlu0 %857
        %s867 = scalar_lea.vmem [#allocation4], 64
        %868 = vst.msk [vmem:[%s867] sm:$0xf] %vm574, %v844
        %869 = vst.msk [vmem:[%s867 + $0x4] sm:$0xf] %vm574, %v846
        %870 = vst.msk [vmem:[%s867 + $0x8] sm:$0xf] %vm574, %v848
        %871 = vst.msk [vmem:[%s867 + $0xc] sm:$0xf] %vm574, %v850
        %872 = vst.msk [vmem:[%s867 + $0x10] sm:$0xf] %vm574, %v852
        %873 = vst.msk [vmem:[%s867 + $0x14] sm:$0xf] %vm574, %v854
        %874 = vst.msk [vmem:[%s867 + $0x18] sm:$0xf] %vm574, %v856
        %875 = vst.msk [vmem:[%s867 + $0x1c] sm:$0xf] %vm574, %v858
        %876 = vrot.lane.b32.xlu0 %v786, 104
        %v877 = vpop.permute.xlu0 %876
        %878 = vrot.lane.b32.xlu0 %v787, 104
        %v879 = vpop.permute.xlu0 %878
        %880 = vrot.lane.b32.xlu0 %v788, 104
        %v881 = vpop.permute.xlu0 %880
        %882 = vrot.lane.b32.xlu0 %v789, 104
        %v883 = vpop.permute.xlu0 %882
        %884 = vrot.lane.b32.xlu0 %v790, 104
        %v885 = vpop.permute.xlu0 %884
        %886 = vrot.lane.b32.xlu0 %v791, 104
        %v887 = vpop.permute.xlu0 %886
        %888 = vrot.lane.b32.xlu0 %v792, 104
        %v889 = vpop.permute.xlu0 %888
        %890 = vrot.lane.b32.xlu0 %v793, 104
        %v891 = vpop.permute.xlu0 %890
        %s900 = scalar_lea.vmem [#allocation4], 96
        %901 = vst.msk [vmem:[%s900] sm:$0xf] %vm574, %v877
        %902 = vst.msk [vmem:[%s900 + $0x4] sm:$0xf] %vm574, %v879
        %903 = vst.msk [vmem:[%s900 + $0x8] sm:$0xf] %vm574, %v881
        %904 = vst.msk [vmem:[%s900 + $0xc] sm:$0xf] %vm574, %v883
        %905 = vst.msk [vmem:[%s900 + $0x10] sm:$0xf] %vm574, %v885
        %906 = vst.msk [vmem:[%s900 + $0x14] sm:$0xf] %vm574, %v887
        %907 = vst.msk [vmem:[%s900 + $0x18] sm:$0xf] %vm574, %v889
        %908 = vst.msk [vmem:[%s900 + $0x1c] sm:$0xf] %vm574, %v891
      $region64: #{tpu_custom_call.1} parent=59 // pred_fallthru
        _
      %s909 = smul.u32 %s26, 64
      %s910 = sshra.s32 %s909, 3
      %s911 = sand.u32 %s909, 7
      %s912 = smul.addr %s910, 4
      %s913 = scalar_lea.vmem [#allocation2], %s912
      %v914 = vld [vmem:[%s913] sm:$0xf]
      %v915 = vld [vmem:[%s913 + $0x4] sm:$0xf]
      %v916 = vld [vmem:[%s913 + $0x8] sm:$0xf]
      %v917 = vld [vmem:[%s913 + $0xc] sm:$0xf]
      %v918 = vld [vmem:[%s913 + $0x10] sm:$0xf]
      %v919 = vld [vmem:[%s913 + $0x14] sm:$0xf]
      %v920 = vld [vmem:[%s913 + $0x18] sm:$0xf]
      %v921 = vld [vmem:[%s913 + $0x1c] sm:$0xf]
      %v922 = vld [vmem:[%s2] sm:$0xf]
      %v923 = vld [vmem:[%s2 + $0x4] sm:$0xf]
      %v924 = vld [vmem:[%s2 + $0x8] sm:$0xf]
      %v925 = vld [vmem:[%s2 + $0xc] sm:$0xf]
      %v926 = vld [vmem:[%s3] sm:$0x1]
      %v928 = vlaneseq
      %v929 = vshrl.u32 %v928, 7
      %v930 = vsub.s32 0, %v929
      %v931 = vrot.slane %v926, %v930
      %v941 = vunpack.c.l.b16 %v914
      %v942 = vunpack.c.l.b16 %v915
      %v943 = vunpack.c.l.b16 %v916
      %v944 = vunpack.c.l.b16 %v917
      %v945 = vunpack.c.l.b16 %v918
      %v946 = vunpack.c.l.b16 %v919
      %v947 = vunpack.c.l.b16 %v920
      %v948 = vunpack.c.l.b16 %v921
      %v949 = vpack.c.b16 %v942, %v941
      %v950 = vpack.c.b16 %v944, %v943
      %v951 = vpack.c.b16 %v946, %v945
      %v952 = vpack.c.b16 %v948, %v947
      %v957 = vunpack.c.l.b16 %v922
      %v958 = vunpack.c.l.b16 %v923
      %v959 = vunpack.c.l.b16 %v924
      %v960 = vunpack.c.l.b16 %v925
      %v961 = vpack.c.b16 %v958, %v957
      %v962 = vpack.c.b16 %v960, %v959
      %vm965 = vcmask 261120
      %v967 = vsel %vm965, %v949, 0
      %v970 = vsel %vm965, %v950, 0
      %v973 = vsel %vm965, %v951, 0
      %v976 = vsel %vm965, %v952, 0
      %978 = vmatprep.subr.bf16.mxu0 0
      %979 = vmatpush1.bf16.msra.mxu0 0
      %980 = vmatprep.subr.bf16.mxu0 0
      %981 = vmatpush1.bf16.msra.mxu0 0
      %982 = vmatprep.subr.bf16.mxu0 0
      %983 = vmatpush1.bf16.msra.mxu0 0
      %984 = vmatprep.subr.bf16.mxu0 0
      %985 = vmatpush1.bf16.msra.mxu0 0
      %986 = vmatprep.subr.bf16.mxu0 0
      %987 = vmatpush1.bf16.msra.mxu0 0
      %988 = vmatprep.subr.bf16.mxu0 0
      %989 = vmatpush1.bf16.msra.mxu0 0
      %990 = vmatprep.subr.bf16.mxu0 0
      %991 = vmatpush1.bf16.msra.mxu0 %v962
      %992 = vmatprep.subr.bf16.mxu0 0
      %993 = vmatpush1.bf16.msra.mxu0 %v961
      %994 = vmatprep.subr.bf16.mxu0 0
      %995 = vmatpush2.bf16.msra.mxu0 0
      %996 = vmatprep.subr.bf16.mxu0 0
      %997 = vmatpush2.bf16.msra.mxu0 0
      %998 = vmatprep.subr.bf16.mxu0 0
      %999 = vmatpush2.bf16.msra.mxu0 0
      %1000 = vmatprep.subr.bf16.mxu0 0
      %1001 = vmatpush2.bf16.msra.mxu0 0
      %1002 = vmatprep.subr.bf16.mxu0 0
      %1003 = vmatpush2.bf16.msra.mxu0 0
      %1004 = vmatprep.subr.bf16.mxu0 0
      %1005 = vmatpush2.bf16.msra.mxu0 0
      %1006 = vmatprep.subr.bf16.mxu0 0
      %1007 = vmatpush2.bf16.msra.mxu0 0
      %1008 = vmatprep.subr.bf16.mxu0 0
      %1009 = vmatpush2.bf16.msra.mxu0 0
      %1010 = vmatprep.mubr.bf16.mxu0 0
      %1011 = vmatmul.mubr.bf16.gmra.mxu0 %v967
      %v1012 = vpop.f32.mrf.mxu0
      %v1013 = vadd.f32 %v931, %v1012
      %v1014 = vpop.f32.mrf.mxu0
      %v1015 = vpop.f32.mrf.mxu0
      %v1016 = vadd.f32 %v931, %v1015
      %v1017 = vpop.f32.mrf.mxu0
      %1018 = vmatprep.mubr.bf16.mxu0 0
      %1019 = vmatmul.mubr.bf16.gmra.mxu0 %v970
      %v1020 = vpop.f32.mrf.mxu0
      %v1021 = vadd.f32 %v931, %v1020
      %v1022 = vpop.f32.mrf.mxu0
      %v1023 = vpop.f32.mrf.mxu0
      %v1024 = vadd.f32 %v931, %v1023
      %v1025 = vpop.f32.mrf.mxu0
      %1026 = vmatprep.mubr.bf16.mxu0 0
      %1027 = vmatmul.mubr.bf16.gmra.mxu0 %v973
      %v1028 = vpop.f32.mrf.mxu0
      %v1029 = vadd.f32 %v931, %v1028
      %v1030 = vpop.f32.mrf.mxu0
      %v1031 = vpop.f32.mrf.mxu0
      %v1032 = vadd.f32 %v931, %v1031
      %v1033 = vpop.f32.mrf.mxu0
      %1034 = vmatprep.mubr.bf16.mxu0 0
      %1035 = vmatmul.mubr.bf16.gmra.mxu0 %v976
      %v1036 = vpop.f32.mrf.mxu0
      %v1037 = vadd.f32 %v931, %v1036
      %v1038 = vpop.f32.mrf.mxu0
      %v1039 = vpop.f32.mrf.mxu0
      %v1040 = vadd.f32 %v931, %v1039
      %v1041 = vpop.f32.mrf.mxu0
      %1042 = vdwg.mxu0
      %v1043 = vmul.f32 %v1013, 0.35355338
      %v1044 = vmul.f32 %v1016, 0.35355338
      %v1045 = vmul.f32 %v1021, 0.35355338
      %v1046 = vmul.f32 %v1024, 0.35355338
      %v1047 = vmul.f32 %v1029, 0.35355338
      %v1048 = vmul.f32 %v1032, 0.35355338
      %v1049 = vmul.f32 %v1037, 0.35355338
      %v1050 = vmul.f32 %v1040, 0.35355338
      %v1051 = vpack.c.bf16 %v1044, %v1043
      %v1052 = vpack.c.bf16 %v1046, %v1045
      %v1053 = vpack.c.bf16 %v1048, %v1047
      %v1054 = vpack.c.bf16 %v1050, %v1049
      %v1055 = vld [vmem:[#allocation3] sm:$0xf]
      %v1056 = vld [vmem:[#allocation3 + $0x4] sm:$0xf]
      %v1057 = vld [vmem:[#allocation3 + $0x8] sm:$0xf]
      %v1058 = vld [vmem:[#allocation3 + $0xc] sm:$0xf]
      %v1059 = vld [vmem:[#allocation3 + $0x10] sm:$0xf]
      %v1060 = vld [vmem:[#allocation3 + $0x14] sm:$0xf]
      %v1061 = vld [vmem:[#allocation3 + $0x18] sm:$0xf]
      %v1062 = vld [vmem:[#allocation3 + $0x1c] sm:$0xf]
      %v1071 = vunpack.c.l.b16 %v1055
      %v1072 = vunpack.c.l.b16 %v1056
      %v1073 = vunpack.c.l.b16 %v1057
      %v1074 = vunpack.c.l.b16 %v1058
      %v1075 = vunpack.c.l.b16 %v1059
      %v1076 = vunpack.c.l.b16 %v1060
      %v1077 = vunpack.c.l.b16 %v1061
      %v1078 = vunpack.c.l.b16 %v1062
      %v1079 = vpack.c.b16 %v1072, %v1071
      %v1080 = vpack.c.b16 %v1074, %v1073
      %v1081 = vpack.c.b16 %v1076, %v1075
      %v1082 = vpack.c.b16 %v1078, %v1077
      %vm1083 = vcmask 64512
      %v1085 = vsel %vm1083, %v1051, 0
      %v1088 = vsel %vm1083, %v1052, 0
      %v1091 = vsel %vm1083, %v1053, 0
      %v1094 = vsel %vm1083, %v1054, 0
      %v1097 = vsel %vm1083, %v1079, 0
      %v1100 = vsel %vm1083, %v1080, 0
      %v1103 = vsel %vm1083, %v1081, 0
      %v1106 = vsel %vm1083, %v1082, 0
      %1108 = vmatprep.subr.bf16.mxu0 0
      %1109 = vmatpush1.bf16.xpose.msra.mxu0 0
      %1110 = vmatprep.subr.bf16.mxu0 0
      %1111 = vmatpush1.bf16.xpose.msra.mxu0 0
      %1112 = vmatprep.subr.bf16.mxu0 0
      %1113 = vmatpush1.bf16.xpose.msra.mxu0 0
      %1114 = vmatprep.subr.bf16.mxu0 0
      %1115 = vmatpush1.bf16.xpose.msra.mxu0 0
      %1116 = vmatprep.subr.bf16.mxu0 0
      %1117 = vmatpush1.bf16.xpose.msra.mxu0 %v1106
      %1118 = vmatprep.subr.bf16.mxu0 0
      %1119 = vmatpush1.bf16.xpose.msra.mxu0 %v1103
      %1120 = vmatprep.subr.bf16.mxu0 0
      %1121 = vmatpush1.bf16.xpose.msra.mxu0 %v1100
      %1122 = vmatprep.subr.bf16.mxu0 0
      %1123 = vmatpush1.bf16.xpose.msra.mxu0 %v1097
      %1124 = vmatprep.subr.bf16.mxu0 0
      %1125 = vmatpush2.bf16.xpose.msra.mxu0 0
      %1126 = vmatprep.subr.bf16.mxu0 0
      %1127 = vmatpush2.bf16.xpose.msra.mxu0 0
      %1128 = vmatprep.subr.bf16.mxu0 0
      %1129 = vmatpush2.bf16.xpose.msra.mxu0 0
      %1130 = vmatprep.subr.bf16.mxu0 0
      %1131 = vmatpush2.bf16.xpose.msra.mxu0 0
      %1132 = vmatprep.subr.bf16.mxu0 0
      %1133 = vmatpush2.bf16.xpose.msra.mxu0 0
      %1134 = vmatprep.subr.bf16.mxu0 0
      %1135 = vmatpush2.bf16.xpose.msra.mxu0 0
      %1136 = vmatprep.subr.bf16.mxu0 0
      %1137 = vmatpush2.bf16.xpose.msra.mxu0 0
      %1138 = vmatprep.subr.bf16.mxu0 0
      %1139 = vmatpush2.bf16.xpose.msra.mxu0 0
      %1140 = vmatprep.mubr.bf16.mxu0 0
      %1141 = vmatmul.mubr.bf16.gmra.mxu0 %v1085
      %v1142 = vpop.f32.mrf.mxu0
      %v1143 = vadd.f32 0.0, %v1142
      %v1144 = vpop.f32.mrf.mxu0
      %v1145 = vpop.f32.mrf.mxu0
      %v1146 = vadd.f32 0.0, %v1145
      %v1147 = vpop.f32.mrf.mxu0
      %1148 = vmatprep.mubr.bf16.mxu0 0
      %1149 = vmatmul.mubr.bf16.gmra.mxu0 %v1088
      %v1150 = vpop.f32.mrf.mxu0
      %v1151 = vadd.f32 0.0, %v1150
      %v1152 = vpop.f32.mrf.mxu0
      %v1153 = vpop.f32.mrf.mxu0
      %v1154 = vadd.f32 0.0, %v1153
      %v1155 = vpop.f32.mrf.mxu0
      %1156 = vmatprep.mubr.bf16.mxu0 0
      %1157 = vmatmul.mubr.bf16.gmra.mxu0 %v1091
      %v1158 = vpop.f32.mrf.mxu0
      %v1159 = vadd.f32 0.0, %v1158
      %v1160 = vpop.f32.mrf.mxu0
      %v1161 = vpop.f32.mrf.mxu0
      %v1162 = vadd.f32 0.0, %v1161
      %v1163 = vpop.f32.mrf.mxu0
      %1164 = vmatprep.mubr.bf16.mxu0 0
      %1165 = vmatmul.mubr.bf16.gmra.mxu0 %v1094
      %v1166 = vpop.f32.mrf.mxu0
      %v1167 = vadd.f32 0.0, %v1166
      %v1168 = vpop.f32.mrf.mxu0
      %v1169 = vpop.f32.mrf.mxu0
      %v1170 = vadd.f32 0.0, %v1169
      %v1171 = vpop.f32.mrf.mxu0
      %1172 = vdwg.mxu0
      %vm1173 = vcmask 523264
      %1174 = vst.msk [vmem:[#allocation6] sm:$0xff] %vm1173, %v1143
      %1175 = vst.msk [vmem:[#allocation6 + $0x8] sm:$0xff] %vm1173, %v1146
      %1176 = vst.msk [vmem:[#allocation6 + $0x10] sm:$0xff] %vm1173, %v1151
      %1177 = vst.msk [vmem:[#allocation6 + $0x18] sm:$0xff] %vm1173, %v1154
      %1178 = vst.msk [vmem:[#allocation6 + $0x20] sm:$0xff] %vm1173, %v1159
      %1179 = vst.msk [vmem:[#allocation6 + $0x28] sm:$0xff] %vm1173, %v1162
      %1180 = vst.msk [vmem:[#allocation6 + $0x30] sm:$0xff] %vm1173, %v1167
      %1181 = vst.msk [vmem:[#allocation6 + $0x38] sm:$0xff] %vm1173, %v1170
      %v1182 = vld [vmem:[#allocation6] sm:$0xff]
      %v1183 = vld [vmem:[#allocation6 + $0x8] sm:$0xff]
      %v1184 = vld [vmem:[#allocation6 + $0x10] sm:$0xff]
      %v1185 = vld [vmem:[#allocation6 + $0x18] sm:$0xff]
      %v1186 = vld [vmem:[#allocation6 + $0x20] sm:$0xff]
      %v1187 = vld [vmem:[#allocation6 + $0x28] sm:$0xff]
      %v1188 = vld [vmem:[#allocation6 + $0x30] sm:$0xff]
      %v1189 = vld [vmem:[#allocation6 + $0x38] sm:$0xff]
      %v1190 = vsel %vm1173, %v1182, -inf
      %1191 = vmax.xlane.f32.xlu0 %v1190
      %v1192 = vpop.xlane.xlu0 %1191
      %v1193 = vsel %vm1173, %v1183, -inf
      %1194 = vmax.xlane.f32.xlu0 %v1193
      %v1195 = vpop.xlane.xlu0 %1194
      %v1196 = vsel %vm1173, %v1184, -inf
      %1197 = vmax.xlane.f32.xlu0 %v1196
      %v1198 = vpop.xlane.xlu0 %1197
      %v1199 = vsel %vm1173, %v1185, -inf
      %1200 = vmax.xlane.f32.xlu0 %v1199
      %v1201 = vpop.xlane.xlu0 %1200
      %v1202 = vsel %vm1173, %v1186, -inf
      %1203 = vmax.xlane.f32.xlu0 %v1202
      %v1204 = vpop.xlane.xlu0 %1203
      %v1205 = vsel %vm1173, %v1187, -inf
      %1206 = vmax.xlane.f32.xlu0 %v1205
      %v1207 = vpop.xlane.xlu0 %1206
      %v1208 = vsel %vm1173, %v1188, -inf
      %1209 = vmax.xlane.f32.xlu0 %v1208
      %v1210 = vpop.xlane.xlu0 %1209
      %v1211 = vsel %vm1173, %v1189, -inf
      %1212 = vmax.xlane.f32.xlu0 %v1211
      %v1213 = vpop.xlane.xlu0 %1212
      %v1214 = vsub.f32 %v1182, %v1192
      %v1215 = vsub.f32 %v1183, %v1195
      %v1216 = vsub.f32 %v1184, %v1198
      %v1217 = vsub.f32 %v1185, %v1201
      %v1218 = vsub.f32 %v1186, %v1204
      %v1219 = vsub.f32 %v1187, %v1207
      %v1220 = vsub.f32 %v1188, %v1210
      %v1221 = vsub.f32 %v1189, %v1213
      %v1222 = vmul.f32 %v1214, 1.442695
      %v1223 = vpow.pop %v1222
      %v1224 = vmul.f32 %v1215, 1.442695
      %v1225 = vpow.pop %v1224
      %v1226 = vmul.f32 %v1216, 1.442695
      %v1227 = vpow.pop %v1226
      %v1228 = vmul.f32 %v1217, 1.442695
      %v1229 = vpow.pop %v1228
      %v1230 = vmul.f32 %v1218, 1.442695
      %v1231 = vpow.pop %v1230
      %v1232 = vmul.f32 %v1219, 1.442695
      %v1233 = vpow.pop %v1232
      %v1234 = vmul.f32 %v1220, 1.442695
      %v1235 = vpow.pop %v1234
      %v1236 = vmul.f32 %v1221, 1.442695
      %v1237 = vpow.pop %v1236
      %v1238 = vpack.c.bf16 %v1225, %v1223
      %v1239 = vpack.c.bf16 %v1229, %v1227
      %v1240 = vpack.c.bf16 %v1233, %v1231
      %v1241 = vpack.c.bf16 %v1237, %v1235
      %v1246 = vunpack.c.l.b16 %v1238
      %v1247 = vunpack.c.h.b16 %v1238
      %v1248 = vunpack.c.l.b16 %v1239
      %v1249 = vunpack.c.h.b16 %v1239
      %v1250 = vunpack.c.l.b16 %v1240
      %v1251 = vunpack.c.h.b16 %v1240
      %v1252 = vunpack.c.l.b16 %v1241
      %v1253 = vunpack.c.h.b16 %v1241
      %v1254 = vpack.c.b16 %v1246, %v1246
      %v1255 = vpack.c.b16 %v1247, %v1247
      %v1256 = vpack.c.b16 %v1248, %v1248
      %v1257 = vpack.c.b16 %v1249, %v1249
      %v1258 = vpack.c.b16 %v1250, %v1250
      %v1259 = vpack.c.b16 %v1251, %v1251
      %v1260 = vpack.c.b16 %v1252, %v1252
      %v1261 = vpack.c.b16 %v1253, %v1253
      %vm1270 = vcmask 519168
      %1271 = vst.msk [vmem:[#allocation7] sm:$0xf] %vm1270, %v1254
      %1272 = vst.msk [vmem:[#allocation7 + $0x4] sm:$0xf] %vm1270, %v1255
      %1273 = vst.msk [vmem:[#allocation7 + $0x8] sm:$0xf] %vm1270, %v1256
      %1274 = vst.msk [vmem:[#allocation7 + $0xc] sm:$0xf] %vm1270, %v1257
      %1275 = vst.msk [vmem:[#allocation7 + $0x10] sm:$0xf] %vm1270, %v1258
      %1276 = vst.msk [vmem:[#allocation7 + $0x14] sm:$0xf] %vm1270, %v1259
      %1277 = vst.msk [vmem:[#allocation7 + $0x18] sm:$0xf] %vm1270, %v1260
      %1278 = vst.msk [vmem:[#allocation7 + $0x1c] sm:$0xf] %vm1270, %v1261
      %v1279 = vld [vmem:[#allocation7] sm:$0xf]
      %v1280 = vld [vmem:[#allocation7 + $0x4] sm:$0xf]
      %v1281 = vld [vmem:[#allocation7 + $0x8] sm:$0xf]
      %v1282 = vld [vmem:[#allocation7 + $0xc] sm:$0xf]
      %v1283 = vld [vmem:[#allocation7 + $0x10] sm:$0xf]
      %v1284 = vld [vmem:[#allocation7 + $0x14] sm:$0xf]
      %v1285 = vld [vmem:[#allocation7 + $0x18] sm:$0xf]
      %v1286 = vld [vmem:[#allocation7 + $0x1c] sm:$0xf]
      %v1287 = vunpack.c.l.bf16 %v1279
      %v1288 = vunpack.c.l.bf16 %v1280
      %v1289 = vunpack.c.l.bf16 %v1281
      %v1290 = vunpack.c.l.bf16 %v1282
      %v1291 = vunpack.c.l.bf16 %v1283
      %v1292 = vunpack.c.l.bf16 %v1284
      %v1293 = vunpack.c.l.bf16 %v1285
      %v1294 = vunpack.c.l.bf16 %v1286
      %v1295 = vsel %vm1173, %v1287, 0.0
      %1296 = vadd.xlane.f32.xlu0 %v1295
      %v1297 = vpop.xlane.xlu0 %1296
      %v1298 = vsel %vm1173, %v1288, 0.0
      %1299 = vadd.xlane.f32.xlu0 %v1298
      %v1300 = vpop.xlane.xlu0 %1299
      %v1301 = vsel %vm1173, %v1289, 0.0
      %1302 = vadd.xlane.f32.xlu0 %v1301
      %v1303 = vpop.xlane.xlu0 %1302
      %v1304 = vsel %vm1173, %v1290, 0.0
      %1305 = vadd.xlane.f32.xlu0 %v1304
      %v1306 = vpop.xlane.xlu0 %1305
      %v1307 = vsel %vm1173, %v1291, 0.0
      %1308 = vadd.xlane.f32.xlu0 %v1307
      %v1309 = vpop.xlane.xlu0 %1308
      %v1310 = vsel %vm1173, %v1292, 0.0
      %1311 = vadd.xlane.f32.xlu0 %v1310
      %v1312 = vpop.xlane.xlu0 %1311
      %v1313 = vsel %vm1173, %v1293, 0.0
      %1314 = vadd.xlane.f32.xlu0 %v1313
      %v1315 = vpop.xlane.xlu0 %1314
      %v1316 = vsel %vm1173, %v1294, 0.0
      %1317 = vadd.xlane.f32.xlu0 %v1316
      %v1318 = vpop.xlane.xlu0 %1317
      %v1319 = vld [vmem:[#allocation4] sm:$0xf]
      %v1320 = vld [vmem:[#allocation4 + $0x4] sm:$0xf]
      %v1321 = vld [vmem:[#allocation4 + $0x8] sm:$0xf]
      %v1322 = vld [vmem:[#allocation4 + $0xc] sm:$0xf]
      %v1323 = vld [vmem:[#allocation4 + $0x10] sm:$0xf]
      %v1324 = vld [vmem:[#allocation4 + $0x14] sm:$0xf]
      %v1325 = vld [vmem:[#allocation4 + $0x18] sm:$0xf]
      %v1326 = vld [vmem:[#allocation4 + $0x1c] sm:$0xf]
      %v1335 = vunpack.c.l.b16 %v1279
      %v1336 = vunpack.c.l.b16 %v1280
      %v1337 = vunpack.c.l.b16 %v1281
      %v1338 = vunpack.c.l.b16 %v1282
      %v1339 = vunpack.c.l.b16 %v1283
      %v1340 = vunpack.c.l.b16 %v1284
      %v1341 = vunpack.c.l.b16 %v1285
      %v1342 = vunpack.c.l.b16 %v1286
      %v1343 = vpack.c.b16 %v1336, %v1335
      %v1344 = vpack.c.b16 %v1338, %v1337
      %v1345 = vpack.c.b16 %v1340, %v1339
      %v1346 = vpack.c.b16 %v1342, %v1341
      %v1355 = vunpack.c.l.b16 %v1319
      %v1356 = vunpack.c.l.b16 %v1320
      %v1357 = vunpack.c.l.b16 %v1321
      %v1358 = vunpack.c.l.b16 %v1322
      %v1359 = vunpack.c.l.b16 %v1323
      %v1360 = vunpack.c.l.b16 %v1324
      %v1361 = vunpack.c.l.b16 %v1325
      %v1362 = vunpack.c.l.b16 %v1326
      %v1363 = vpack.c.b16 %v1356, %v1355
      %v1364 = vpack.c.b16 %v1358, %v1357
      %v1365 = vpack.c.b16 %v1360, %v1359
      %v1366 = vpack.c.b16 %v1362, %v1361
      %v1372 = vsel %vm1173, %v1343, 0
      %v1375 = vsel %vm1173, %v1344, 0
      %v1378 = vsel %vm1173, %v1345, 0
      %v1381 = vsel %vm1173, %v1346, 0
      %1383 = vmatprep.subr.bf16.mxu0 0
      %1384 = vmatpush1.bf16.msra.mxu0 0
      %1385 = vmatprep.subr.bf16.mxu0 0
      %1386 = vmatpush1.bf16.msra.mxu0 0
      %1387 = vmatprep.subr.bf16.mxu0 0
      %1388 = vmatpush1.bf16.msra.mxu0 0
      %1389 = vmatprep.subr.bf16.mxu0 0
      %1390 = vmatpush1.bf16.msra.mxu0 0
      %1391 = vmatprep.subr.bf16.mxu0 0
      %1392 = vmatpush1.bf16.msra.mxu0 %v1366
      %1393 = vmatprep.subr.bf16.mxu0 0
      %1394 = vmatpush1.bf16.msra.mxu0 %v1365
      %1395 = vmatprep.subr.bf16.mxu0 0
      %1396 = vmatpush1.bf16.msra.mxu0 %v1364
      %1397 = vmatprep.subr.bf16.mxu0 0
      %1398 = vmatpush1.bf16.msra.mxu0 %v1363
      %1399 = vmatprep.subr.bf16.mxu0 0
      %1400 = vmatpush2.bf16.msra.mxu0 0
      %1401 = vmatprep.subr.bf16.mxu0 0
      %1402 = vmatpush2.bf16.msra.mxu0 0
      %1403 = vmatprep.subr.bf16.mxu0 0
      %1404 = vmatpush2.bf16.msra.mxu0 0
      %1405 = vmatprep.subr.bf16.mxu0 0
      %1406 = vmatpush2.bf16.msra.mxu0 0
      %1407 = vmatprep.subr.bf16.mxu0 0
      %1408 = vmatpush2.bf16.msra.mxu0 0
      %1409 = vmatprep.subr.bf16.mxu0 0
      %1410 = vmatpush2.bf16.msra.mxu0 0
      %1411 = vmatprep.subr.bf16.mxu0 0
      %1412 = vmatpush2.bf16.msra.mxu0 0
      %1413 = vmatprep.subr.bf16.mxu0 0
      %1414 = vmatpush2.bf16.msra.mxu0 0
      %1415 = vmatprep.mubr.bf16.mxu0 0
      %1416 = vmatmul.mubr.bf16.gmra.mxu0 %v1372
      %v1417 = vpop.f32.mrf.mxu0
      %v1418 = vadd.f32 0.0, %v1417
      %v1419 = vpop.f32.mrf.mxu0
      %v1420 = vpop.f32.mrf.mxu0
      %v1421 = vadd.f32 0.0, %v1420
      %v1422 = vpop.f32.mrf.mxu0
      %1423 = vmatprep.mubr.bf16.mxu0 0
      %1424 = vmatmul.mubr.bf16.gmra.mxu0 %v1375
      %v1425 = vpop.f32.mrf.mxu0
      %v1426 = vadd.f32 0.0, %v1425
      %v1427 = vpop.f32.mrf.mxu0
      %v1428 = vpop.f32.mrf.mxu0
      %v1429 = vadd.f32 0.0, %v1428
      %v1430 = vpop.f32.mrf.mxu0
      %1431 = vmatprep.mubr.bf16.mxu0 0
      %1432 = vmatmul.mubr.bf16.gmra.mxu0 %v1378
      %v1433 = vpop.f32.mrf.mxu0
      %v1434 = vadd.f32 0.0, %v1433
      %v1435 = vpop.f32.mrf.mxu0
      %v1436 = vpop.f32.mrf.mxu0
      %v1437 = vadd.f32 0.0, %v1436
      %v1438 = vpop.f32.mrf.mxu0
      %1439 = vmatprep.mubr.bf16.mxu0 0
      %1440 = vmatmul.mubr.bf16.gmra.mxu0 %v1381
      %v1441 = vpop.f32.mrf.mxu0
      %v1442 = vadd.f32 0.0, %v1441
      %v1443 = vpop.f32.mrf.mxu0
      %v1444 = vpop.f32.mrf.mxu0
      %v1445 = vadd.f32 0.0, %v1444
      %v1446 = vpop.f32.mrf.mxu0
      %1447 = vdwg.mxu0
      %v1448 = vrcp.pop %v1297
      %v1449 = vrcp.pop %v1300
      %v1450 = vrcp.pop %v1303
      %v1451 = vrcp.pop %v1306
      %v1452 = vrcp.pop %v1309
      %v1453 = vrcp.pop %v1312
      %v1454 = vrcp.pop %v1315
      %v1455 = vrcp.pop %v1318
      %v1456 = vmul.f32 %v1418, %v1448
      %v1457 = vmul.f32 %v1421, %v1449
      %v1458 = vmul.f32 %v1426, %v1450
      %v1459 = vmul.f32 %v1429, %v1451
      %v1460 = vmul.f32 %v1434, %v1452
      %v1461 = vmul.f32 %v1437, %v1453
      %v1462 = vmul.f32 %v1442, %v1454
      %v1463 = vmul.f32 %v1445, %v1455
      %v1464 = vpack.c.bf16 %v1457, %v1456
      %v1465 = vpack.c.bf16 %v1459, %v1458
      %v1466 = vpack.c.bf16 %v1461, %v1460
      %v1467 = vpack.c.bf16 %v1463, %v1462
      %v1472 = vunpack.c.l.b16 %v1464
      %v1473 = vunpack.c.h.b16 %v1464
      %v1474 = vunpack.c.l.b16 %v1465
      %v1475 = vunpack.c.h.b16 %v1465
      %v1476 = vunpack.c.l.b16 %v1466
      %v1477 = vunpack.c.h.b16 %v1466
      %v1478 = vunpack.c.l.b16 %v1467
      %v1479 = vunpack.c.h.b16 %v1467
      %v1480 = vpack.c.b16 %v1472, %v1472
      %v1481 = vpack.c.b16 %v1473, %v1473
      %v1482 = vpack.c.b16 %v1474, %v1474
      %v1483 = vpack.c.b16 %v1475, %v1475
      %v1484 = vpack.c.b16 %v1476, %v1476
      %v1485 = vpack.c.b16 %v1477, %v1477
      %v1486 = vpack.c.b16 %v1478, %v1478
      %v1487 = vpack.c.b16 %v1479, %v1479
      %vm1496 = vcmask 60416
      %1497 = vst.msk [vmem:[#allocation5] sm:$0xf] %vm1496, %v1480
      %1498 = vst.msk [vmem:[#allocation5 + $0x4] sm:$0xf] %vm1496, %v1481
      %1499 = vst.msk [vmem:[#allocation5 + $0x8] sm:$0xf] %vm1496, %v1482
      %1500 = vst.msk [vmem:[#allocation5 + $0xc] sm:$0xf] %vm1496, %v1483
      %1501 = vst.msk [vmem:[#allocation5 + $0x10] sm:$0xf] %vm1496, %v1484
      %1502 = vst.msk [vmem:[#allocation5 + $0x14] sm:$0xf] %vm1496, %v1485
      %1503 = vst.msk [vmem:[#allocation5 + $0x18] sm:$0xf] %vm1496, %v1486
      %1504 = vst.msk [vmem:[#allocation5 + $0x1c] sm:$0xf] %vm1496, %v1487
      %s1505 = scalar_lea.vmem [#allocation3], 32
      %v1506 = vld [vmem:[%s1505] sm:$0xf]
      %v1507 = vld [vmem:[%s1505 + $0x4] sm:$0xf]
      %v1508 = vld [vmem:[%s1505 + $0x8] sm:$0xf]
      %v1509 = vld [vmem:[%s1505 + $0xc] sm:$0xf]
      %v1510 = vld [vmem:[%s1505 + $0x10] sm:$0xf]
      %v1511 = vld [vmem:[%s1505 + $0x14] sm:$0xf]
      %v1512 = vld [vmem:[%s1505 + $0x18] sm:$0xf]
      %v1513 = vld [vmem:[%s1505 + $0x1c] sm:$0xf]
      %1518 = vrot.lane.b32.xlu0 %v1051, 120
      %v1519 = vpop.permute.xlu0 %1518
      %1520 = vrot.lane.b32.xlu0 %v1052, 120
      %v1521 = vpop.permute.xlu0 %1520
      %1522 = vrot.lane.b32.xlu0 %v1053, 120
      %v1523 = vpop.permute.xlu0 %1522
      %1524 = vrot.lane.b32.xlu0 %v1054, 120
      %v1525 = vpop.permute.xlu0 %1524
      %v1534 = vunpack.c.l.b16 %v1506
      %v1535 = vunpack.c.l.b16 %v1507
      %v1536 = vunpack.c.l.b16 %v1508
      %v1537 = vunpack.c.l.b16 %v1509
      %v1538 = vunpack.c.l.b16 %v1510
      %v1539 = vunpack.c.l.b16 %v1511
      %v1540 = vunpack.c.l.b16 %v1512
      %v1541 = vunpack.c.l.b16 %v1513
      %v1542 = vpack.c.b16 %v1535, %v1534
      %v1543 = vpack.c.b16 %v1537, %v1536
      %v1544 = vpack.c.b16 %v1539, %v1538
      %v1545 = vpack.c.b16 %v1541, %v1540
      %v1547 = vsel %vm1083, %v1519, 0
      %v1550 = vsel %vm1083, %v1521, 0
      %v1553 = vsel %vm1083, %v1523, 0
      %v1556 = vsel %vm1083, %v1525, 0
      %v1559 = vsel %vm1083, %v1542, 0
      %v1562 = vsel %vm1083, %v1543, 0
      %v1565 = vsel %vm1083, %v1544, 0
      %v1568 = vsel %vm1083, %v1545, 0
      %1570 = vmatprep.subr.bf16.mxu0 0
      %1571 = vmatpush1.bf16.xpose.msra.mxu0 0
      %1572 = vmatprep.subr.bf16.mxu0 0
      %1573 = vmatpush1.bf16.xpose.msra.mxu0 0
      %1574 = vmatprep.subr.bf16.mxu0 0
      %1575 = vmatpush1.bf16.xpose.msra.mxu0 0
      %1576 = vmatprep.subr.bf16.mxu0 0
      %1577 = vmatpush1.bf16.xpose.msra.mxu0 0
      %1578 = vmatprep.subr.bf16.mxu0 0
      %1579 = vmatpush1.bf16.xpose.msra.mxu0 %v1568
      %1580 = vmatprep.subr.bf16.mxu0 0
      %1581 = vmatpush1.bf16.xpose.msra.mxu0 %v1565
      %1582 = vmatprep.subr.bf16.mxu0 0
      %1583 = vmatpush1.bf16.xpose.msra.mxu0 %v1562
      %1584 = vmatprep.subr.bf16.mxu0 0
      %1585 = vmatpush1.bf16.xpose.msra.mxu0 %v1559
      %1586 = vmatprep.subr.bf16.mxu0 0
      %1587 = vmatpush2.bf16.xpose.msra.mxu0 0
      %1588 = vmatprep.subr.bf16.mxu0 0
      %1589 = vmatpush2.bf16.xpose.msra.mxu0 0
      %1590 = vmatprep.subr.bf16.mxu0 0
      %1591 = vmatpush2.bf16.xpose.msra.mxu0 0
      %1592 = vmatprep.subr.bf16.mxu0 0
      %1593 = vmatpush2.bf16.xpose.msra.mxu0 0
      %1594 = vmatprep.subr.bf16.mxu0 0
      %1595 = vmatpush2.bf16.xpose.msra.mxu0 0
      %1596 = vmatprep.subr.bf16.mxu0 0
      %1597 = vmatpush2.bf16.xpose.msra.mxu0 0
      %1598 = vmatprep.subr.bf16.mxu0 0
      %1599 = vmatpush2.bf16.xpose.msra.mxu0 0
      %1600 = vmatprep.subr.bf16.mxu0 0
      %1601 = vmatpush2.bf16.xpose.msra.mxu0 0
      %1602 = vmatprep.mubr.bf16.mxu0 0
      %1603 = vmatmul.mubr.bf16.gmra.mxu0 %v1547
      %v1604 = vpop.f32.mrf.mxu0
      %v1605 = vadd.f32 0.0, %v1604
      %v1606 = vpop.f32.mrf.mxu0
      %v1607 = vpop.f32.mrf.mxu0
      %v1608 = vadd.f32 0.0, %v1607
      %v1609 = vpop.f32.mrf.mxu0
      %1610 = vmatprep.mubr.bf16.mxu0 0
      %1611 = vmatmul.mubr.bf16.gmra.mxu0 %v1550
      %v1612 = vpop.f32.mrf.mxu0
      %v1613 = vadd.f32 0.0, %v1612
      %v1614 = vpop.f32.mrf.mxu0
      %v1615 = vpop.f32.mrf.mxu0
      %v1616 = vadd.f32 0.0, %v1615
      %v1617 = vpop.f32.mrf.mxu0
      %1618 = vmatprep.mubr.bf16.mxu0 0
      %1619 = vmatmul.mubr.bf16.gmra.mxu0 %v1553
      %v1620 = vpop.f32.mrf.mxu0
      %v1621 = vadd.f32 0.0, %v1620
      %v1622 = vpop.f32.mrf.mxu0
      %v1623 = vpop.f32.mrf.mxu0
      %v1624 = vadd.f32 0.0, %v1623
      %v1625 = vpop.f32.mrf.mxu0
      %1626 = vmatprep.mubr.bf16.mxu0 0
      %1627 = vmatmul.mubr.bf16.gmra.mxu0 %v1556
      %v1628 = vpop.f32.mrf.mxu0
      %v1629 = vadd.f32 0.0, %v1628
      %v1630 = vpop.f32.mrf.mxu0
      %v1631 = vpop.f32.mrf.mxu0
      %v1632 = vadd.f32 0.0, %v1631
      %v1633 = vpop.f32.mrf.mxu0
      %1634 = vdwg.mxu0
      %1635 = vst.msk [vmem:[#allocation6] sm:$0xff] %vm1173, %v1605
      %1636 = vst.msk [vmem:[#allocation6 + $0x8] sm:$0xff] %vm1173, %v1608
      %1637 = vst.msk [vmem:[#allocation6 + $0x10] sm:$0xff] %vm1173, %v1613
      %1638 = vst.msk [vmem:[#allocation6 + $0x18] sm:$0xff] %vm1173, %v1616
      %1639 = vst.msk [vmem:[#allocation6 + $0x20] sm:$0xff] %vm1173, %v1621
      %1640 = vst.msk [vmem:[#allocation6 + $0x28] sm:$0xff] %vm1173, %v1624
      %1641 = vst.msk [vmem:[#allocation6 + $0x30] sm:$0xff] %vm1173, %v1629
      %1642 = vst.msk [vmem:[#allocation6 + $0x38] sm:$0xff] %vm1173, %v1632
      %v1643 = vld [vmem:[#allocation6] sm:$0xff]
      %v1644 = vld [vmem:[#allocation6 + $0x8] sm:$0xff]
      %v1645 = vld [vmem:[#allocation6 + $0x10] sm:$0xff]
      %v1646 = vld [vmem:[#allocation6 + $0x18] sm:$0xff]
      %v1647 = vld [vmem:[#allocation6 + $0x20] sm:$0xff]
      %v1648 = vld [vmem:[#allocation6 + $0x28] sm:$0xff]
      %v1649 = vld [vmem:[#allocation6 + $0x30] sm:$0xff]
      %v1650 = vld [vmem:[#allocation6 + $0x38] sm:$0xff]
      %v1651 = vsel %vm1173, %v1643, -inf
      %1652 = vmax.xlane.f32.xlu0 %v1651
      %v1653 = vpop.xlane.xlu0 %1652
      %v1654 = vsel %vm1173, %v1644, -inf
      %1655 = vmax.xlane.f32.xlu0 %v1654
      %v1656 = vpop.xlane.xlu0 %1655
      %v1657 = vsel %vm1173, %v1645, -inf
      %1658 = vmax.xlane.f32.xlu0 %v1657
      %v1659 = vpop.xlane.xlu0 %1658
      %v1660 = vsel %vm1173, %v1646, -inf
      %1661 = vmax.xlane.f32.xlu0 %v1660
      %v1662 = vpop.xlane.xlu0 %1661
      %v1663 = vsel %vm1173, %v1647, -inf
      %1664 = vmax.xlane.f32.xlu0 %v1663
      %v1665 = vpop.xlane.xlu0 %1664
      %v1666 = vsel %vm1173, %v1648, -inf
      %1667 = vmax.xlane.f32.xlu0 %v1666
      %v1668 = vpop.xlane.xlu0 %1667
      %v1669 = vsel %vm1173, %v1649, -inf
      %1670 = vmax.xlane.f32.xlu0 %v1669
      %v1671 = vpop.xlane.xlu0 %1670
      %v1672 = vsel %vm1173, %v1650, -inf
      %1673 = vmax.xlane.f32.xlu0 %v1672
      %v1674 = vpop.xlane.xlu0 %1673
      %v1675 = vsub.f32 %v1643, %v1653
      %v1676 = vsub.f32 %v1644, %v1656
      %v1677 = vsub.f32 %v1645, %v1659
      %v1678 = vsub.f32 %v1646, %v1662
      %v1679 = vsub.f32 %v1647, %v1665
      %v1680 = vsub.f32 %v1648, %v1668
      %v1681 = vsub.f32 %v1649, %v1671
      %v1682 = vsub.f32 %v1650, %v1674
      %v1683 = vmul.f32 %v1675, 1.442695
      %v1684 = vpow.pop %v1683
      %v1685 = vmul.f32 %v1676, 1.442695
      %v1686 = vpow.pop %v1685
      %v1687 = vmul.f32 %v1677, 1.442695
      %v1688 = vpow.pop %v1687
      %v1689 = vmul.f32 %v1678, 1.442695
      %v1690 = vpow.pop %v1689
      %v1691 = vmul.f32 %v1679, 1.442695
      %v1692 = vpow.pop %v1691
      %v1693 = vmul.f32 %v1680, 1.442695
      %v1694 = vpow.pop %v1693
      %v1695 = vmul.f32 %v1681, 1.442695
      %v1696 = vpow.pop %v1695
      %v1697 = vmul.f32 %v1682, 1.442695
      %v1698 = vpow.pop %v1697
      %v1699 = vpack.c.bf16 %v1686, %v1684
      %v1700 = vpack.c.bf16 %v1690, %v1688
      %v1701 = vpack.c.bf16 %v1694, %v1692
      %v1702 = vpack.c.bf16 %v1698, %v1696
      %v1707 = vunpack.c.l.b16 %v1699
      %v1708 = vunpack.c.h.b16 %v1699
      %v1709 = vunpack.c.l.b16 %v1700
      %v1710 = vunpack.c.h.b16 %v1700
      %v1711 = vunpack.c.l.b16 %v1701
      %v1712 = vunpack.c.h.b16 %v1701
      %v1713 = vunpack.c.l.b16 %v1702
      %v1714 = vunpack.c.h.b16 %v1702
      %v1715 = vpack.c.b16 %v1707, %v1707
      %v1716 = vpack.c.b16 %v1708, %v1708
      %v1717 = vpack.c.b16 %v1709, %v1709
      %v1718 = vpack.c.b16 %v1710, %v1710
      %v1719 = vpack.c.b16 %v1711, %v1711
      %v1720 = vpack.c.b16 %v1712, %v1712
      %v1721 = vpack.c.b16 %v1713, %v1713
      %v1722 = vpack.c.b16 %v1714, %v1714
      %1731 = vst.msk [vmem:[#allocation7] sm:$0xf] %vm1270, %v1715
      %1732 = vst.msk [vmem:[#allocation7 + $0x4] sm:$0xf] %vm1270, %v1716
      %1733 = vst.msk [vmem:[#allocation7 + $0x8] sm:$0xf] %vm1270, %v1717
      %1734 = vst.msk [vmem:[#allocation7 + $0xc] sm:$0xf] %vm1270, %v1718
      %1735 = vst.msk [vmem:[#allocation7 + $0x10] sm:$0xf] %vm1270, %v1719
      %1736 = vst.msk [vmem:[#allocation7 + $0x14] sm:$0xf] %vm1270, %v1720
      %1737 = vst.msk [vmem:[#allocation7 + $0x18] sm:$0xf] %vm1270, %v1721
      %1738 = vst.msk [vmem:[#allocation7 + $0x1c] sm:$0xf] %vm1270, %v1722
      %v1739 = vld [vmem:[#allocation7] sm:$0xf]
      %v1740 = vld [vmem:[#allocation7 + $0x4] sm:$0xf]
      %v1741 = vld [vmem:[#allocation7 + $0x8] sm:$0xf]
      %v1742 = vld [vmem:[#allocation7 + $0xc] sm:$0xf]
      %v1743 = vld [vmem:[#allocation7 + $0x10] sm:$0xf]
      %v1744 = vld [vmem:[#allocation7 + $0x14] sm:$0xf]
      %v1745 = vld [vmem:[#allocation7 + $0x18] sm:$0xf]
      %v1746 = vld [vmem:[#allocation7 + $0x1c] sm:$0xf]
      %v1747 = vunpack.c.l.bf16 %v1739
      %v1748 = vunpack.c.l.bf16 %v1740
      %v1749 = vunpack.c.l.bf16 %v1741
      %v1750 = vunpack.c.l.bf16 %v1742
      %v1751 = vunpack.c.l.bf16 %v1743
      %v1752 = vunpack.c.l.bf16 %v1744
      %v1753 = vunpack.c.l.bf16 %v1745
      %v1754 = vunpack.c.l.bf16 %v1746
      %v1755 = vsel %vm1173, %v1747, 0.0
      %1756 = vadd.xlane.f32.xlu0 %v1755
      %v1757 = vpop.xlane.xlu0 %1756
      %v1758 = vsel %vm1173, %v1748, 0.0
      %1759 = vadd.xlane.f32.xlu0 %v1758
      %v1760 = vpop.xlane.xlu0 %1759
      %v1761 = vsel %vm1173, %v1749, 0.0
      %1762 = vadd.xlane.f32.xlu0 %v1761
      %v1763 = vpop.xlane.xlu0 %1762
      %v1764 = vsel %vm1173, %v1750, 0.0
      %1765 = vadd.xlane.f32.xlu0 %v1764
      %v1766 = vpop.xlane.xlu0 %1765
      %v1767 = vsel %vm1173, %v1751, 0.0
      %1768 = vadd.xlane.f32.xlu0 %v1767
      %v1769 = vpop.xlane.xlu0 %1768
      %v1770 = vsel %vm1173, %v1752, 0.0
      %1771 = vadd.xlane.f32.xlu0 %v1770
      %v1772 = vpop.xlane.xlu0 %1771
      %v1773 = vsel %vm1173, %v1753, 0.0
      %1774 = vadd.xlane.f32.xlu0 %v1773
      %v1775 = vpop.xlane.xlu0 %1774
      %v1776 = vsel %vm1173, %v1754, 0.0
      %1777 = vadd.xlane.f32.xlu0 %v1776
      %v1778 = vpop.xlane.xlu0 %1777
      %s1779 = scalar_lea.vmem [#allocation4], 32
      %v1780 = vld [vmem:[%s1779] sm:$0xf]
      %v1781 = vld [vmem:[%s1779 + $0x4] sm:$0xf]
      %v1782 = vld [vmem:[%s1779 + $0x8] sm:$0xf]
      %v1783 = vld [vmem:[%s1779 + $0xc] sm:$0xf]
      %v1784 = vld [vmem:[%s1779 + $0x10] sm:$0xf]
      %v1785 = vld [vmem:[%s1779 + $0x14] sm:$0xf]
      %v1786 = vld [vmem:[%s1779 + $0x18] sm:$0xf]
      %v1787 = vld [vmem:[%s1779 + $0x1c] sm:$0xf]
      %v1796 = vunpack.c.l.b16 %v1739
      %v1797 = vunpack.c.l.b16 %v1740
      %v1798 = vunpack.c.l.b16 %v1741
      %v1799 = vunpack.c.l.b16 %v1742
      %v1800 = vunpack.c.l.b16 %v1743
      %v1801 = vunpack.c.l.b16 %v1744
      %v1802 = vunpack.c.l.b16 %v1745
      %v1803 = vunpack.c.l.b16 %v1746
      %v1804 = vpack.c.b16 %v1797, %v1796
      %v1805 = vpack.c.b16 %v1799, %v1798
      %v1806 = vpack.c.b16 %v1801, %v1800
      %v1807 = vpack.c.b16 %v1803, %v1802
      %v1816 = vunpack.c.l.b16 %v1780
      %v1817 = vunpack.c.l.b16 %v1781
      %v1818 = vunpack.c.l.b16 %v1782
      %v1819 = vunpack.c.l.b16 %v1783
      %v1820 = vunpack.c.l.b16 %v1784
      %v1821 = vunpack.c.l.b16 %v1785
      %v1822 = vunpack.c.l.b16 %v1786
      %v1823 = vunpack.c.l.b16 %v1787
      %v1824 = vpack.c.b16 %v1817, %v1816
      %v1825 = vpack.c.b16 %v1819, %v1818
      %v1826 = vpack.c.b16 %v1821, %v1820
      %v1827 = vpack.c.b16 %v1823, %v1822
      %v1833 = vsel %vm1173, %v1804, 0
      %v1836 = vsel %vm1173, %v1805, 0
      %v1839 = vsel %vm1173, %v1806, 0
      %v1842 = vsel %vm1173, %v1807, 0
      %1844 = vmatprep.subr.bf16.mxu0 0
      %1845 = vmatpush1.bf16.msra.mxu0 0
      %1846 = vmatprep.subr.bf16.mxu0 0
      %1847 = vmatpush1.bf16.msra.mxu0 0
      %1848 = vmatprep.subr.bf16.mxu0 0
      %1849 = vmatpush1.bf16.msra.mxu0 0
      %1850 = vmatprep.subr.bf16.mxu0 0
      %1851 = vmatpush1.bf16.msra.mxu0 0
      %1852 = vmatprep.subr.bf16.mxu0 0
      %1853 = vmatpush1.bf16.msra.mxu0 %v1827
      %1854 = vmatprep.subr.bf16.mxu0 0
      %1855 = vmatpush1.bf16.msra.mxu0 %v1826
      %1856 = vmatprep.subr.bf16.mxu0 0
      %1857 = vmatpush1.bf16.msra.mxu0 %v1825
      %1858 = vmatprep.subr.bf16.mxu0 0
      %1859 = vmatpush1.bf16.msra.mxu0 %v1824
      %1860 = vmatprep.subr.bf16.mxu0 0
      %1861 = vmatpush2.bf16.msra.mxu0 0
      %1862 = vmatprep.subr.bf16.mxu0 0
      %1863 = vmatpush2.bf16.msra.mxu0 0
      %1864 = vmatprep.subr.bf16.mxu0 0
      %1865 = vmatpush2.bf16.msra.mxu0 0
      %1866 = vmatprep.subr.bf16.mxu0 0
      %1867 = vmatpush2.bf16.msra.mxu0 0
      %1868 = vmatprep.subr.bf16.mxu0 0
      %1869 = vmatpush2.bf16.msra.mxu0 0
      %1870 = vmatprep.subr.bf16.mxu0 0
      %1871 = vmatpush2.bf16.msra.mxu0 0
      %1872 = vmatprep.subr.bf16.mxu0 0
      %1873 = vmatpush2.bf16.msra.mxu0 0
      %1874 = vmatprep.subr.bf16.mxu0 0
      %1875 = vmatpush2.bf16.msra.mxu0 0
      %1876 = vmatprep.mubr.bf16.mxu0 0
      %1877 = vmatmul.mubr.bf16.gmra.mxu0 %v1833
      %v1878 = vpop.f32.mrf.mxu0
      %v1879 = vadd.f32 0.0, %v1878
      %v1880 = vpop.f32.mrf.mxu0
      %v1881 = vpop.f32.mrf.mxu0
      %v1882 = vadd.f32 0.0, %v1881
      %v1883 = vpop.f32.mrf.mxu0
      %1884 = vmatprep.mubr.bf16.mxu0 0
      %1885 = vmatmul.mubr.bf16.gmra.mxu0 %v1836
      %v1886 = vpop.f32.mrf.mxu0
      %v1887 = vadd.f32 0.0, %v1886
      %v1888 = vpop.f32.mrf.mxu0
      %v1889 = vpop.f32.mrf.mxu0
      %v1890 = vadd.f32 0.0, %v1889
      %v1891 = vpop.f32.mrf.mxu0
      %1892 = vmatprep.mubr.bf16.mxu0 0
      %1893 = vmatmul.mubr.bf16.gmra.mxu0 %v1839
      %v1894 = vpop.f32.mrf.mxu0
      %v1895 = vadd.f32 0.0, %v1894
      %v1896 = vpop.f32.mrf.mxu0
      %v1897 = vpop.f32.mrf.mxu0
      %v1898 = vadd.f32 0.0, %v1897
      %v1899 = vpop.f32.mrf.mxu0
      %1900 = vmatprep.mubr.bf16.mxu0 0
      %1901 = vmatmul.mubr.bf16.gmra.mxu0 %v1842
      %v1902 = vpop.f32.mrf.mxu0
      %v1903 = vadd.f32 0.0, %v1902
      %v1904 = vpop.f32.mrf.mxu0
      %v1905 = vpop.f32.mrf.mxu0
      %v1906 = vadd.f32 0.0, %v1905
      %v1907 = vpop.f32.mrf.mxu0
      %1908 = vdwg.mxu0
      %v1909 = vrcp.pop %v1757
      %v1910 = vrcp.pop %v1760
      %v1911 = vrcp.pop %v1763
      %v1912 = vrcp.pop %v1766
      %v1913 = vrcp.pop %v1769
      %v1914 = vrcp.pop %v1772
      %v1915 = vrcp.pop %v1775
      %v1916 = vrcp.pop %v1778
      %v1917 = vmul.f32 %v1879, %v1909
      %v1918 = vmul.f32 %v1882, %v1910
      %v1919 = vmul.f32 %v1887, %v1911
      %v1920 = vmul.f32 %v1890, %v1912
      %v1921 = vmul.f32 %v1895, %v1913
      %v1922 = vmul.f32 %v1898, %v1914
      %v1923 = vmul.f32 %v1903, %v1915
      %v1924 = vmul.f32 %v1906, %v1916
      %v1925 = vpack.c.bf16 %v1918, %v1917
      %v1926 = vpack.c.bf16 %v1920, %v1919
      %v1927 = vpack.c.bf16 %v1922, %v1921
      %v1928 = vpack.c.bf16 %v1924, %v1923
      %v1933 = vunpack.c.l.b16 %v1925
      %v1934 = vunpack.c.h.b16 %v1925
      %v1935 = vunpack.c.l.b16 %v1926
      %v1936 = vunpack.c.h.b16 %v1926
      %v1937 = vunpack.c.l.b16 %v1927
      %v1938 = vunpack.c.h.b16 %v1927
      %v1939 = vunpack.c.l.b16 %v1928
      %v1940 = vunpack.c.h.b16 %v1928
      %v1941 = vpack.c.b16 %v1933, %v1933
      %v1942 = vpack.c.b16 %v1934, %v1934
      %v1943 = vpack.c.b16 %v1935, %v1935
      %v1944 = vpack.c.b16 %v1936, %v1936
      %v1945 = vpack.c.b16 %v1937, %v1937
      %v1946 = vpack.c.b16 %v1938, %v1938
      %v1947 = vpack.c.b16 %v1939, %v1939
      %v1948 = vpack.c.b16 %v1940, %v1940
      %1949 = vrot.lane.b32.xlu0 %v1941, 8
      %v1950 = vpop.permute.xlu0 %1949
      %1951 = vrot.lane.b32.xlu0 %v1942, 8
      %v1952 = vpop.permute.xlu0 %1951
      %1953 = vrot.lane.b32.xlu0 %v1943, 8
      %v1954 = vpop.permute.xlu0 %1953
      %1955 = vrot.lane.b32.xlu0 %v1944, 8
      %v1956 = vpop.permute.xlu0 %1955
      %1957 = vrot.lane.b32.xlu0 %v1945, 8
      %v1958 = vpop.permute.xlu0 %1957
      %1959 = vrot.lane.b32.xlu0 %v1946, 8
      %v1960 = vpop.permute.xlu0 %1959
      %1961 = vrot.lane.b32.xlu0 %v1947, 8
      %v1962 = vpop.permute.xlu0 %1961
      %1963 = vrot.lane.b32.xlu0 %v1948, 8
      %v1964 = vpop.permute.xlu0 %1963
      %vm1973 = vcmask 126016
      %1974 = vst.msk [vmem:[#allocation5] sm:$0xf] %vm1973, %v1950
      %1975 = vst.msk [vmem:[#allocation5 + $0x4] sm:$0xf] %vm1973, %v1952
      %1976 = vst.msk [vmem:[#allocation5 + $0x8] sm:$0xf] %vm1973, %v1954
      %1977 = vst.msk [vmem:[#allocation5 + $0xc] sm:$0xf] %vm1973, %v1956
      %1978 = vst.msk [vmem:[#allocation5 + $0x10] sm:$0xf] %vm1973, %v1958
      %1979 = vst.msk [vmem:[#allocation5 + $0x14] sm:$0xf] %vm1973, %v1960
      %1980 = vst.msk [vmem:[#allocation5 + $0x18] sm:$0xf] %vm1973, %v1962
      %1981 = vst.msk [vmem:[#allocation5 + $0x1c] sm:$0xf] %vm1973, %v1964
      %s1982 = scalar_lea.vmem [#allocation3], 64
      %v1983 = vld [vmem:[%s1982] sm:$0xf]
      %v1984 = vld [vmem:[%s1982 + $0x4] sm:$0xf]
      %v1985 = vld [vmem:[%s1982 + $0x8] sm:$0xf]
      %v1986 = vld [vmem:[%s1982 + $0xc] sm:$0xf]
      %v1987 = vld [vmem:[%s1982 + $0x10] sm:$0xf]
      %v1988 = vld [vmem:[%s1982 + $0x14] sm:$0xf]
      %v1989 = vld [vmem:[%s1982 + $0x18] sm:$0xf]
      %v1990 = vld [vmem:[%s1982 + $0x1c] sm:$0xf]
      %1991 = vrot.lane.b32.xlu0 %v1051, 112
      %v1992 = vpop.permute.xlu0 %1991
      %1993 = vrot.lane.b32.xlu0 %v1052, 112
      %v1994 = vpop.permute.xlu0 %1993
      %1995 = vrot.lane.b32.xlu0 %v1053, 112
      %v1996 = vpop.permute.xlu0 %1995
      %1997 = vrot.lane.b32.xlu0 %v1054, 112
      %v1998 = vpop.permute.xlu0 %1997
      %v2007 = vunpack.c.l.b16 %v1983
      %v2008 = vunpack.c.l.b16 %v1984
      %v2009 = vunpack.c.l.b16 %v1985
      %v2010 = vunpack.c.l.b16 %v1986
      %v2011 = vunpack.c.l.b16 %v1987
      %v2012 = vunpack.c.l.b16 %v1988
      %v2013 = vunpack.c.l.b16 %v1989
      %v2014 = vunpack.c.l.b16 %v1990
      %v2015 = vpack.c.b16 %v2008, %v2007
      %v2016 = vpack.c.b16 %v2010, %v2009
      %v2017 = vpack.c.b16 %v2012, %v2011
      %v2018 = vpack.c.b16 %v2014, %v2013
      %v2020 = vsel %vm1083, %v1992, 0
      %v2023 = vsel %vm1083, %v1994, 0
      %v2026 = vsel %vm1083, %v1996, 0
      %v2029 = vsel %vm1083, %v1998, 0
      %v2032 = vsel %vm1083, %v2015, 0
      %v2035 = vsel %vm1083, %v2016, 0
      %v2038 = vsel %vm1083, %v2017, 0
      %v2041 = vsel %vm1083, %v2018, 0
      %2043 = vmatprep.subr.bf16.mxu0 0
      %2044 = vmatpush1.bf16.xpose.msra.mxu0 0
      %2045 = vmatprep.subr.bf16.mxu0 0
      %2046 = vmatpush1.bf16.xpose.msra.mxu0 0
      %2047 = vmatprep.subr.bf16.mxu0 0
      %2048 = vmatpush1.bf16.xpose.msra.mxu0 0
      %2049 = vmatprep.subr.bf16.mxu0 0
      %2050 = vmatpush1.bf16.xpose.msra.mxu0 0
      %2051 = vmatprep.subr.bf16.mxu0 0
      %2052 = vmatpush1.bf16.xpose.msra.mxu0 %v2041
      %2053 = vmatprep.subr.bf16.mxu0 0
      %2054 = vmatpush1.bf16.xpose.msra.mxu0 %v2038
      %2055 = vmatprep.subr.bf16.mxu0 0
      %2056 = vmatpush1.bf16.xpose.msra.mxu0 %v2035
      %2057 = vmatprep.subr.bf16.mxu0 0
      %2058 = vmatpush1.bf16.xpose.msra.mxu0 %v2032
      %2059 = vmatprep.subr.bf16.mxu0 0
      %2060 = vmatpush2.bf16.xpose.msra.mxu0 0
      %2061 = vmatprep.subr.bf16.mxu0 0
      %2062 = vmatpush2.bf16.xpose.msra.mxu0 0
      %2063 = vmatprep.subr.bf16.mxu0 0
      %2064 = vmatpush2.bf16.xpose.msra.mxu0 0
      %2065 = vmatprep.subr.bf16.mxu0 0
      %2066 = vmatpush2.bf16.xpose.msra.mxu0 0
      %2067 = vmatprep.subr.bf16.mxu0 0
      %2068 = vmatpush2.bf16.xpose.msra.mxu0 0
      %2069 = vmatprep.subr.bf16.mxu0 0
      %2070 = vmatpush2.bf16.xpose.msra.mxu0 0
      %2071 = vmatprep.subr.bf16.mxu0 0
      %2072 = vmatpush2.bf16.xpose.msra.mxu0 0
      %2073 = vmatprep.subr.bf16.mxu0 0
      %2074 = vmatpush2.bf16.xpose.msra.mxu0 0
      %2075 = vmatprep.mubr.bf16.mxu0 0
      %2076 = vmatmul.mubr.bf16.gmra.mxu0 %v2020
      %v2077 = vpop.f32.mrf.mxu0
      %v2078 = vadd.f32 0.0, %v2077
      %v2079 = vpop.f32.mrf.mxu0
      %v2080 = vpop.f32.mrf.mxu0
      %v2081 = vadd.f32 0.0, %v2080
      %v2082 = vpop.f32.mrf.mxu0
      %2083 = vmatprep.mubr.bf16.mxu0 0
      %2084 = vmatmul.mubr.bf16.gmra.mxu0 %v2023
      %v2085 = vpop.f32.mrf.mxu0
      %v2086 = vadd.f32 0.0, %v2085
      %v2087 = vpop.f32.mrf.mxu0
      %v2088 = vpop.f32.mrf.mxu0
      %v2089 = vadd.f32 0.0, %v2088
      %v2090 = vpop.f32.mrf.mxu0
      %2091 = vmatprep.mubr.bf16.mxu0 0
      %2092 = vmatmul.mubr.bf16.gmra.mxu0 %v2026
      %v2093 = vpop.f32.mrf.mxu0
      %v2094 = vadd.f32 0.0, %v2093
      %v2095 = vpop.f32.mrf.mxu0
      %v2096 = vpop.f32.mrf.mxu0
      %v2097 = vadd.f32 0.0, %v2096
      %v2098 = vpop.f32.mrf.mxu0
      %2099 = vmatprep.mubr.bf16.mxu0 0
      %2100 = vmatmul.mubr.bf16.gmra.mxu0 %v2029
      %v2101 = vpop.f32.mrf.mxu0
      %v2102 = vadd.f32 0.0, %v2101
      %v2103 = vpop.f32.mrf.mxu0
      %v2104 = vpop.f32.mrf.mxu0
      %v2105 = vadd.f32 0.0, %v2104
      %v2106 = vpop.f32.mrf.mxu0
      %2107 = vdwg.mxu0
      %2108 = vst.msk [vmem:[#allocation6] sm:$0xff] %vm1173, %v2078
      %2109 = vst.msk [vmem:[#allocation6 + $0x8] sm:$0xff] %vm1173, %v2081
      %2110 = vst.msk [vmem:[#allocation6 + $0x10] sm:$0xff] %vm1173, %v2086
      %2111 = vst.msk [vmem:[#allocation6 + $0x18] sm:$0xff] %vm1173, %v2089
      %2112 = vst.msk [vmem:[#allocation6 + $0x20] sm:$0xff] %vm1173, %v2094
      %2113 = vst.msk [vmem:[#allocation6 + $0x28] sm:$0xff] %vm1173, %v2097
      %2114 = vst.msk [vmem:[#allocation6 + $0x30] sm:$0xff] %vm1173, %v2102
      %2115 = vst.msk [vmem:[#allocation6 + $0x38] sm:$0xff] %vm1173, %v2105
      %v2116 = vld [vmem:[#allocation6] sm:$0xff]
      %v2117 = vld [vmem:[#allocation6 + $0x8] sm:$0xff]
      %v2118 = vld [vmem:[#allocation6 + $0x10] sm:$0xff]
      %v2119 = vld [vmem:[#allocation6 + $0x18] sm:$0xff]
      %v2120 = vld [vmem:[#allocation6 + $0x20] sm:$0xff]
      %v2121 = vld [vmem:[#allocation6 + $0x28] sm:$0xff]
      %v2122 = vld [vmem:[#allocation6 + $0x30] sm:$0xff]
      %v2123 = vld [vmem:[#allocation6 + $0x38] sm:$0xff]
      %v2124 = vsel %vm1173, %v2116, -inf
      %2125 = vmax.xlane.f32.xlu0 %v2124
      %v2126 = vpop.xlane.xlu0 %2125
      %v2127 = vsel %vm1173, %v2117, -inf
      %2128 = vmax.xlane.f32.xlu0 %v2127
      %v2129 = vpop.xlane.xlu0 %2128
      %v2130 = vsel %vm1173, %v2118, -inf
      %2131 = vmax.xlane.f32.xlu0 %v2130
      %v2132 = vpop.xlane.xlu0 %2131
      %v2133 = vsel %vm1173, %v2119, -inf
      %2134 = vmax.xlane.f32.xlu0 %v2133
      %v2135 = vpop.xlane.xlu0 %2134
      %v2136 = vsel %vm1173, %v2120, -inf
      %2137 = vmax.xlane.f32.xlu0 %v2136
      %v2138 = vpop.xlane.xlu0 %2137
      %v2139 = vsel %vm1173, %v2121, -inf
      %2140 = vmax.xlane.f32.xlu0 %v2139
      %v2141 = vpop.xlane.xlu0 %2140
      %v2142 = vsel %vm1173, %v2122, -inf
      %2143 = vmax.xlane.f32.xlu0 %v2142
      %v2144 = vpop.xlane.xlu0 %2143
      %v2145 = vsel %vm1173, %v2123, -inf
      %2146 = vmax.xlane.f32.xlu0 %v2145
      %v2147 = vpop.xlane.xlu0 %2146
      %v2148 = vsub.f32 %v2116, %v2126
      %v2149 = vsub.f32 %v2117, %v2129
      %v2150 = vsub.f32 %v2118, %v2132
      %v2151 = vsub.f32 %v2119, %v2135
      %v2152 = vsub.f32 %v2120, %v2138
      %v2153 = vsub.f32 %v2121, %v2141
      %v2154 = vsub.f32 %v2122, %v2144
      %v2155 = vsub.f32 %v2123, %v2147
      %v2156 = vmul.f32 %v2148, 1.442695
      %v2157 = vpow.pop %v2156
      %v2158 = vmul.f32 %v2149, 1.442695
      %v2159 = vpow.pop %v2158
      %v2160 = vmul.f32 %v2150, 1.442695
      %v2161 = vpow.pop %v2160
      %v2162 = vmul.f32 %v2151, 1.442695
      %v2163 = vpow.pop %v2162
      %v2164 = vmul.f32 %v2152, 1.442695
      %v2165 = vpow.pop %v2164
      %v2166 = vmul.f32 %v2153, 1.442695
      %v2167 = vpow.pop %v2166
      %v2168 = vmul.f32 %v2154, 1.442695
      %v2169 = vpow.pop %v2168
      %v2170 = vmul.f32 %v2155, 1.442695
      %v2171 = vpow.pop %v2170
      %v2172 = vpack.c.bf16 %v2159, %v2157
      %v2173 = vpack.c.bf16 %v2163, %v2161
      %v2174 = vpack.c.bf16 %v2167, %v2165
      %v2175 = vpack.c.bf16 %v2171, %v2169
      %v2180 = vunpack.c.l.b16 %v2172
      %v2181 = vunpack.c.h.b16 %v2172
      %v2182 = vunpack.c.l.b16 %v2173
      %v2183 = vunpack.c.h.b16 %v2173
      %v2184 = vunpack.c.l.b16 %v2174
      %v2185 = vunpack.c.h.b16 %v2174
      %v2186 = vunpack.c.l.b16 %v2175
      %v2187 = vunpack.c.h.b16 %v2175
      %v2188 = vpack.c.b16 %v2180, %v2180
      %v2189 = vpack.c.b16 %v2181, %v2181
      %v2190 = vpack.c.b16 %v2182, %v2182
      %v2191 = vpack.c.b16 %v2183, %v2183
      %v2192 = vpack.c.b16 %v2184, %v2184
      %v2193 = vpack.c.b16 %v2185, %v2185
      %v2194 = vpack.c.b16 %v2186, %v2186
      %v2195 = vpack.c.b16 %v2187, %v2187
      %2204 = vst.msk [vmem:[#allocation7] sm:$0xf] %vm1270, %v2188
      %2205 = vst.msk [vmem:[#allocation7 + $0x4] sm:$0xf] %vm1270, %v2189
      %2206 = vst.msk [vmem:[#allocation7 + $0x8] sm:$0xf] %vm1270, %v2190
      %2207 = vst.msk [vmem:[#allocation7 + $0xc] sm:$0xf] %vm1270, %v2191
      %2208 = vst.msk [vmem:[#allocation7 + $0x10] sm:$0xf] %vm1270, %v2192
      %2209 = vst.msk [vmem:[#allocation7 + $0x14] sm:$0xf] %vm1270, %v2193
      %2210 = vst.msk [vmem:[#allocation7 + $0x18] sm:$0xf] %vm1270, %v2194
      %2211 = vst.msk [vmem:[#allocation7 + $0x1c] sm:$0xf] %vm1270, %v2195
      %v2212 = vld [vmem:[#allocation7] sm:$0xf]
      %v2213 = vld [vmem:[#allocation7 + $0x4] sm:$0xf]
      %v2214 = vld [vmem:[#allocation7 + $0x8] sm:$0xf]
      %v2215 = vld [vmem:[#allocation7 + $0xc] sm:$0xf]
      %v2216 = vld [vmem:[#allocation7 + $0x10] sm:$0xf]
      %v2217 = vld [vmem:[#allocation7 + $0x14] sm:$0xf]
      %v2218 = vld [vmem:[#allocation7 + $0x18] sm:$0xf]
      %v2219 = vld [vmem:[#allocation7 + $0x1c] sm:$0xf]
      %v2220 = vunpack.c.l.bf16 %v2212
      %v2221 = vunpack.c.l.bf16 %v2213
      %v2222 = vunpack.c.l.bf16 %v2214
      %v2223 = vunpack.c.l.bf16 %v2215
      %v2224 = vunpack.c.l.bf16 %v2216
      %v2225 = vunpack.c.l.bf16 %v2217
      %v2226 = vunpack.c.l.bf16 %v2218
      %v2227 = vunpack.c.l.bf16 %v2219
      %v2228 = vsel %vm1173, %v2220, 0.0
      %2229 = vadd.xlane.f32.xlu0 %v2228
      %v2230 = vpop.xlane.xlu0 %2229
      %v2231 = vsel %vm1173, %v2221, 0.0
      %2232 = vadd.xlane.f32.xlu0 %v2231
      %v2233 = vpop.xlane.xlu0 %2232
      %v2234 = vsel %vm1173, %v2222, 0.0
      %2235 = vadd.xlane.f32.xlu0 %v2234
      %v2236 = vpop.xlane.xlu0 %2235
      %v2237 = vsel %vm1173, %v2223, 0.0
      %2238 = vadd.xlane.f32.xlu0 %v2237
      %v2239 = vpop.xlane.xlu0 %2238
      %v2240 = vsel %vm1173, %v2224, 0.0
      %2241 = vadd.xlane.f32.xlu0 %v2240
      %v2242 = vpop.xlane.xlu0 %2241
      %v2243 = vsel %vm1173, %v2225, 0.0
      %2244 = vadd.xlane.f32.xlu0 %v2243
      %v2245 = vpop.xlane.xlu0 %2244
      %v2246 = vsel %vm1173, %v2226, 0.0
      %2247 = vadd.xlane.f32.xlu0 %v2246
      %v2248 = vpop.xlane.xlu0 %2247
      %v2249 = vsel %vm1173, %v2227, 0.0
      %2250 = vadd.xlane.f32.xlu0 %v2249
      %v2251 = vpop.xlane.xlu0 %2250
      %s2252 = scalar_lea.vmem [#allocation4], 64
      %v2253 = vld [vmem:[%s2252] sm:$0xf]
      %v2254 = vld [vmem:[%s2252 + $0x4] sm:$0xf]
      %v2255 = vld [vmem:[%s2252 + $0x8] sm:$0xf]
      %v2256 = vld [vmem:[%s2252 + $0xc] sm:$0xf]
      %v2257 = vld [vmem:[%s2252 + $0x10] sm:$0xf]
      %v2258 = vld [vmem:[%s2252 + $0x14] sm:$0xf]
      %v2259 = vld [vmem:[%s2252 + $0x18] sm:$0xf]
      %v2260 = vld [vmem:[%s2252 + $0x1c] sm:$0xf]
      %v2269 = vunpack.c.l.b16 %v2212
      %v2270 = vunpack.c.l.b16 %v2213
      %v2271 = vunpack.c.l.b16 %v2214
      %v2272 = vunpack.c.l.b16 %v2215
      %v2273 = vunpack.c.l.b16 %v2216
      %v2274 = vunpack.c.l.b16 %v2217
      %v2275 = vunpack.c.l.b16 %v2218
      %v2276 = vunpack.c.l.b16 %v2219
      %v2277 = vpack.c.b16 %v2270, %v2269
      %v2278 = vpack.c.b16 %v2272, %v2271
      %v2279 = vpack.c.b16 %v2274, %v2273
      %v2280 = vpack.c.b16 %v2276, %v2275
      %v2289 = vunpack.c.l.b16 %v2253
      %v2290 = vunpack.c.l.b16 %v2254
      %v2291 = vunpack.c.l.b16 %v2255
      %v2292 = vunpack.c.l.b16 %v2256
      %v2293 = vunpack.c.l.b16 %v2257
      %v2294 = vunpack.c.l.b16 %v2258
      %v2295 = vunpack.c.l.b16 %v2259
      %v2296 = vunpack.c.l.b16 %v2260
      %v2297 = vpack.c.b16 %v2290, %v2289
      %v2298 = vpack.c.b16 %v2292, %v2291
      %v2299 = vpack.c.b16 %v2294, %v2293
      %v2300 = vpack.c.b16 %v2296, %v2295
      %v2306 = vsel %vm1173, %v2277, 0
      %v2309 = vsel %vm1173, %v2278, 0
      %v2312 = vsel %vm1173, %v2279, 0
      %v2315 = vsel %vm1173, %v2280, 0
      %2317 = vmatprep.subr.bf16.mxu0 0
      %2318 = vmatpush1.bf16.msra.mxu0 0
      %2319 = vmatprep.subr.bf16.mxu0 0
      %2320 = vmatpush1.bf16.msra.mxu0 0
      %2321 = vmatprep.subr.bf16.mxu0 0
      %2322 = vmatpush1.bf16.msra.mxu0 0
      %2323 = vmatprep.subr.bf16.mxu0 0
      %2324 = vmatpush1.bf16.msra.mxu0 0
      %2325 = vmatprep.subr.bf16.mxu0 0
      %2326 = vmatpush1.bf16.msra.mxu0 %v2300
      %2327 = vmatprep.subr.bf16.mxu0 0
      %2328 = vmatpush1.bf16.msra.mxu0 %v2299
      %2329 = vmatprep.subr.bf16.mxu0 0
      %2330 = vmatpush1.bf16.msra.mxu0 %v2298
      %2331 = vmatprep.subr.bf16.mxu0 0
      %2332 = vmatpush1.bf16.msra.mxu0 %v2297
      %2333 = vmatprep.subr.bf16.mxu0 0
      %2334 = vmatpush2.bf16.msra.mxu0 0
      %2335 = vmatprep.subr.bf16.mxu0 0
      %2336 = vmatpush2.bf16.msra.mxu0 0
      %2337 = vmatprep.subr.bf16.mxu0 0
      %2338 = vmatpush2.bf16.msra.mxu0 0
      %2339 = vmatprep.subr.bf16.mxu0 0
      %2340 = vmatpush2.bf16.msra.mxu0 0
      %2341 = vmatprep.subr.bf16.mxu0 0
      %2342 = vmatpush2.bf16.msra.mxu0 0
      %2343 = vmatprep.subr.bf16.mxu0 0
      %2344 = vmatpush2.bf16.msra.mxu0 0
      %2345 = vmatprep.subr.bf16.mxu0 0
      %2346 = vmatpush2.bf16.msra.mxu0 0
      %2347 = vmatprep.subr.bf16.mxu0 0
      %2348 = vmatpush2.bf16.msra.mxu0 0
      %2349 = vmatprep.mubr.bf16.mxu0 0
      %2350 = vmatmul.mubr.bf16.gmra.mxu0 %v2306
      %v2351 = vpop.f32.mrf.mxu0
      %v2352 = vadd.f32 0.0, %v2351
      %v2353 = vpop.f32.mrf.mxu0
      %v2354 = vpop.f32.mrf.mxu0
      %v2355 = vadd.f32 0.0, %v2354
      %v2356 = vpop.f32.mrf.mxu0
      %2357 = vmatprep.mubr.bf16.mxu0 0
      %2358 = vmatmul.mubr.bf16.gmra.mxu0 %v2309
      %v2359 = vpop.f32.mrf.mxu0
      %v2360 = vadd.f32 0.0, %v2359
      %v2361 = vpop.f32.mrf.mxu0
      %v2362 = vpop.f32.mrf.mxu0
      %v2363 = vadd.f32 0.0, %v2362
      %v2364 = vpop.f32.mrf.mxu0
      %2365 = vmatprep.mubr.bf16.mxu0 0
      %2366 = vmatmul.mubr.bf16.gmra.mxu0 %v2312
      %v2367 = vpop.f32.mrf.mxu0
      %v2368 = vadd.f32 0.0, %v2367
      %v2369 = vpop.f32.mrf.mxu0
      %v2370 = vpop.f32.mrf.mxu0
      %v2371 = vadd.f32 0.0, %v2370
      %v2372 = vpop.f32.mrf.mxu0
      %2373 = vmatprep.mubr.bf16.mxu0 0
      %2374 = vmatmul.mubr.bf16.gmra.mxu0 %v2315
      %v2375 = vpop.f32.mrf.mxu0
      %v2376 = vadd.f32 0.0, %v2375
      %v2377 = vpop.f32.mrf.mxu0
      %v2378 = vpop.f32.mrf.mxu0
      %v2379 = vadd.f32 0.0, %v2378
      %v2380 = vpop.f32.mrf.mxu0
      %2381 = vdwg.mxu0
      %v2382 = vrcp.pop %v2230
      %v2383 = vrcp.pop %v2233
      %v2384 = vrcp.pop %v2236
      %v2385 = vrcp.pop %v2239
      %v2386 = vrcp.pop %v2242
      %v2387 = vrcp.pop %v2245
      %v2388 = vrcp.pop %v2248
      %v2389 = vrcp.pop %v2251
      %v2390 = vmul.f32 %v2352, %v2382
      %v2391 = vmul.f32 %v2355, %v2383
      %v2392 = vmul.f32 %v2360, %v2384
      %v2393 = vmul.f32 %v2363, %v2385
      %v2394 = vmul.f32 %v2368, %v2386
      %v2395 = vmul.f32 %v2371, %v2387
      %v2396 = vmul.f32 %v2376, %v2388
      %v2397 = vmul.f32 %v2379, %v2389
      %v2398 = vpack.c.bf16 %v2391, %v2390
      %v2399 = vpack.c.bf16 %v2393, %v2392
      %v2400 = vpack.c.bf16 %v2395, %v2394
      %v2401 = vpack.c.bf16 %v2397, %v2396
      %v2406 = vunpack.c.l.b16 %v2398
      %v2407 = vunpack.c.h.b16 %v2398
      %v2408 = vunpack.c.l.b16 %v2399
      %v2409 = vunpack.c.h.b16 %v2399
      %v2410 = vunpack.c.l.b16 %v2400
      %v2411 = vunpack.c.h.b16 %v2400
      %v2412 = vunpack.c.l.b16 %v2401
      %v2413 = vunpack.c.h.b16 %v2401
      %v2414 = vpack.c.b16 %v2406, %v2406
      %v2415 = vpack.c.b16 %v2407, %v2407
      %v2416 = vpack.c.b16 %v2408, %v2408
      %v2417 = vpack.c.b16 %v2409, %v2409
      %v2418 = vpack.c.b16 %v2410, %v2410
      %v2419 = vpack.c.b16 %v2411, %v2411
      %v2420 = vpack.c.b16 %v2412, %v2412
      %v2421 = vpack.c.b16 %v2413, %v2413
      %2422 = vrot.lane.b32.xlu0 %v2414, 16
      %v2423 = vpop.permute.xlu0 %2422
      %2424 = vrot.lane.b32.xlu0 %v2415, 16
      %v2425 = vpop.permute.xlu0 %2424
      %2426 = vrot.lane.b32.xlu0 %v2416, 16
      %v2427 = vpop.permute.xlu0 %2426
      %2428 = vrot.lane.b32.xlu0 %v2417, 16
      %v2429 = vpop.permute.xlu0 %2428
      %2430 = vrot.lane.b32.xlu0 %v2418, 16
      %v2431 = vpop.permute.xlu0 %2430
      %2432 = vrot.lane.b32.xlu0 %v2419, 16
      %v2433 = vpop.permute.xlu0 %2432
      %2434 = vrot.lane.b32.xlu0 %v2420, 16
      %v2435 = vpop.permute.xlu0 %2434
      %2436 = vrot.lane.b32.xlu0 %v2421, 16
      %v2437 = vpop.permute.xlu0 %2436
      %vm2446 = vcmask 191616
      %2447 = vst.msk [vmem:[#allocation5] sm:$0xf] %vm2446, %v2423
      %2448 = vst.msk [vmem:[#allocation5 + $0x4] sm:$0xf] %vm2446, %v2425
      %2449 = vst.msk [vmem:[#allocation5 + $0x8] sm:$0xf] %vm2446, %v2427
      %2450 = vst.msk [vmem:[#allocation5 + $0xc] sm:$0xf] %vm2446, %v2429
      %2451 = vst.msk [vmem:[#allocation5 + $0x10] sm:$0xf] %vm2446, %v2431
      %2452 = vst.msk [vmem:[#allocation5 + $0x14] sm:$0xf] %vm2446, %v2433
      %2453 = vst.msk [vmem:[#allocation5 + $0x18] sm:$0xf] %vm2446, %v2435
      %2454 = vst.msk [vmem:[#allocation5 + $0x1c] sm:$0xf] %vm2446, %v2437
      %s2455 = scalar_lea.vmem [#allocation3], 96
      %v2456 = vld [vmem:[%s2455] sm:$0xf]
      %v2457 = vld [vmem:[%s2455 + $0x4] sm:$0xf]
      %v2458 = vld [vmem:[%s2455 + $0x8] sm:$0xf]
      %v2459 = vld [vmem:[%s2455 + $0xc] sm:$0xf]
      %v2460 = vld [vmem:[%s2455 + $0x10] sm:$0xf]
      %v2461 = vld [vmem:[%s2455 + $0x14] sm:$0xf]
      %v2462 = vld [vmem:[%s2455 + $0x18] sm:$0xf]
      %v2463 = vld [vmem:[%s2455 + $0x1c] sm:$0xf]
      %2464 = vrot.lane.b32.xlu0 %v1051, 104
      %v2465 = vpop.permute.xlu0 %2464
      %2466 = vrot.lane.b32.xlu0 %v1052, 104
      %v2467 = vpop.permute.xlu0 %2466
      %2468 = vrot.lane.b32.xlu0 %v1053, 104
      %v2469 = vpop.permute.xlu0 %2468
      %2470 = vrot.lane.b32.xlu0 %v1054, 104
      %v2471 = vpop.permute.xlu0 %2470
      %v2480 = vunpack.c.l.b16 %v2456
      %v2481 = vunpack.c.l.b16 %v2457
      %v2482 = vunpack.c.l.b16 %v2458
      %v2483 = vunpack.c.l.b16 %v2459
      %v2484 = vunpack.c.l.b16 %v2460
      %v2485 = vunpack.c.l.b16 %v2461
      %v2486 = vunpack.c.l.b16 %v2462
      %v2487 = vunpack.c.l.b16 %v2463
      %v2488 = vpack.c.b16 %v2481, %v2480
      %v2489 = vpack.c.b16 %v2483, %v2482
      %v2490 = vpack.c.b16 %v2485, %v2484
      %v2491 = vpack.c.b16 %v2487, %v2486
      %v2493 = vsel %vm1083, %v2465, 0
      %v2496 = vsel %vm1083, %v2467, 0
      %v2499 = vsel %vm1083, %v2469, 0
      %v2502 = vsel %vm1083, %v2471, 0
      %v2505 = vsel %vm1083, %v2488, 0
      %v2508 = vsel %vm1083, %v2489, 0
      %v2511 = vsel %vm1083, %v2490, 0
      %v2514 = vsel %vm1083, %v2491, 0
      %2516 = vmatprep.subr.bf16.mxu0 0
      %2517 = vmatpush1.bf16.xpose.msra.mxu0 0
      %2518 = vmatprep.subr.bf16.mxu0 0
      %2519 = vmatpush1.bf16.xpose.msra.mxu0 0
      %2520 = vmatprep.subr.bf16.mxu0 0
      %2521 = vmatpush1.bf16.xpose.msra.mxu0 0
      %2522 = vmatprep.subr.bf16.mxu0 0
      %2523 = vmatpush1.bf16.xpose.msra.mxu0 0
      %2524 = vmatprep.subr.bf16.mxu0 0
      %2525 = vmatpush1.bf16.xpose.msra.mxu0 %v2514
      %2526 = vmatprep.subr.bf16.mxu0 0
      %2527 = vmatpush1.bf16.xpose.msra.mxu0 %v2511
      %2528 = vmatprep.subr.bf16.mxu0 0
      %2529 = vmatpush1.bf16.xpose.msra.mxu0 %v2508
      %2530 = vmatprep.subr.bf16.mxu0 0
      %2531 = vmatpush1.bf16.xpose.msra.mxu0 %v2505
      %2532 = vmatprep.subr.bf16.mxu0 0
      %2533 = vmatpush2.bf16.xpose.msra.mxu0 0
      %2534 = vmatprep.subr.bf16.mxu0 0
      %2535 = vmatpush2.bf16.xpose.msra.mxu0 0
      %2536 = vmatprep.subr.bf16.mxu0 0
      %2537 = vmatpush2.bf16.xpose.msra.mxu0 0
      %2538 = vmatprep.subr.bf16.mxu0 0
      %2539 = vmatpush2.bf16.xpose.msra.mxu0 0
      %2540 = vmatprep.subr.bf16.mxu0 0
      %2541 = vmatpush2.bf16.xpose.msra.mxu0 0
      %2542 = vmatprep.subr.bf16.mxu0 0
      %2543 = vmatpush2.bf16.xpose.msra.mxu0 0
      %2544 = vmatprep.subr.bf16.mxu0 0
      %2545 = vmatpush2.bf16.xpose.msra.mxu0 0
      %2546 = vmatprep.subr.bf16.mxu0 0
      %2547 = vmatpush2.bf16.xpose.msra.mxu0 0
      %2548 = vmatprep.mubr.bf16.mxu0 0
      %2549 = vmatmul.mubr.bf16.gmra.mxu0 %v2493
      %v2550 = vpop.f32.mrf.mxu0
      %v2551 = vadd.f32 0.0, %v2550
      %v2552 = vpop.f32.mrf.mxu0
      %v2553 = vpop.f32.mrf.mxu0
      %v2554 = vadd.f32 0.0, %v2553
      %v2555 = vpop.f32.mrf.mxu0
      %2556 = vmatprep.mubr.bf16.mxu0 0
      %2557 = vmatmul.mubr.bf16.gmra.mxu0 %v2496
      %v2558 = vpop.f32.mrf.mxu0
      %v2559 = vadd.f32 0.0, %v2558
      %v2560 = vpop.f32.mrf.mxu0
      %v2561 = vpop.f32.mrf.mxu0
      %v2562 = vadd.f32 0.0, %v2561
      %v2563 = vpop.f32.mrf.mxu0
      %2564 = vmatprep.mubr.bf16.mxu0 0
      %2565 = vmatmul.mubr.bf16.gmra.mxu0 %v2499
      %v2566 = vpop.f32.mrf.mxu0
      %v2567 = vadd.f32 0.0, %v2566
      %v2568 = vpop.f32.mrf.mxu0
      %v2569 = vpop.f32.mrf.mxu0
      %v2570 = vadd.f32 0.0, %v2569
      %v2571 = vpop.f32.mrf.mxu0
      %2572 = vmatprep.mubr.bf16.mxu0 0
      %2573 = vmatmul.mubr.bf16.gmra.mxu0 %v2502
      %v2574 = vpop.f32.mrf.mxu0
      %v2575 = vadd.f32 0.0, %v2574
      %v2576 = vpop.f32.mrf.mxu0
      %v2577 = vpop.f32.mrf.mxu0
      %v2578 = vadd.f32 0.0, %v2577
      %v2579 = vpop.f32.mrf.mxu0
      %2580 = vdwg.mxu0
      %2581 = vst.msk [vmem:[#allocation6] sm:$0xff] %vm1173, %v2551
      %2582 = vst.msk [vmem:[#allocation6 + $0x8] sm:$0xff] %vm1173, %v2554
      %2583 = vst.msk [vmem:[#allocation6 + $0x10] sm:$0xff] %vm1173, %v2559
      %2584 = vst.msk [vmem:[#allocation6 + $0x18] sm:$0xff] %vm1173, %v2562
      %2585 = vst.msk [vmem:[#allocation6 + $0x20] sm:$0xff] %vm1173, %v2567
      %2586 = vst.msk [vmem:[#allocation6 + $0x28] sm:$0xff] %vm1173, %v2570
      %2587 = vst.msk [vmem:[#allocation6 + $0x30] sm:$0xff] %vm1173, %v2575
      %2588 = vst.msk [vmem:[#allocation6 + $0x38] sm:$0xff] %vm1173, %v2578
      %v2589 = vld [vmem:[#allocation6] sm:$0xff]
      %v2590 = vld [vmem:[#allocation6 + $0x8] sm:$0xff]
      %v2591 = vld [vmem:[#allocation6 + $0x10] sm:$0xff]
      %v2592 = vld [vmem:[#allocation6 + $0x18] sm:$0xff]
      %v2593 = vld [vmem:[#allocation6 + $0x20] sm:$0xff]
      %v2594 = vld [vmem:[#allocation6 + $0x28] sm:$0xff]
      %v2595 = vld [vmem:[#allocation6 + $0x30] sm:$0xff]
      %v2596 = vld [vmem:[#allocation6 + $0x38] sm:$0xff]
      %v2597 = vsel %vm1173, %v2589, -inf
      %2598 = vmax.xlane.f32.xlu0 %v2597
      %v2599 = vpop.xlane.xlu0 %2598
      %v2600 = vsel %vm1173, %v2590, -inf
      %2601 = vmax.xlane.f32.xlu0 %v2600
      %v2602 = vpop.xlane.xlu0 %2601
      %v2603 = vsel %vm1173, %v2591, -inf
      %2604 = vmax.xlane.f32.xlu0 %v2603
      %v2605 = vpop.xlane.xlu0 %2604
      %v2606 = vsel %vm1173, %v2592, -inf
      %2607 = vmax.xlane.f32.xlu0 %v2606
      %v2608 = vpop.xlane.xlu0 %2607
      %v2609 = vsel %vm1173, %v2593, -inf
      %2610 = vmax.xlane.f32.xlu0 %v2609
      %v2611 = vpop.xlane.xlu0 %2610
      %v2612 = vsel %vm1173, %v2594, -inf
      %2613 = vmax.xlane.f32.xlu0 %v2612
      %v2614 = vpop.xlane.xlu0 %2613
      %v2615 = vsel %vm1173, %v2595, -inf
      %2616 = vmax.xlane.f32.xlu0 %v2615
      %v2617 = vpop.xlane.xlu0 %2616
      %v2618 = vsel %vm1173, %v2596, -inf
      %2619 = vmax.xlane.f32.xlu0 %v2618
      %v2620 = vpop.xlane.xlu0 %2619
      %v2621 = vsub.f32 %v2589, %v2599
      %v2622 = vsub.f32 %v2590, %v2602
      %v2623 = vsub.f32 %v2591, %v2605
      %v2624 = vsub.f32 %v2592, %v2608
      %v2625 = vsub.f32 %v2593, %v2611
      %v2626 = vsub.f32 %v2594, %v2614
      %v2627 = vsub.f32 %v2595, %v2617
      %v2628 = vsub.f32 %v2596, %v2620
      %v2629 = vmul.f32 %v2621, 1.442695
      %v2630 = vpow.pop %v2629
      %v2631 = vmul.f32 %v2622, 1.442695
      %v2632 = vpow.pop %v2631
      %v2633 = vmul.f32 %v2623, 1.442695
      %v2634 = vpow.pop %v2633
      %v2635 = vmul.f32 %v2624, 1.442695
      %v2636 = vpow.pop %v2635
      %v2637 = vmul.f32 %v2625, 1.442695
      %v2638 = vpow.pop %v2637
      %v2639 = vmul.f32 %v2626, 1.442695
      %v2640 = vpow.pop %v2639
      %v2641 = vmul.f32 %v2627, 1.442695
      %v2642 = vpow.pop %v2641
      %v2643 = vmul.f32 %v2628, 1.442695
      %v2644 = vpow.pop %v2643
      %v2645 = vpack.c.bf16 %v2632, %v2630
      %v2646 = vpack.c.bf16 %v2636, %v2634
      %v2647 = vpack.c.bf16 %v2640, %v2638
      %v2648 = vpack.c.bf16 %v2644, %v2642
      %v2653 = vunpack.c.l.b16 %v2645
      %v2654 = vunpack.c.h.b16 %v2645
      %v2655 = vunpack.c.l.b16 %v2646
      %v2656 = vunpack.c.h.b16 %v2646
      %v2657 = vunpack.c.l.b16 %v2647
      %v2658 = vunpack.c.h.b16 %v2647
      %v2659 = vunpack.c.l.b16 %v2648
      %v2660 = vunpack.c.h.b16 %v2648
      %v2661 = vpack.c.b16 %v2653, %v2653
      %v2662 = vpack.c.b16 %v2654, %v2654
      %v2663 = vpack.c.b16 %v2655, %v2655
      %v2664 = vpack.c.b16 %v2656, %v2656
      %v2665 = vpack.c.b16 %v2657, %v2657
      %v2666 = vpack.c.b16 %v2658, %v2658
      %v2667 = vpack.c.b16 %v2659, %v2659
      %v2668 = vpack.c.b16 %v2660, %v2660
      %2677 = vst.msk [vmem:[#allocation7] sm:$0xf] %vm1270, %v2661
      %2678 = vst.msk [vmem:[#allocation7 + $0x4] sm:$0xf] %vm1270, %v2662
      %2679 = vst.msk [vmem:[#allocation7 + $0x8] sm:$0xf] %vm1270, %v2663
      %2680 = vst.msk [vmem:[#allocation7 + $0xc] sm:$0xf] %vm1270, %v2664
      %2681 = vst.msk [vmem:[#allocation7 + $0x10] sm:$0xf] %vm1270, %v2665
      %2682 = vst.msk [vmem:[#allocation7 + $0x14] sm:$0xf] %vm1270, %v2666
      %2683 = vst.msk [vmem:[#allocation7 + $0x18] sm:$0xf] %vm1270, %v2667
      %2684 = vst.msk [vmem:[#allocation7 + $0x1c] sm:$0xf] %vm1270, %v2668
      %v2685 = vld [vmem:[#allocation7] sm:$0xf]
      %v2686 = vld [vmem:[#allocation7 + $0x4] sm:$0xf]
      %v2687 = vld [vmem:[#allocation7 + $0x8] sm:$0xf]
      %v2688 = vld [vmem:[#allocation7 + $0xc] sm:$0xf]
      %v2689 = vld [vmem:[#allocation7 + $0x10] sm:$0xf]
      %v2690 = vld [vmem:[#allocation7 + $0x14] sm:$0xf]
      %v2691 = vld [vmem:[#allocation7 + $0x18] sm:$0xf]
      %v2692 = vld [vmem:[#allocation7 + $0x1c] sm:$0xf]
      %v2693 = vunpack.c.l.bf16 %v2685
      %v2694 = vunpack.c.l.bf16 %v2686
      %v2695 = vunpack.c.l.bf16 %v2687
      %v2696 = vunpack.c.l.bf16 %v2688
      %v2697 = vunpack.c.l.bf16 %v2689
      %v2698 = vunpack.c.l.bf16 %v2690
      %v2699 = vunpack.c.l.bf16 %v2691
      %v2700 = vunpack.c.l.bf16 %v2692
      %v2701 = vsel %vm1173, %v2693, 0.0
      %2702 = vadd.xlane.f32.xlu0 %v2701
      %v2703 = vpop.xlane.xlu0 %2702
      %v2704 = vsel %vm1173, %v2694, 0.0
      %2705 = vadd.xlane.f32.xlu0 %v2704
      %v2706 = vpop.xlane.xlu0 %2705
      %v2707 = vsel %vm1173, %v2695, 0.0
      %2708 = vadd.xlane.f32.xlu0 %v2707
      %v2709 = vpop.xlane.xlu0 %2708
      %v2710 = vsel %vm1173, %v2696, 0.0
      %2711 = vadd.xlane.f32.xlu0 %v2710
      %v2712 = vpop.xlane.xlu0 %2711
      %v2713 = vsel %vm1173, %v2697, 0.0
      %2714 = vadd.xlane.f32.xlu0 %v2713
      %v2715 = vpop.xlane.xlu0 %2714
      %v2716 = vsel %vm1173, %v2698, 0.0
      %2717 = vadd.xlane.f32.xlu0 %v2716
      %v2718 = vpop.xlane.xlu0 %2717
      %v2719 = vsel %vm1173, %v2699, 0.0
      %2720 = vadd.xlane.f32.xlu0 %v2719
      %v2721 = vpop.xlane.xlu0 %2720
      %v2722 = vsel %vm1173, %v2700, 0.0
      %2723 = vadd.xlane.f32.xlu0 %v2722
      %v2724 = vpop.xlane.xlu0 %2723
      %s2725 = scalar_lea.vmem [#allocation4], 96
      %v2726 = vld [vmem:[%s2725] sm:$0xf]
      %v2727 = vld [vmem:[%s2725 + $0x4] sm:$0xf]
      %v2728 = vld [vmem:[%s2725 + $0x8] sm:$0xf]
      %v2729 = vld [vmem:[%s2725 + $0xc] sm:$0xf]
      %v2730 = vld [vmem:[%s2725 + $0x10] sm:$0xf]
      %v2731 = vld [vmem:[%s2725 + $0x14] sm:$0xf]
      %v2732 = vld [vmem:[%s2725 + $0x18] sm:$0xf]
      %v2733 = vld [vmem:[%s2725 + $0x1c] sm:$0xf]
      %v2742 = vunpack.c.l.b16 %v2685
      %v2743 = vunpack.c.l.b16 %v2686
      %v2744 = vunpack.c.l.b16 %v2687
      %v2745 = vunpack.c.l.b16 %v2688
      %v2746 = vunpack.c.l.b16 %v2689
      %v2747 = vunpack.c.l.b16 %v2690
      %v2748 = vunpack.c.l.b16 %v2691
      %v2749 = vunpack.c.l.b16 %v2692
      %v2750 = vpack.c.b16 %v2743, %v2742
      %v2751 = vpack.c.b16 %v2745, %v2744
      %v2752 = vpack.c.b16 %v2747, %v2746
      %v2753 = vpack.c.b16 %v2749, %v2748
      %v2762 = vunpack.c.l.b16 %v2726
      %v2763 = vunpack.c.l.b16 %v2727
      %v2764 = vunpack.c.l.b16 %v2728
      %v2765 = vunpack.c.l.b16 %v2729
      %v2766 = vunpack.c.l.b16 %v2730
      %v2767 = vunpack.c.l.b16 %v2731
      %v2768 = vunpack.c.l.b16 %v2732
      %v2769 = vunpack.c.l.b16 %v2733
      %v2770 = vpack.c.b16 %v2763, %v2762
      %v2771 = vpack.c.b16 %v2765, %v2764
      %v2772 = vpack.c.b16 %v2767, %v2766
      %v2773 = vpack.c.b16 %v2769, %v2768
      %v2779 = vsel %vm1173, %v2750, 0
      %v2782 = vsel %vm1173, %v2751, 0
      %v2785 = vsel %vm1173, %v2752, 0
      %v2788 = vsel %vm1173, %v2753, 0
      %2790 = vmatprep.subr.bf16.mxu0 0
      %2791 = vmatpush1.bf16.msra.mxu0 0
      %2792 = vmatprep.subr.bf16.mxu0 0
      %2793 = vmatpush1.bf16.msra.mxu0 0
      %2794 = vmatprep.subr.bf16.mxu0 0
      %2795 = vmatpush1.bf16.msra.mxu0 0
      %2796 = vmatprep.subr.bf16.mxu0 0
      %2797 = vmatpush1.bf16.msra.mxu0 0
      %2798 = vmatprep.subr.bf16.mxu0 0
      %2799 = vmatpush1.bf16.msra.mxu0 %v2773
      %2800 = vmatprep.subr.bf16.mxu0 0
      %2801 = vmatpush1.bf16.msra.mxu0 %v2772
      %2802 = vmatprep.subr.bf16.mxu0 0
      %2803 = vmatpush1.bf16.msra.mxu0 %v2771
      %2804 = vmatprep.subr.bf16.mxu0 0
      %2805 = vmatpush1.bf16.msra.mxu0 %v2770
      %2806 = vmatprep.subr.bf16.mxu0 0
      %2807 = vmatpush2.bf16.msra.mxu0 0
      %2808 = vmatprep.subr.bf16.mxu0 0
      %2809 = vmatpush2.bf16.msra.mxu0 0
      %2810 = vmatprep.subr.bf16.mxu0 0
      %2811 = vmatpush2.bf16.msra.mxu0 0
      %2812 = vmatprep.subr.bf16.mxu0 0
      %2813 = vmatpush2.bf16.msra.mxu0 0
      %2814 = vmatprep.subr.bf16.mxu0 0
      %2815 = vmatpush2.bf16.msra.mxu0 0
      %2816 = vmatprep.subr.bf16.mxu0 0
      %2817 = vmatpush2.bf16.msra.mxu0 0
      %2818 = vmatprep.subr.bf16.mxu0 0
      %2819 = vmatpush2.bf16.msra.mxu0 0
      %2820 = vmatprep.subr.bf16.mxu0 0
      %2821 = vmatpush2.bf16.msra.mxu0 0
      %2822 = vmatprep.mubr.bf16.mxu0 0
      %2823 = vmatmul.mubr.bf16.gmra.mxu0 %v2779
      %v2824 = vpop.f32.mrf.mxu0
      %v2825 = vadd.f32 0.0, %v2824
      %v2826 = vpop.f32.mrf.mxu0
      %v2827 = vpop.f32.mrf.mxu0
      %v2828 = vadd.f32 0.0, %v2827
      %v2829 = vpop.f32.mrf.mxu0
      %2830 = vmatprep.mubr.bf16.mxu0 0
      %2831 = vmatmul.mubr.bf16.gmra.mxu0 %v2782
      %v2832 = vpop.f32.mrf.mxu0
      %v2833 = vadd.f32 0.0, %v2832
      %v2834 = vpop.f32.mrf.mxu0
      %v2835 = vpop.f32.mrf.mxu0
      %v2836 = vadd.f32 0.0, %v2835
      %v2837 = vpop.f32.mrf.mxu0
      %2838 = vmatprep.mubr.bf16.mxu0 0
      %2839 = vmatmul.mubr.bf16.gmra.mxu0 %v2785
      %v2840 = vpop.f32.mrf.mxu0
      %v2841 = vadd.f32 0.0, %v2840
      %v2842 = vpop.f32.mrf.mxu0
      %v2843 = vpop.f32.mrf.mxu0
      %v2844 = vadd.f32 0.0, %v2843
      %v2845 = vpop.f32.mrf.mxu0
      %2846 = vmatprep.mubr.bf16.mxu0 0
      %2847 = vmatmul.mubr.bf16.gmra.mxu0 %v2788
      %v2848 = vpop.f32.mrf.mxu0
      %v2849 = vadd.f32 0.0, %v2848
      %v2850 = vpop.f32.mrf.mxu0
      %v2851 = vpop.f32.mrf.mxu0
      %v2852 = vadd.f32 0.0, %v2851
      %v2853 = vpop.f32.mrf.mxu0
      %2854 = vdwg.mxu0
      %v2855 = vrcp.pop %v2703
      %v2856 = vrcp.pop %v2706
      %v2857 = vrcp.pop %v2709
      %v2858 = vrcp.pop %v2712
      %v2859 = vrcp.pop %v2715
      %v2860 = vrcp.pop %v2718
      %v2861 = vrcp.pop %v2721
      %v2862 = vrcp.pop %v2724
      %v2863 = vmul.f32 %v2825, %v2855
      %v2864 = vmul.f32 %v2828, %v2856
      %v2865 = vmul.f32 %v2833, %v2857
      %v2866 = vmul.f32 %v2836, %v2858
      %v2867 = vmul.f32 %v2841, %v2859
      %v2868 = vmul.f32 %v2844, %v2860
      %v2869 = vmul.f32 %v2849, %v2861
      %v2870 = vmul.f32 %v2852, %v2862
      %v2871 = vpack.c.bf16 %v2864, %v2863
      %v2872 = vpack.c.bf16 %v2866, %v2865
      %v2873 = vpack.c.bf16 %v2868, %v2867
      %v2874 = vpack.c.bf16 %v2870, %v2869
      %v2879 = vunpack.c.l.b16 %v2871
      %v2880 = vunpack.c.h.b16 %v2871
      %v2881 = vunpack.c.l.b16 %v2872
      %v2882 = vunpack.c.h.b16 %v2872
      %v2883 = vunpack.c.l.b16 %v2873
      %v2884 = vunpack.c.h.b16 %v2873
      %v2885 = vunpack.c.l.b16 %v2874
      %v2886 = vunpack.c.h.b16 %v2874
      %v2887 = vpack.c.b16 %v2879, %v2879
      %v2888 = vpack.c.b16 %v2880, %v2880
      %v2889 = vpack.c.b16 %v2881, %v2881
      %v2890 = vpack.c.b16 %v2882, %v2882
      %v2891 = vpack.c.b16 %v2883, %v2883
      %v2892 = vpack.c.b16 %v2884, %v2884
      %v2893 = vpack.c.b16 %v2885, %v2885
      %v2894 = vpack.c.b16 %v2886, %v2886
      %2895 = vrot.lane.b32.xlu0 %v2887, 24
      %v2896 = vpop.permute.xlu0 %2895
      %2897 = vrot.lane.b32.xlu0 %v2888, 24
      %v2898 = vpop.permute.xlu0 %2897
      %2899 = vrot.lane.b32.xlu0 %v2889, 24
      %v2900 = vpop.permute.xlu0 %2899
      %2901 = vrot.lane.b32.xlu0 %v2890, 24
      %v2902 = vpop.permute.xlu0 %2901
      %2903 = vrot.lane.b32.xlu0 %v2891, 24
      %v2904 = vpop.permute.xlu0 %2903
      %2905 = vrot.lane.b32.xlu0 %v2892, 24
      %v2906 = vpop.permute.xlu0 %2905
      %2907 = vrot.lane.b32.xlu0 %v2893, 24
      %v2908 = vpop.permute.xlu0 %2907
      %2909 = vrot.lane.b32.xlu0 %v2894, 24
      %v2910 = vpop.permute.xlu0 %2909
      %vm2919 = vcmask 257216
      %2920 = vst.msk [vmem:[#allocation5] sm:$0xf] %vm2919, %v2896
      %2921 = vst.msk [vmem:[#allocation5 + $0x4] sm:$0xf] %vm2919, %v2898
      %2922 = vst.msk [vmem:[#allocation5 + $0x8] sm:$0xf] %vm2919, %v2900
      %2923 = vst.msk [vmem:[#allocation5 + $0xc] sm:$0xf] %vm2919, %v2902
      %2924 = vst.msk [vmem:[#allocation5 + $0x10] sm:$0xf] %vm2919, %v2904
      %2925 = vst.msk [vmem:[#allocation5 + $0x14] sm:$0xf] %vm2919, %v2906
      %2926 = vst.msk [vmem:[#allocation5 + $0x18] sm:$0xf] %vm2919, %v2908
      %2927 = vst.msk [vmem:[#allocation5 + $0x1c] sm:$0xf] %vm2919, %v2910
      %v2928 = vld [vmem:[#allocation5] sm:$0xf]
      %v2929 = vld [vmem:[#allocation5 + $0x4] sm:$0xf]
      %v2930 = vld [vmem:[#allocation5 + $0x8] sm:$0xf]
      %v2931 = vld [vmem:[#allocation5 + $0xc] sm:$0xf]
      %v2932 = vld [vmem:[#allocation5 + $0x10] sm:$0xf]
      %v2933 = vld [vmem:[#allocation5 + $0x14] sm:$0xf]
      %v2934 = vld [vmem:[#allocation5 + $0x18] sm:$0xf]
      %v2935 = vld [vmem:[#allocation5 + $0x1c] sm:$0xf]
      %v2936 = vld [vmem:[%s8] sm:$0xf]
      %v2937 = vld [vmem:[%s8 + $0x4] sm:$0xf]
      %v2938 = vld [vmem:[%s8 + $0x8] sm:$0xf]
      %v2939 = vld [vmem:[%s8 + $0xc] sm:$0xf]
      %v2940 = vld [vmem:[%s9] sm:$0x1]
      %v2942 = vlaneseq
      %v2943 = vshrl.u32 %v2942, 7
      %v2944 = vsub.s32 0, %v2943
      %v2945 = vrot.slane %v2940, %v2944
      %v2955 = vunpack.c.l.b16 %v2928
      %v2956 = vunpack.c.l.b16 %v2929
      %v2957 = vunpack.c.l.b16 %v2930
      %v2958 = vunpack.c.l.b16 %v2931
      %v2959 = vunpack.c.l.b16 %v2932
      %v2960 = vunpack.c.l.b16 %v2933
      %v2961 = vunpack.c.l.b16 %v2934
      %v2962 = vunpack.c.l.b16 %v2935
      %v2963 = vpack.c.b16 %v2956, %v2955
      %v2964 = vpack.c.b16 %v2958, %v2957
      %v2965 = vpack.c.b16 %v2960, %v2959
      %v2966 = vpack.c.b16 %v2962, %v2961
      %v2971 = vunpack.c.l.b16 %v2936
      %v2972 = vunpack.c.l.b16 %v2937
      %v2973 = vunpack.c.l.b16 %v2938
      %v2974 = vunpack.c.l.b16 %v2939
      %v2975 = vpack.c.b16 %v2972, %v2971
      %v2976 = vpack.c.b16 %v2974, %v2973
      %v2980 = vsel %vm965, %v2963, 0
      %v2983 = vsel %vm965, %v2964, 0
      %v2986 = vsel %vm965, %v2965, 0
      %v2989 = vsel %vm965, %v2966, 0
      %2991 = vmatprep.subr.bf16.mxu0 0
      %2992 = vmatpush1.bf16.msra.mxu0 0
      %2993 = vmatprep.subr.bf16.mxu0 0
      %2994 = vmatpush1.bf16.msra.mxu0 0
      %2995 = vmatprep.subr.bf16.mxu0 0
      %2996 = vmatpush1.bf16.msra.mxu0 0
      %2997 = vmatprep.subr.bf16.mxu0 0
      %2998 = vmatpush1.bf16.msra.mxu0 0
      %2999 = vmatprep.subr.bf16.mxu0 0
      %3000 = vmatpush1.bf16.msra.mxu0 0
      %3001 = vmatprep.subr.bf16.mxu0 0
      %3002 = vmatpush1.bf16.msra.mxu0 0
      %3003 = vmatprep.subr.bf16.mxu0 0
      %3004 = vmatpush1.bf16.msra.mxu0 %v2976
      %3005 = vmatprep.subr.bf16.mxu0 0
      %3006 = vmatpush1.bf16.msra.mxu0 %v2975
      %3007 = vmatprep.subr.bf16.mxu0 0
      %3008 = vmatpush2.bf16.msra.mxu0 0
      %3009 = vmatprep.subr.bf16.mxu0 0
      %3010 = vmatpush2.bf16.msra.mxu0 0
      %3011 = vmatprep.subr.bf16.mxu0 0
      %3012 = vmatpush2.bf16.msra.mxu0 0
      %3013 = vmatprep.subr.bf16.mxu0 0
      %3014 = vmatpush2.bf16.msra.mxu0 0
      %3015 = vmatprep.subr.bf16.mxu0 0
      %3016 = vmatpush2.bf16.msra.mxu0 0
      %3017 = vmatprep.subr.bf16.mxu0 0
      %3018 = vmatpush2.bf16.msra.mxu0 0
      %3019 = vmatprep.subr.bf16.mxu0 0
      %3020 = vmatpush2.bf16.msra.mxu0 0
      %3021 = vmatprep.subr.bf16.mxu0 0
      %3022 = vmatpush2.bf16.msra.mxu0 0
      %3023 = vmatprep.mubr.bf16.mxu0 0
      %3024 = vmatmul.mubr.bf16.gmra.mxu0 %v2980
      %v3025 = vpop.f32.mrf.mxu0
      %v3026 = vadd.f32 %v2945, %v3025
      %v3027 = vpop.f32.mrf.mxu0
      %v3028 = vpop.f32.mrf.mxu0
      %v3029 = vadd.f32 %v2945, %v3028
      %v3030 = vpop.f32.mrf.mxu0
      %3031 = vmatprep.mubr.bf16.mxu0 0
      %3032 = vmatmul.mubr.bf16.gmra.mxu0 %v2983
      %v3033 = vpop.f32.mrf.mxu0
      %v3034 = vadd.f32 %v2945, %v3033
      %v3035 = vpop.f32.mrf.mxu0
      %v3036 = vpop.f32.mrf.mxu0
      %v3037 = vadd.f32 %v2945, %v3036
      %v3038 = vpop.f32.mrf.mxu0
      %3039 = vmatprep.mubr.bf16.mxu0 0
      %3040 = vmatmul.mubr.bf16.gmra.mxu0 %v2986
      %v3041 = vpop.f32.mrf.mxu0
      %v3042 = vadd.f32 %v2945, %v3041
      %v3043 = vpop.f32.mrf.mxu0
      %v3044 = vpop.f32.mrf.mxu0
      %v3045 = vadd.f32 %v2945, %v3044
      %v3046 = vpop.f32.mrf.mxu0
      %3047 = vmatprep.mubr.bf16.mxu0 0
      %3048 = vmatmul.mubr.bf16.gmra.mxu0 %v2989
      %v3049 = vpop.f32.mrf.mxu0
      %v3050 = vadd.f32 %v2945, %v3049
      %v3051 = vpop.f32.mrf.mxu0
      %v3052 = vpop.f32.mrf.mxu0
      %v3053 = vadd.f32 %v2945, %v3052
      %v3054 = vpop.f32.mrf.mxu0
      %3055 = vdwg.mxu0
      %3056 = vst.msk [vmem:[%s381] sm:$0xff] %vm965, %v3026
      %3057 = vst.msk [vmem:[%s381 + $0x8] sm:$0xff] %vm965, %v3029
      %3058 = vst.msk [vmem:[%s381 + $0x10] sm:$0xff] %vm965, %v3034
      %3059 = vst.msk [vmem:[%s381 + $0x18] sm:$0xff] %vm965, %v3037
      %3060 = vst.msk [vmem:[%s381 + $0x20] sm:$0xff] %vm965, %v3042
      %3061 = vst.msk [vmem:[%s381 + $0x28] sm:$0xff] %vm965, %v3045
      %3062 = vst.msk [vmem:[%s381 + $0x30] sm:$0xff] %vm965, %v3050
      %3063 = vst.msk [vmem:[%s381 + $0x38] sm:$0xff] %vm965, %v3053
      %s3064 = smul.u32 8, %s26
      %p3065 = scmp.lt.s32.totalorder %s25, 1
      %s3066 = scalar_select %p3065, %s25, 1
      %p3067 = scmp.lt.s32.totalorder %s3064, 7
      %s3068 = scalar_select %p3067, %s3064, 7
      %s3069 = smul.addr %s3066, 8
      %s3070 = sadd.s32 %s3068, %s3069
      %s3071 = smul.addr %s3070, 8
      %s3072 = scalar_lea.vmem %s10, %s3071
      // Predicated region
      $region65: #{tpu_custom_call.1} parent=59 // pred_check
        %p3073 = pneg %p268
      $region66: #{tpu_custom_call.1} parent=59 // pred_check_branch
        %3075 = sbr.rel (%p3073) target = $region68
      $region67: #{tpu_custom_call.1} parent=59 // pred_region
        %s3076 = smul.u32 8, %s26
      $region68: #{tpu_custom_call.1} parent=59 // pred_fallthru
        _
    $region60: #{tpu_custom_call.1} parent=5 // pred_fallthru
      _
    %p3077 = scmp.le.s32.totalorder 2, %s16
    // Predicated region
    $region69: #{tpu_custom_call.1} parent=5 // pred_check
      %p3078 = pneg %p3077
    $region70: #{tpu_custom_call.1} parent=5 // pred_check_branch
      %3080 = sbr.rel (%p3078) target = $region72
    $region71: #{tpu_custom_call.1} parent=5 // pred_region
      %s3081 = ssub.s32 %s16, 2
      // Predicated region
      $region73: #{tpu_custom_call.1} parent=71 // pred_check
        %p3082 = pneg %p274
      $region74: #{tpu_custom_call.1} parent=71 // pred_check_branch
        %3084 = sbr.rel (%p3082) target = $region76
      $region75: #{tpu_custom_call.1} parent=71 // pred_region
        %s3085 = smul.u32 8, %s28
        %p3086 = scmp.lt.s32.totalorder %s27, 1
        %s3087 = scalar_select %p3086, %s27, 1
        %p3088 = scmp.lt.s32.totalorder %s3085, 7
        %s3089 = scalar_select %p3088, %s3085, 7
        %s3090 = smul.addr %s3087, 8
        %s3091 = sadd.s32 %s3089, %s3090
        %s3092 = smul.addr %s3091, 8
        %s3093 = scalar_lea.vmem %s10, %s3092
      $region76: #{tpu_custom_call.1} parent=71 // pred_fallthru
        _
    $region72: #{tpu_custom_call.1} parent=5 // pred_fallthru
      _
  $region6: #{tpu_custom_call.1} parent=0 // loop_footer
    %s20 = sadd.s32 1, %s16
  $region7: #{tpu_custom_call.1} parent=0 // loop_footer_branch
    %15 = sbr.rel target = $region3
  $region8: #{tpu_custom_call.1} parent=0 // loop_exit
    _

</llo_original>
